<compile_context>
chip_gen: v7x
topology: tpu7x:2x2x1
jax: 0.10.0
libtpu: 0.0.40
codegen_flags: <defaults>
</compile_context>

<pallas_src>
import functools

import jax
import jax.numpy as jnp
from jax.experimental import pallas as pl
from jax.experimental.pallas import tpu as pltpu


def _pfn_compute(x_ref, w_ref, shift_ref, P, U):
    """Shared body: lane-dense linear (BN scale folded) -> +shift -> ReLU -> per-voxel max."""
    x = x_ref[...]                                              # (tile_v, P*Cin)
    w = w_ref[...]                                              # (P*Cin, P*U) block-diagonal
    y = jnp.dot(x, w, preferred_element_type=jnp.float32)       # (tile_v, P*U)
    y = jnp.maximum(y + shift_ref[...], 0.0)
    # Max over the P point-groups (each U lanes wide) via a lane-rotate tree.
    m = y
    s = P // 2
    while s >= 1:
        m = jnp.maximum(m, pltpu.roll(m, shift=s * U, axis=1))
        s //= 2
    y_max = m[:, :U]                                            # (tile_v, U)
    return y, y_max


def _pfn_kernel_concat(x_ref, w_ref, shift_ref, y_ref, ymax_ref, *, P, U):
    """Non-last layer: write per-point features AND per-voxel max (no broadcast/concat)."""
    y, y_max = _pfn_compute(x_ref, w_ref, shift_ref, P, U)
    y_ref[...] = y.astype(y_ref.dtype)
    ymax_ref[...] = y_max.astype(ymax_ref.dtype)


def _pfn_kernel_last(x_ref, w_ref, shift_ref, ymax_ref, *, P, U):
    """Last layer: write only the per-voxel max."""
    _, y_max = _pfn_compute(x_ref, w_ref, shift_ref, P, U)
    ymax_ref[...] = y_max.astype(ymax_ref.dtype)


@functools.partial(jax.jit, static_argnames=("last_layer", "tile_v"))
def pfn_layer(inputs, weight, bn_scale, bn_shift, *, last_layer=False, tile_v=256):
    """PFNLayer forward (inference BatchNorm).

    inputs:   (V, P, Cin) float32, P a power of two (points per voxel)
    weight:   (Cin, U) float32   (transpose of PyTorch nn.Linear weight)
    bn_scale: (U,) float32       gamma / sqrt(running_var + eps)
    bn_shift: (U,) float32       beta - running_mean * bn_scale

    Returns the PyTorch-equivalent output:
      last_layer=False -> (V, P, 2U)   [y concatenated with broadcast y_max]
      last_layer=True  -> (V, 1, U)
    """
    V, P, Cin = inputs.shape
    U = weight.shape[1]
    assert P & (P - 1) == 0, "P (points per voxel) must be a power of two"
    # TODO(synk): for very large / non-power-of-two P, fall back to a per-point
    #             matmul path instead of the block-diagonal weight trick.

    # Fold BN scale into the weight; build block-diagonal weight so the whole
    # tile is ONE lane-dense matmul: (tile_v, P*Cin) @ (P*Cin, P*U).
    w_folded = weight * bn_scale.reshape(1, U)
    w_bd = jnp.kron(jnp.eye(P, dtype=weight.dtype), w_folded)     # (P*Cin, P*U)
    shift_flat = jnp.tile(bn_shift.reshape(1, U), (1, P))         # (1, P*U)

    # Lane-dense 2-D view of the input (free; HBM layout unchanged).
    x2 = inputs.reshape(V, P * Cin)

    # Pad ragged V up to a multiple of tile_v (padded voxels are sliced off).
    tile_v = max(8, (int(tile_v) // 8) * 8)
    v_pad = ((V + tile_v - 1) // tile_v) * tile_v
    if v_pad != V:
        x2 = jnp.pad(x2, ((0, v_pad - V), (0, 0)))
    grid = (v_pad // tile_v,)

    in_specs = [
        pl.BlockSpec((tile_v, P * Cin), lambda i: (i, 0)),        # streamed input
        pl.BlockSpec((P * Cin, P * U), lambda i: (0, 0)),         # resident weight
        pl.BlockSpec((1, P * U), lambda i: (0, 0)),               # resident shift
    ]
    out_dtype = inputs.dtype  # TODO(synk): bf16 outputs would halve HBM writes on v6e/v7x.

    if last_layer:
        kernel = functools.partial(_pfn_kernel_last, P=P, U=U)
        out_shape = jax.ShapeDtypeStruct((v_pad, U), out_dtype)
        out_specs = pl.BlockSpec((tile_v, U), lambda i: (i, 0))
    else:
        kernel = functools.partial(_pfn_kernel_concat, P=P, U=U)
        out_shape = (jax.ShapeDtypeStruct((v_pad, P * U), out_dtype),
                     jax.ShapeDtypeStruct((v_pad, U), out_dtype))
        out_specs = (pl.BlockSpec((tile_v, P * U), lambda i: (i, 0)),
                     pl.BlockSpec((tile_v, U), lambda i: (i, 0)))

    result = pl.pallas_call(
        kernel,
        out_shape=out_shape,
        grid_spec=pltpu.PrefetchScalarGridSpec(
            num_scalar_prefetch=0,
            grid=grid,
            in_specs=in_specs,
            out_specs=out_specs,
        ),
        compiler_params=pltpu.CompilerParams(
            dimension_semantics=("parallel",)),
    )(x2, w_bd, shift_flat)

    if last_layer:
        return result[:V].reshape(V, 1, U)

    y_flat, ymax2 = result
    y = y_flat[:V].reshape(V, P, U)
    y_max = ymax2[:V].reshape(V, 1, U)
    # Assemble the PyTorch-equivalent concatenated output.  A real pipeline
    # should consume (y, y_max) directly and skip this redundant broadcast.
    return jnp.concatenate([y, jnp.broadcast_to(y_max, (V, P, U))], axis=-1)


def _reference(inputs, weight, bn_scale, bn_shift, last_layer):
    """Pure-JAX reference mirroring the PyTorch forward (inference BN)."""
    y = jnp.einsum("vpc,cu->vpu", inputs, weight)
    y = y * bn_scale.reshape(1, 1, -1) + bn_shift.reshape(1, 1, -1)
    y = jnp.maximum(y, 0.0)
    y_max = jnp.max(y, axis=1, keepdims=True)
    if last_layer:
        return y_max
    return jnp.concatenate([y, jnp.broadcast_to(y_max, y.shape)], axis=-1)


if __name__ == "__main__":
    # V voxels (ragged, exercises padding), P points/voxel, Cin in-channels.
    V, P, Cin = 1000, 32, 16
    out_channels = 64
    last_layer = False
    U = out_channels if last_layer else out_channels // 2        # self.units

    key = jax.random.PRNGKey(0)
    k_in, k_w, k_g, k_b, k_m, k_v = jax.random.split(key, 6)

    inputs = jax.random.normal(k_in, (V, P, Cin), dtype=jnp.float32)

    # nn.Linear(in_channels, units, bias=False): weight (U, Cin); we use its transpose.
    w_torch_layout = jax.random.normal(k_w, (U, Cin), dtype=jnp.float32) * 0.1
    weight = w_torch_layout.T                                     # (Cin, U)

    # BatchNorm1d(U, eps=1e-3) parameters / running stats (inference semantics).
    gamma = 1.0 + 0.1 * jax.random.normal(k_g, (U,), dtype=jnp.float32)
    beta = 0.1 * jax.random.normal(k_b, (U,), dtype=jnp.float32)
    running_mean = 0.1 * jax.random.normal(k_m, (U,), dtype=jnp.float32)
    running_var = jnp.abs(jax.random.normal(k_v, (U,), dtype=jnp.float32)) + 0.5
    eps = 1e-3
    bn_scale = gamma / jnp.sqrt(running_var + eps)
    bn_shift = beta - running_mean * bn_scale

    # Non-last layer (concat path).
    out = pfn_layer(inputs, weight, bn_scale, bn_shift, last_layer=False, tile_v=256)
    out = jax.block_until_ready(out)
    ref = _reference(inputs, weight, bn_scale, bn_shift, last_layer=False)
    assert out.shape == ref.shape == (V, P, 2 * U), (out.shape, ref.shape)
    assert jnp.allclose(out, ref, atol=1e-4, rtol=1e-4), "concat path mismatch vs reference"

    # Last layer (max-only path) with the same weights (module(in=16, out=32, last_layer=True)).
    out_last = pfn_layer(inputs, weight, bn_scale, bn_shift, last_layer=True, tile_v=256)
    out_last = jax.block_until_ready(out_last)
    ref_last = _reference(inputs, weight, bn_scale, bn_shift, last_layer=True)
    assert out_last.shape == ref_last.shape == (V, 1, U), (out_last.shape, ref_last.shape)
    assert jnp.allclose(out_last, ref_last, atol=1e-4, rtol=1e-4), "last-layer mismatch vs reference"

    print("KERNEL_OK")
</pallas_src>

<mosaic_0001>
module attributes {stable_mosaic.version = 11 : i64} {
  func.func @_pfn_kernel_concat(%arg0: i32, %arg1: memref<256x512xf32, #tpu.memory_space<vmem>>, %arg2: memref<512x1024xf32, #tpu.memory_space<vmem>>, %arg3: memref<1x1024xf32, #tpu.memory_space<vmem>>, %arg4: memref<256x1024xf32, #tpu.memory_space<vmem>>, %arg5: memref<256x32xf32, #tpu.memory_space<vmem>>) attributes {dimension_semantics = [#tpu.dimension_semantics<parallel>], iteration_bounds = array<i64: 4>, scalar_prefetch = 0 : i64, scratch_operands = 0 : i64, tpu.core_type = #tpu.core_type<tc>, window_params = [{transform_indices = @transform_0, window_bounds = array<i64: 256, 512>}, {pipeline_mode = #tpu.pipeline_mode<synchronous>, transform_indices = @transform_1, window_bounds = array<i64: 512, 1024>}, {pipeline_mode = #tpu.pipeline_mode<synchronous>, transform_indices = @transform_2, window_bounds = array<i64: 1, 1024>}, {transform_indices = @transform_3, window_bounds = array<i64: 256, 1024>}, {transform_indices = @transform_4, window_bounds = array<i64: 256, 32>}]} {
    %c0 = arith.constant 0 : index
    %c0_0 = arith.constant 0 : index
    %0 = vector.load %arg1[%c0, %c0_0] : memref<256x512xf32, #tpu.memory_space<vmem>>, vector<256x512xf32>
    %c0_1 = arith.constant 0 : index
    %c0_2 = arith.constant 0 : index
    %1 = vector.load %arg2[%c0_1, %c0_2] : memref<512x1024xf32, #tpu.memory_space<vmem>>, vector<512x1024xf32>
    %cst = arith.constant dense<0.000000e+00> : vector<256x1024xf32>
    %2 = tpu.matmul %0, %1, %cst {dimension_numbers = #tpu.dot_dimension_numbers<[1], [0], [0], [1], [0, 0, 1, 1], [], []>} : vector<256x512xf32>, vector<512x1024xf32>, vector<256x1024xf32> -> vector<256x1024xf32>
    %c0_3 = arith.constant 0 : index
    %c0_4 = arith.constant 0 : index
    %3 = vector.load %arg3[%c0_3, %c0_4] : memref<1x1024xf32, #tpu.memory_space<vmem>>, vector<1x1024xf32>
    %4 = vector.broadcast %3 : vector<1x1024xf32> to vector<256x1024xf32>
    %5 = arith.addf %2, %4 : vector<256x1024xf32>
    %cst_5 = arith.constant 0.000000e+00 : f32
    %6 = vector.broadcast %cst_5 : f32 to vector<256x1024xf32>
    %7 = arith.maximumf %5, %6 : vector<256x1024xf32>
    %c512_i32 = arith.constant 512 : i32
    %8 = tpu.dynamic_rotate %7 by %c512_i32 dim 1 : vector<256x1024xf32>, i32 -> vector<256x1024xf32>
    %9 = arith.maximumf %7, %8 : vector<256x1024xf32>
    %c256_i32 = arith.constant 256 : i32
    %10 = tpu.dynamic_rotate %9 by %c256_i32 dim 1 : vector<256x1024xf32>, i32 -> vector<256x1024xf32>
    %11 = arith.maximumf %9, %10 : vector<256x1024xf32>
    %c128_i32 = arith.constant 128 : i32
    %12 = tpu.dynamic_rotate %11 by %c128_i32 dim 1 : vector<256x1024xf32>, i32 -> vector<256x1024xf32>
    %13 = arith.maximumf %11, %12 : vector<256x1024xf32>
    %c64_i32 = arith.constant 64 : i32
    %14 = tpu.dynamic_rotate %13 by %c64_i32 dim 1 : vector<256x1024xf32>, i32 -> vector<256x1024xf32>
    %15 = arith.maximumf %13, %14 : vector<256x1024xf32>
    %c32_i32 = arith.constant 32 : i32
    %16 = tpu.dynamic_rotate %15 by %c32_i32 dim 1 : vector<256x1024xf32>, i32 -> vector<256x1024xf32>
    %17 = arith.maximumf %15, %16 : vector<256x1024xf32>
    %18 = vector.extract_strided_slice %17 {offsets = [0, 0], sizes = [256, 32], strides = [1, 1]} : vector<256x1024xf32> to vector<256x32xf32>
    %c0_6 = arith.constant 0 : index
    %c0_7 = arith.constant 0 : index
    %19 = vector.load %arg4[%c0_6, %c0_7] : memref<256x1024xf32, #tpu.memory_space<vmem>>, vector<256x1024xf32>
    tpu.vector_store %arg4[%c0_6, %c0_7], %7 {strides = array<i32>} : memref<256x1024xf32, #tpu.memory_space<vmem>>, vector<256x1024xf32>,
    %c0_8 = arith.constant 0 : index
    %c0_9 = arith.constant 0 : index
    %20 = vector.load %arg5[%c0_8, %c0_9] : memref<256x32xf32, #tpu.memory_space<vmem>>, vector<256x32xf32>
    tpu.vector_store %arg5[%c0_8, %c0_9], %18 {strides = array<i32>} : memref<256x32xf32, #tpu.memory_space<vmem>>, vector<256x32xf32>,
    return
  }
  func.func @transform_0(%arg0: i32) -> (i32, i32) {
    %c0_i32 = arith.constant 0 : i32
    %c0_i32_0 = arith.constant 0 : i32
    return %arg0, %c0_i32 : i32, i32
  }
  func.func @transform_1(%arg0: i32) -> (i32, i32) {
    %c0_i32 = arith.constant 0 : i32
    %c0_i32_0 = arith.constant 0 : i32
    %c0_i32_1 = arith.constant 0 : i32
    return %c0_i32, %c0_i32_0 : i32, i32
  }
  func.func @transform_2(%arg0: i32) -> (i32, i32) {
    %c0_i32 = arith.constant 0 : i32
    %c0_i32_0 = arith.constant 0 : i32
    %c0_i32_1 = arith.constant 0 : i32
    return %c0_i32, %c0_i32_0 : i32, i32
  }
  func.func @transform_3(%arg0: i32) -> (i32, i32) {
    %c0_i32 = arith.constant 0 : i32
    %c0_i32_0 = arith.constant 0 : i32
    return %arg0, %c0_i32 : i32, i32
  }
  func.func @transform_4(%arg0: i32) -> (i32, i32) {
    %c0_i32 = arith.constant 0 : i32
    %c0_i32_0 = arith.constant 0 : i32
    return %arg0, %c0_i32 : i32, i32
  }
}

</mosaic_0001>

<llo_original>
// kernel: pfn_layer.1
$region0: #{pfn_layer.1}
  #allocation0 [shape = 'u32[]', space=smem, size = 0x4, offset = 0x4, fixed_abs, tag = 'smem constant byte address 0x4 - core index']
  #allocation1 [shape = 'u32[144,128]{1,0:T(1,128)}', space=vmem, size = 0x12000, scoped, tag = 'internal scratch']
  %s0 = inlined_call_operand.vmem [shape: f32[1024,512], index: 0, kind: input, shape index: {}]
  %s1 = inlined_call_operand.vmem [shape: f32[512,1024], index: 1, kind: input, shape index: {}]
  %s2 = inlined_call_operand.vmem [shape: f32[1,1024], index: 2, kind: input, shape index: {}]
  %s3 = inlined_call_operand.vmem [shape: f32[1024,1024], index: 3, kind: output, shape index: {0}]
  %s4 = inlined_call_operand.vmem [shape: f32[1024,32], index: 4, kind: output, shape index: {1}]
  %5 = xla_tuple %s3, %s4
  %s6 = sld [smem:[#allocation0]]
  $region53: #{pfn_layer.1} parent=0
    _
  %s8 = ssub.s32 1, %s6
  %s9 = scalar_select 0, %s8, %s6
  loop: start=0, step=1, limit=6
  $region2: #{pfn_layer.1} parent=0 // loop_pre_header
    _
  $region3: #{pfn_layer.1} parent=0 // loop_header
    %s11 = sphi 0, %s15
    %p12 = scmp.ge.s32.totalorder %s11, 6
    %s21 = sphi 0, %s23
    %s24 = sphi 0, %s21
    %s25 = sphi 0, %s24
    %s41 = sphi 0, %s25
    %s45 = sphi 0, %s45
    %s47 = sphi 0, %s45
    %s48 = sphi 0, %s47
    %s62 = sphi 0, %s48
    %s66 = sphi 0, %s66
    %s68 = sphi 0, %s66
    %s69 = sphi 0, %s68
    %s83 = sphi 0, %s69
    %s89 = sphi 0, %s91
    %s92 = sphi 0, %s89
    %s93 = sphi 0, %s92
    %s109 = sphi 0, %s93
    %s115 = sphi 0, %s117
    %s118 = sphi 0, %s115
    %s119 = sphi 0, %s118
    %s135 = sphi 0, %s119
  $region4: #{pfn_layer.1} parent=0 // loop_header_branch
    %14 = sbr.rel (%p12) target = $region8
  $region5: #{pfn_layer.1} parent=0 // loop_body
    %s16 = ssub.s32 %s11, 1
    %s17 = ssub.s32 %s11, 2
    %s18 = sadd.s32 %s11, 1
    %s19 = ssub.s32 %s11, %s18
    %p20 = scmp.eq.s32.totalorder %s19, 0
    %s22 = sadd.s32 %s21, 1
    %s23 = scalar_select %p20, %s21, %s22
    %p26 = pneg %p20
    %p27 = scmp.eq.s32.totalorder %s11, 3
    %p28 = por %p26, %p27
    %p29 = scmp.ne.s32.totalorder %s21, %s24
    %p30 = scmp.eq.s32.totalorder %s11, 0
    %p31 = por %p29, %p30
    %p32 = scmp.ne.s32.totalorder %s21, %s24
    %p33 = scmp.eq.s32.totalorder %s16, 3
    %p34 = por %p32, %p33
    %p35 = scmp.ne.s32.totalorder %s24, %s25
    %p36 = scmp.eq.s32.totalorder %s16, 0
    %p37 = por %p35, %p36
    %p38 = scmp.ne.s32.totalorder %s24, %s25
    %p39 = scmp.eq.s32.totalorder %s17, 3
    %p40 = por %p38, %p39
    %p42 = scmp.ne.s32.totalorder %s25, %s41
    %p43 = scmp.eq.s32.totalorder %s17, 0
    %p44 = por %p42, %p43
    %s46 = sadd.s32 %s45, 1
    %p49 = scmp.eq.s32.totalorder %s11, 3
    %p50 = scmp.ne.s32.totalorder %s45, %s47
    %p51 = scmp.eq.s32.totalorder %s11, 0
    %p52 = por %p50, %p51
    %p53 = scmp.ne.s32.totalorder %s45, %s47
    %p54 = scmp.eq.s32.totalorder %s16, 3
    %p55 = por %p53, %p54
    %p56 = scmp.ne.s32.totalorder %s47, %s48
    %p57 = scmp.eq.s32.totalorder %s16, 0
    %p58 = por %p56, %p57
    %p59 = scmp.ne.s32.totalorder %s47, %s48
    %p60 = scmp.eq.s32.totalorder %s17, 3
    %p61 = por %p59, %p60
    %p63 = scmp.ne.s32.totalorder %s48, %s62
    %p64 = scmp.eq.s32.totalorder %s17, 0
    %p65 = por %p63, %p64
    %s67 = sadd.s32 %s66, 1
    %p70 = scmp.eq.s32.totalorder %s11, 3
    %p71 = scmp.ne.s32.totalorder %s66, %s68
    %p72 = scmp.eq.s32.totalorder %s11, 0
    %p73 = por %p71, %p72
    %p74 = scmp.ne.s32.totalorder %s66, %s68
    %p75 = scmp.eq.s32.totalorder %s16, 3
    %p76 = por %p74, %p75
    %p77 = scmp.ne.s32.totalorder %s68, %s69
    %p78 = scmp.eq.s32.totalorder %s16, 0
    %p79 = por %p77, %p78
    %p80 = scmp.ne.s32.totalorder %s68, %s69
    %p81 = scmp.eq.s32.totalorder %s17, 3
    %p82 = por %p80, %p81
    %p84 = scmp.ne.s32.totalorder %s69, %s83
    %p85 = scmp.eq.s32.totalorder %s17, 0
    %p86 = por %p84, %p85
    %s87 = ssub.s32 %s11, %s18
    %p88 = scmp.eq.s32.totalorder %s87, 0
    %s90 = sadd.s32 %s89, 1
    %s91 = scalar_select %p88, %s89, %s90
    %p94 = pneg %p88
    %p95 = scmp.eq.s32.totalorder %s11, 3
    %p96 = por %p94, %p95
    %p97 = scmp.ne.s32.totalorder %s89, %s92
    %p98 = scmp.eq.s32.totalorder %s11, 0
    %p99 = por %p97, %p98
    %p100 = scmp.ne.s32.totalorder %s89, %s92
    %p101 = scmp.eq.s32.totalorder %s16, 3
    %p102 = por %p100, %p101
    %p103 = scmp.ne.s32.totalorder %s92, %s93
    %p104 = scmp.eq.s32.totalorder %s16, 0
    %p105 = por %p103, %p104
    %p106 = scmp.ne.s32.totalorder %s92, %s93
    %p107 = scmp.eq.s32.totalorder %s17, 3
    %p108 = por %p106, %p107
    %p110 = scmp.ne.s32.totalorder %s93, %s109
    %p111 = scmp.eq.s32.totalorder %s17, 0
    %p112 = por %p110, %p111
    %s113 = ssub.s32 %s11, %s18
    %p114 = scmp.eq.s32.totalorder %s113, 0
    %s116 = sadd.s32 %s115, 1
    %s117 = scalar_select %p114, %s115, %s116
    %p120 = pneg %p114
    %p121 = scmp.eq.s32.totalorder %s11, 3
    %p122 = por %p120, %p121
    %p123 = scmp.ne.s32.totalorder %s115, %s118
    %p124 = scmp.eq.s32.totalorder %s11, 0
    %p125 = por %p123, %p124
    %p126 = scmp.ne.s32.totalorder %s115, %s118
    %p127 = scmp.eq.s32.totalorder %s16, 3
    %p128 = por %p126, %p127
    %p129 = scmp.ne.s32.totalorder %s118, %s119
    %p130 = scmp.eq.s32.totalorder %s16, 0
    %p131 = por %p129, %p130
    %p132 = scmp.ne.s32.totalorder %s118, %s119
    %p133 = scmp.eq.s32.totalorder %s17, 3
    %p134 = por %p132, %p133
    %p136 = scmp.ne.s32.totalorder %s119, %s135
    %p137 = scmp.eq.s32.totalorder %s17, 0
    %p138 = por %p136, %p137
    %p139 = scmp.le.s32.totalorder 1, %s11
    %p140 = scmp.lt.s32.totalorder %s11, 5
    %p141 = pnand %p139, %p140
    %p142 = pneg %p141
    // Predicated region
    $region9: #{pfn_layer.1} parent=5 // pred_check
      _
    $region10: #{pfn_layer.1} parent=5 // pred_check_branch
      %144 = sbr.rel (%p141) target = $region12
    $region11: #{pfn_layer.1} parent=5 // pred_region
      %s145 = ssub.s32 %s11, 1
      // Predicated region
      $region13: #{pfn_layer.1} parent=11 // pred_check
        %p146 = pneg %p58
      $region14: #{pfn_layer.1} parent=11 // pred_check_branch
        %148 = sbr.rel (%p146) target = $region16
      $region15: #{pfn_layer.1} parent=11 // pred_region
        _
      $region16: #{pfn_layer.1} parent=11 // pred_fallthru
        _
      // Predicated region
      $region17: #{pfn_layer.1} parent=11 // pred_check
        %p149 = pneg %p79
      $region18: #{pfn_layer.1} parent=11 // pred_check_branch
        %151 = sbr.rel (%p149) target = $region20
      $region19: #{pfn_layer.1} parent=11 // pred_region
        _
      $region20: #{pfn_layer.1} parent=11 // pred_fallthru
        _
    $region12: #{pfn_layer.1} parent=5 // pred_fallthru
      _
    %p152 = scmp.lt.s32.totalorder %s11, 4
    // Predicated region
    $region21: #{pfn_layer.1} parent=5 // pred_check
      %p153 = pneg %p152
    $region22: #{pfn_layer.1} parent=5 // pred_check_branch
      %155 = sbr.rel (%p153) target = $region24
    $region23: #{pfn_layer.1} parent=5 // pred_region
      // Predicated region
      $region25: #{pfn_layer.1} parent=23 // pred_check
        %p156 = pneg %p31
      $region26: #{pfn_layer.1} parent=23 // pred_check_branch
        %158 = sbr.rel (%p156) target = $region28
      $region27: #{pfn_layer.1} parent=23 // pred_region
        %s159 = smul.u32 32, %s11
        %p160 = scmp.lt.s32.totalorder %s159, 127
        %s161 = scalar_select %p160, %s159, 127
        %s162 = smul.addr %s161, 4
        %s163 = smul.addr %s162, 8
        %s164 = scalar_lea.vmem %s0, %s163
        %s165 = smul.u32 32, %s11
      $region28: #{pfn_layer.1} parent=23 // pred_fallthru
        _
    $region24: #{pfn_layer.1} parent=5 // pred_fallthru
      _
    %p166 = scmp.le.s32.totalorder 1, %s11
    %p167 = scmp.lt.s32.totalorder %s11, 5
    %p168 = pnand %p166, %p167
    %p169 = pneg %p168
    // Predicated region
    $region29: #{pfn_layer.1} parent=5 // pred_check
      _
    $region30: #{pfn_layer.1} parent=5 // pred_check_branch
      %171 = sbr.rel (%p168) target = $region32
    $region31: #{pfn_layer.1} parent=5 // pred_region
      %s172 = ssub.s32 %s11, 1
      %s173 = smul.u32 32, %s16
      %p174 = scmp.lt.s32.totalorder %s173, 127
      %s175 = scalar_select %p174, %s173, 127
      %s176 = smul.addr %s175, 4
      %s177 = smul.addr %s176, 8
      %s178 = scalar_lea.vmem %s0, %s177
      %p179 = pneg %p37
      %p180 = pneg %p34
      %p181 = pneg %p58
      %p182 = pneg %p55
      %p183 = pneg %p79
      %p184 = pneg %p76
      %p185 = pneg %p105
      %p186 = pneg %p102
      %s187 = smul.u32 32, %s16
      %p188 = scmp.lt.s32.totalorder %s187, 127
      %s189 = scalar_select %p188, %s187, 127
      %s190 = smul.addr %s189, 8
      %s191 = smul.addr %s190, 8
      %s192 = scalar_lea.vmem %s3, %s191
      %p193 = pneg %p131
      %p194 = pneg %p128
      %s195 = smul.u32 32, %s16
      %p196 = scmp.lt.s32.totalorder %s195, 127
      %s197 = scalar_select %p196, %s195, 127
      %s198 = smul.addr %s197, 8
      %s199 = scalar_lea.vmem %s4, %s198
      %s200 = smul.u32 32, %s16
      %p201 = scmp.lt.s32.totalorder %s200, 127
      %s202 = scalar_select %p201, %s200, 127
      %s203 = smul.addr %s202, 4
      %s204 = smul.addr %s203, 8
      %s205 = scalar_lea.vmem %s0, %s204
      %s206 = smul.u32 32, %s16
      %s207 = smul.u32 32, %s16
      %p208 = scmp.lt.s32.totalorder %s207, 127
      %s209 = scalar_select %p208, %s207, 127
      %s210 = smul.addr %s209, 8
      %s211 = smul.addr %s210, 8
      %s212 = scalar_lea.vmem %s3, %s211
      %s213 = smul.u32 32, %s16
      %s214 = smul.u32 32, %s16
      %p215 = scmp.lt.s32.totalorder %s214, 127
      %s216 = scalar_select %p215, %s214, 127
      %s217 = smul.addr %s216, 8
      %s218 = scalar_lea.vmem %s4, %s217
      %s219 = smul.u32 32, %s16
      %v220 = vld [vmem:[%s205] sm:$0xff]
      %v221 = vld [vmem:[%s205 + $0x8] sm:$0xff]
      %v222 = vld [vmem:[%s205 + $0x10] sm:$0xff]
      %v223 = vld [vmem:[%s205 + $0x18] sm:$0xff]
      %v224 = vld [vmem:[%s205 + $0x20] sm:$0xff]
      %v225 = vld [vmem:[%s205 + $0x28] sm:$0xff]
      %v226 = vld [vmem:[%s205 + $0x30] sm:$0xff]
      %v227 = vld [vmem:[%s205 + $0x38] sm:$0xff]
      %v228 = vld [vmem:[%s205 + $0x40] sm:$0xff]
      %v229 = vld [vmem:[%s205 + $0x48] sm:$0xff]
      %v230 = vld [vmem:[%s205 + $0x50] sm:$0xff]
      %v231 = vld [vmem:[%s205 + $0x58] sm:$0xff]
      %v232 = vld [vmem:[%s205 + $0x60] sm:$0xff]
      %v233 = vld [vmem:[%s205 + $0x68] sm:$0xff]
      %v234 = vld [vmem:[%s205 + $0x70] sm:$0xff]
      %v235 = vld [vmem:[%s205 + $0x78] sm:$0xff]
      %v236 = vld [vmem:[%s205 + $0x80] sm:$0xff]
      %v237 = vld [vmem:[%s205 + $0x88] sm:$0xff]
      %v238 = vld [vmem:[%s205 + $0x90] sm:$0xff]
      %v239 = vld [vmem:[%s205 + $0x98] sm:$0xff]
      %v240 = vld [vmem:[%s205 + $0xa0] sm:$0xff]
      %v241 = vld [vmem:[%s205 + $0xa8] sm:$0xff]
      %v242 = vld [vmem:[%s205 + $0xb0] sm:$0xff]
      %v243 = vld [vmem:[%s205 + $0xb8] sm:$0xff]
      %v244 = vld [vmem:[%s205 + $0xc0] sm:$0xff]
      %v245 = vld [vmem:[%s205 + $0xc8] sm:$0xff]
      %v246 = vld [vmem:[%s205 + $0xd0] sm:$0xff]
      %v247 = vld [vmem:[%s205 + $0xd8] sm:$0xff]
      %v248 = vld [vmem:[%s205 + $0xe0] sm:$0xff]
      %v249 = vld [vmem:[%s205 + $0xe8] sm:$0xff]
      %v250 = vld [vmem:[%s205 + $0xf0] sm:$0xff]
      %v251 = vld [vmem:[%s205 + $0xf8] sm:$0xff]
      %v252 = vld [vmem:[%s205 + $0x100] sm:$0xff]
      %v253 = vld [vmem:[%s205 + $0x108] sm:$0xff]
      %v254 = vld [vmem:[%s205 + $0x110] sm:$0xff]
      %v255 = vld [vmem:[%s205 + $0x118] sm:$0xff]
      %v256 = vld [vmem:[%s205 + $0x120] sm:$0xff]
      %v257 = vld [vmem:[%s205 + $0x128] sm:$0xff]
      %v258 = vld [vmem:[%s205 + $0x130] sm:$0xff]
      %v259 = vld [vmem:[%s205 + $0x138] sm:$0xff]
      %v260 = vld [vmem:[%s205 + $0x140] sm:$0xff]
      %v261 = vld [vmem:[%s205 + $0x148] sm:$0xff]
      %v262 = vld [vmem:[%s205 + $0x150] sm:$0xff]
      %v263 = vld [vmem:[%s205 + $0x158] sm:$0xff]
      %v264 = vld [vmem:[%s205 + $0x160] sm:$0xff]
      %v265 = vld [vmem:[%s205 + $0x168] sm:$0xff]
      %v266 = vld [vmem:[%s205 + $0x170] sm:$0xff]
      %v267 = vld [vmem:[%s205 + $0x178] sm:$0xff]
      %v268 = vld [vmem:[%s205 + $0x180] sm:$0xff]
      %v269 = vld [vmem:[%s205 + $0x188] sm:$0xff]
      %v270 = vld [vmem:[%s205 + $0x190] sm:$0xff]
      %v271 = vld [vmem:[%s205 + $0x198] sm:$0xff]
      %v272 = vld [vmem:[%s205 + $0x1a0] sm:$0xff]
      %v273 = vld [vmem:[%s205 + $0x1a8] sm:$0xff]
      %v274 = vld [vmem:[%s205 + $0x1b0] sm:$0xff]
      %v275 = vld [vmem:[%s205 + $0x1b8] sm:$0xff]
      %v276 = vld [vmem:[%s205 + $0x1c0] sm:$0xff]
      %v277 = vld [vmem:[%s205 + $0x1c8] sm:$0xff]
      %v278 = vld [vmem:[%s205 + $0x1d0] sm:$0xff]
      %v279 = vld [vmem:[%s205 + $0x1d8] sm:$0xff]
      %v280 = vld [vmem:[%s205 + $0x1e0] sm:$0xff]
      %v281 = vld [vmem:[%s205 + $0x1e8] sm:$0xff]
      %v282 = vld [vmem:[%s205 + $0x1f0] sm:$0xff]
      %v283 = vld [vmem:[%s205 + $0x1f8] sm:$0xff]
      %v284 = vld [vmem:[%s205 + $0x200] sm:$0xff]
      %v285 = vld [vmem:[%s205 + $0x208] sm:$0xff]
      %v286 = vld [vmem:[%s205 + $0x210] sm:$0xff]
      %v287 = vld [vmem:[%s205 + $0x218] sm:$0xff]
      %v288 = vld [vmem:[%s205 + $0x220] sm:$0xff]
      %v289 = vld [vmem:[%s205 + $0x228] sm:$0xff]
      %v290 = vld [vmem:[%s205 + $0x230] sm:$0xff]
      %v291 = vld [vmem:[%s205 + $0x238] sm:$0xff]
      %v292 = vld [vmem:[%s205 + $0x240] sm:$0xff]
      %v293 = vld [vmem:[%s205 + $0x248] sm:$0xff]
      %v294 = vld [vmem:[%s205 + $0x250] sm:$0xff]
      %v295 = vld [vmem:[%s205 + $0x258] sm:$0xff]
      %v296 = vld [vmem:[%s205 + $0x260] sm:$0xff]
      %v297 = vld [vmem:[%s205 + $0x268] sm:$0xff]
      %v298 = vld [vmem:[%s205 + $0x270] sm:$0xff]
      %v299 = vld [vmem:[%s205 + $0x278] sm:$0xff]
      %v300 = vld [vmem:[%s205 + $0x280] sm:$0xff]
      %v301 = vld [vmem:[%s205 + $0x288] sm:$0xff]
      %v302 = vld [vmem:[%s205 + $0x290] sm:$0xff]
      %v303 = vld [vmem:[%s205 + $0x298] sm:$0xff]
      %v304 = vld [vmem:[%s205 + $0x2a0] sm:$0xff]
      %v305 = vld [vmem:[%s205 + $0x2a8] sm:$0xff]
      %v306 = vld [vmem:[%s205 + $0x2b0] sm:$0xff]
      %v307 = vld [vmem:[%s205 + $0x2b8] sm:$0xff]
      %v308 = vld [vmem:[%s205 + $0x2c0] sm:$0xff]
      %v309 = vld [vmem:[%s205 + $0x2c8] sm:$0xff]
      %v310 = vld [vmem:[%s205 + $0x2d0] sm:$0xff]
      %v311 = vld [vmem:[%s205 + $0x2d8] sm:$0xff]
      %v312 = vld [vmem:[%s205 + $0x2e0] sm:$0xff]
      %v313 = vld [vmem:[%s205 + $0x2e8] sm:$0xff]
      %v314 = vld [vmem:[%s205 + $0x2f0] sm:$0xff]
      %v315 = vld [vmem:[%s205 + $0x2f8] sm:$0xff]
      %v316 = vld [vmem:[%s205 + $0x300] sm:$0xff]
      %v317 = vld [vmem:[%s205 + $0x308] sm:$0xff]
      %v318 = vld [vmem:[%s205 + $0x310] sm:$0xff]
      %v319 = vld [vmem:[%s205 + $0x318] sm:$0xff]
      %v320 = vld [vmem:[%s205 + $0x320] sm:$0xff]
      %v321 = vld [vmem:[%s205 + $0x328] sm:$0xff]
      %v322 = vld [vmem:[%s205 + $0x330] sm:$0xff]
      %v323 = vld [vmem:[%s205 + $0x338] sm:$0xff]
      %v324 = vld [vmem:[%s205 + $0x340] sm:$0xff]
      %v325 = vld [vmem:[%s205 + $0x348] sm:$0xff]
      %v326 = vld [vmem:[%s205 + $0x350] sm:$0xff]
      %v327 = vld [vmem:[%s205 + $0x358] sm:$0xff]
      %v328 = vld [vmem:[%s205 + $0x360] sm:$0xff]
      %v329 = vld [vmem:[%s205 + $0x368] sm:$0xff]
      %v330 = vld [vmem:[%s205 + $0x370] sm:$0xff]
      %v331 = vld [vmem:[%s205 + $0x378] sm:$0xff]
      %v332 = vld [vmem:[%s205 + $0x380] sm:$0xff]
      %v333 = vld [vmem:[%s205 + $0x388] sm:$0xff]
      %v334 = vld [vmem:[%s205 + $0x390] sm:$0xff]
      %v335 = vld [vmem:[%s205 + $0x398] sm:$0xff]
      %v336 = vld [vmem:[%s205 + $0x3a0] sm:$0xff]
      %v337 = vld [vmem:[%s205 + $0x3a8] sm:$0xff]
      %v338 = vld [vmem:[%s205 + $0x3b0] sm:$0xff]
      %v339 = vld [vmem:[%s205 + $0x3b8] sm:$0xff]
      %v340 = vld [vmem:[%s205 + $0x3c0] sm:$0xff]
      %v341 = vld [vmem:[%s205 + $0x3c8] sm:$0xff]
      %v342 = vld [vmem:[%s205 + $0x3d0] sm:$0xff]
      %v343 = vld [vmem:[%s205 + $0x3d8] sm:$0xff]
      %v344 = vld [vmem:[%s205 + $0x3e0] sm:$0xff]
      %v345 = vld [vmem:[%s205 + $0x3e8] sm:$0xff]
      %v346 = vld [vmem:[%s205 + $0x3f0] sm:$0xff]
      %v347 = vld [vmem:[%s205 + $0x3f8] sm:$0xff]
      %v348 = vld [vmem:[%s1] sm:$0xff]
      %v349 = vld [vmem:[%s1 + $0x8] sm:$0xff]
      %v350 = vld [vmem:[%s1 + $0x10] sm:$0xff]
      %v351 = vld [vmem:[%s1 + $0x18] sm:$0xff]
      %v352 = vld [vmem:[%s1 + $0x20] sm:$0xff]
      %v353 = vld [vmem:[%s1 + $0x28] sm:$0xff]
      %v354 = vld [vmem:[%s1 + $0x30] sm:$0xff]
      %v355 = vld [vmem:[%s1 + $0x38] sm:$0xff]
      %v356 = vld [vmem:[%s1 + $0x40] sm:$0xff]
      %v357 = vld [vmem:[%s1 + $0x48] sm:$0xff]
      %v358 = vld [vmem:[%s1 + $0x50] sm:$0xff]
      %v359 = vld [vmem:[%s1 + $0x58] sm:$0xff]
      %v360 = vld [vmem:[%s1 + $0x60] sm:$0xff]
      %v361 = vld [vmem:[%s1 + $0x68] sm:$0xff]
      %v362 = vld [vmem:[%s1 + $0x70] sm:$0xff]
      %v363 = vld [vmem:[%s1 + $0x78] sm:$0xff]
      %v364 = vld [vmem:[%s1 + $0x80] sm:$0xff]
      %v365 = vld [vmem:[%s1 + $0x88] sm:$0xff]
      %v366 = vld [vmem:[%s1 + $0x90] sm:$0xff]
      %v367 = vld [vmem:[%s1 + $0x98] sm:$0xff]
      %v368 = vld [vmem:[%s1 + $0xa0] sm:$0xff]
      %v369 = vld [vmem:[%s1 + $0xa8] sm:$0xff]
      %v370 = vld [vmem:[%s1 + $0xb0] sm:$0xff]
      %v371 = vld [vmem:[%s1 + $0xb8] sm:$0xff]
      %v372 = vld [vmem:[%s1 + $0xc0] sm:$0xff]
      %v373 = vld [vmem:[%s1 + $0xc8] sm:$0xff]
      %v374 = vld [vmem:[%s1 + $0xd0] sm:$0xff]
      %v375 = vld [vmem:[%s1 + $0xd8] sm:$0xff]
      %v376 = vld [vmem:[%s1 + $0xe0] sm:$0xff]
      %v377 = vld [vmem:[%s1 + $0xe8] sm:$0xff]
      %v378 = vld [vmem:[%s1 + $0xf0] sm:$0xff]
      %v379 = vld [vmem:[%s1 + $0xf8] sm:$0xff]
      %v380 = vld [vmem:[%s1 + $0x100] sm:$0xff]
      %v381 = vld [vmem:[%s1 + $0x108] sm:$0xff]
      %v382 = vld [vmem:[%s1 + $0x110] sm:$0xff]
      %v383 = vld [vmem:[%s1 + $0x118] sm:$0xff]
      %v384 = vld [vmem:[%s1 + $0x120] sm:$0xff]
      %v385 = vld [vmem:[%s1 + $0x128] sm:$0xff]
      %v386 = vld [vmem:[%s1 + $0x130] sm:$0xff]
      %v387 = vld [vmem:[%s1 + $0x138] sm:$0xff]
      %v388 = vld [vmem:[%s1 + $0x140] sm:$0xff]
      %v389 = vld [vmem:[%s1 + $0x148] sm:$0xff]
      %v390 = vld [vmem:[%s1 + $0x150] sm:$0xff]
      %v391 = vld [vmem:[%s1 + $0x158] sm:$0xff]
      %v392 = vld [vmem:[%s1 + $0x160] sm:$0xff]
      %v393 = vld [vmem:[%s1 + $0x168] sm:$0xff]
      %v394 = vld [vmem:[%s1 + $0x170] sm:$0xff]
      %v395 = vld [vmem:[%s1 + $0x178] sm:$0xff]
      %v396 = vld [vmem:[%s1 + $0x180] sm:$0xff]
      %v397 = vld [vmem:[%s1 + $0x188] sm:$0xff]
      %v398 = vld [vmem:[%s1 + $0x190] sm:$0xff]
      %v399 = vld [vmem:[%s1 + $0x198] sm:$0xff]
      %v400 = vld [vmem:[%s1 + $0x1a0] sm:$0xff]
      %v401 = vld [vmem:[%s1 + $0x1a8] sm:$0xff]
      %v402 = vld [vmem:[%s1 + $0x1b0] sm:$0xff]
      %v403 = vld [vmem:[%s1 + $0x1b8] sm:$0xff]
      %v404 = vld [vmem:[%s1 + $0x1c0] sm:$0xff]
      %v405 = vld [vmem:[%s1 + $0x1c8] sm:$0xff]
      %v406 = vld [vmem:[%s1 + $0x1d0] sm:$0xff]
      %v407 = vld [vmem:[%s1 + $0x1d8] sm:$0xff]
      %v408 = vld [vmem:[%s1 + $0x1e0] sm:$0xff]
      %v409 = vld [vmem:[%s1 + $0x1e8] sm:$0xff]
      %v410 = vld [vmem:[%s1 + $0x1f0] sm:$0xff]
      %v411 = vld [vmem:[%s1 + $0x1f8] sm:$0xff]
      %v412 = vld [vmem:[%s1 + $0x200] sm:$0xff]
      %v413 = vld [vmem:[%s1 + $0x208] sm:$0xff]
      %v414 = vld [vmem:[%s1 + $0x210] sm:$0xff]
      %v415 = vld [vmem:[%s1 + $0x218] sm:$0xff]
      %v416 = vld [vmem:[%s1 + $0x220] sm:$0xff]
      %v417 = vld [vmem:[%s1 + $0x228] sm:$0xff]
      %v418 = vld [vmem:[%s1 + $0x230] sm:$0xff]
      %v419 = vld [vmem:[%s1 + $0x238] sm:$0xff]
      %v420 = vld [vmem:[%s1 + $0x240] sm:$0xff]
      %v421 = vld [vmem:[%s1 + $0x248] sm:$0xff]
      %v422 = vld [vmem:[%s1 + $0x250] sm:$0xff]
      %v423 = vld [vmem:[%s1 + $0x258] sm:$0xff]
      %v424 = vld [vmem:[%s1 + $0x260] sm:$0xff]
      %v425 = vld [vmem:[%s1 + $0x268] sm:$0xff]
      %v426 = vld [vmem:[%s1 + $0x270] sm:$0xff]
      %v427 = vld [vmem:[%s1 + $0x278] sm:$0xff]
      %v428 = vld [vmem:[%s1 + $0x280] sm:$0xff]
      %v429 = vld [vmem:[%s1 + $0x288] sm:$0xff]
      %v430 = vld [vmem:[%s1 + $0x290] sm:$0xff]
      %v431 = vld [vmem:[%s1 + $0x298] sm:$0xff]
      %v432 = vld [vmem:[%s1 + $0x2a0] sm:$0xff]
      %v433 = vld [vmem:[%s1 + $0x2a8] sm:$0xff]
      %v434 = vld [vmem:[%s1 + $0x2b0] sm:$0xff]
      %v435 = vld [vmem:[%s1 + $0x2b8] sm:$0xff]
      %v436 = vld [vmem:[%s1 + $0x2c0] sm:$0xff]
      %v437 = vld [vmem:[%s1 + $0x2c8] sm:$0xff]
      %v438 = vld [vmem:[%s1 + $0x2d0] sm:$0xff]
      %v439 = vld [vmem:[%s1 + $0x2d8] sm:$0xff]
      %v440 = vld [vmem:[%s1 + $0x2e0] sm:$0xff]
      %v441 = vld [vmem:[%s1 + $0x2e8] sm:$0xff]
      %v442 = vld [vmem:[%s1 + $0x2f0] sm:$0xff]
      %v443 = vld [vmem:[%s1 + $0x2f8] sm:$0xff]
      %v444 = vld [vmem:[%s1 + $0x300] sm:$0xff]
      %v445 = vld [vmem:[%s1 + $0x308] sm:$0xff]
      %v446 = vld [vmem:[%s1 + $0x310] sm:$0xff]
      %v447 = vld [vmem:[%s1 + $0x318] sm:$0xff]
      %v448 = vld [vmem:[%s1 + $0x320] sm:$0xff]
      %v449 = vld [vmem:[%s1 + $0x328] sm:$0xff]
      %v450 = vld [vmem:[%s1 + $0x330] sm:$0xff]
      %v451 = vld [vmem:[%s1 + $0x338] sm:$0xff]
      %v452 = vld [vmem:[%s1 + $0x340] sm:$0xff]
      %v453 = vld [vmem:[%s1 + $0x348] sm:$0xff]
      %v454 = vld [vmem:[%s1 + $0x350] sm:$0xff]
      %v455 = vld [vmem:[%s1 + $0x358] sm:$0xff]
      %v456 = vld [vmem:[%s1 + $0x360] sm:$0xff]
      %v457 = vld [vmem:[%s1 + $0x368] sm:$0xff]
      %v458 = vld [vmem:[%s1 + $0x370] sm:$0xff]
      %v459 = vld [vmem:[%s1 + $0x378] sm:$0xff]
      %v460 = vld [vmem:[%s1 + $0x380] sm:$0xff]
      %v461 = vld [vmem:[%s1 + $0x388] sm:$0xff]
      %v462 = vld [vmem:[%s1 + $0x390] sm:$0xff]
      %v463 = vld [vmem:[%s1 + $0x398] sm:$0xff]
      %v464 = vld [vmem:[%s1 + $0x3a0] sm:$0xff]
      %v465 = vld [vmem:[%s1 + $0x3a8] sm:$0xff]
      %v466 = vld [vmem:[%s1 + $0x3b0] sm:$0xff]
      %v467 = vld [vmem:[%s1 + $0x3b8] sm:$0xff]
      %v468 = vld [vmem:[%s1 + $0x3c0] sm:$0xff]
      %v469 = vld [vmem:[%s1 + $0x3c8] sm:$0xff]
      %v470 = vld [vmem:[%s1 + $0x3d0] sm:$0xff]
      %v471 = vld [vmem:[%s1 + $0x3d8] sm:$0xff]
      %v472 = vld [vmem:[%s1 + $0x3e0] sm:$0xff]
      %v473 = vld [vmem:[%s1 + $0x3e8] sm:$0xff]
      %v474 = vld [vmem:[%s1 + $0x3f0] sm:$0xff]
      %v475 = vld [vmem:[%s1 + $0x3f8] sm:$0xff]
      %v476 = vld [vmem:[%s1 + $0x400] sm:$0xff]
      %v477 = vld [vmem:[%s1 + $0x408] sm:$0xff]
      %v478 = vld [vmem:[%s1 + $0x410] sm:$0xff]
      %v479 = vld [vmem:[%s1 + $0x418] sm:$0xff]
      %v480 = vld [vmem:[%s1 + $0x420] sm:$0xff]
      %v481 = vld [vmem:[%s1 + $0x428] sm:$0xff]
      %v482 = vld [vmem:[%s1 + $0x430] sm:$0xff]
      %v483 = vld [vmem:[%s1 + $0x438] sm:$0xff]
      %v484 = vld [vmem:[%s1 + $0x440] sm:$0xff]
      %v485 = vld [vmem:[%s1 + $0x448] sm:$0xff]
      %v486 = vld [vmem:[%s1 + $0x450] sm:$0xff]
      %v487 = vld [vmem:[%s1 + $0x458] sm:$0xff]
      %v488 = vld [vmem:[%s1 + $0x460] sm:$0xff]
      %v489 = vld [vmem:[%s1 + $0x468] sm:$0xff]
      %v490 = vld [vmem:[%s1 + $0x470] sm:$0xff]
      %v491 = vld [vmem:[%s1 + $0x478] sm:$0xff]
      %v492 = vld [vmem:[%s1 + $0x480] sm:$0xff]
      %v493 = vld [vmem:[%s1 + $0x488] sm:$0xff]
      %v494 = vld [vmem:[%s1 + $0x490] sm:$0xff]
      %v495 = vld [vmem:[%s1 + $0x498] sm:$0xff]
      %v496 = vld [vmem:[%s1 + $0x4a0] sm:$0xff]
      %v497 = vld [vmem:[%s1 + $0x4a8] sm:$0xff]
      %v498 = vld [vmem:[%s1 + $0x4b0] sm:$0xff]
      %v499 = vld [vmem:[%s1 + $0x4b8] sm:$0xff]
      %v500 = vld [vmem:[%s1 + $0x4c0] sm:$0xff]
      %v501 = vld [vmem:[%s1 + $0x4c8] sm:$0xff]
      %v502 = vld [vmem:[%s1 + $0x4d0] sm:$0xff]
      %v503 = vld [vmem:[%s1 + $0x4d8] sm:$0xff]
      %v504 = vld [vmem:[%s1 + $0x4e0] sm:$0xff]
      %v505 = vld [vmem:[%s1 + $0x4e8] sm:$0xff]
      %v506 = vld [vmem:[%s1 + $0x4f0] sm:$0xff]
      %v507 = vld [vmem:[%s1 + $0x4f8] sm:$0xff]
      %v508 = vld [vmem:[%s1 + $0x500] sm:$0xff]
      %v509 = vld [vmem:[%s1 + $0x508] sm:$0xff]
      %v510 = vld [vmem:[%s1 + $0x510] sm:$0xff]
      %v511 = vld [vmem:[%s1 + $0x518] sm:$0xff]
      %v512 = vld [vmem:[%s1 + $0x520] sm:$0xff]
      %v513 = vld [vmem:[%s1 + $0x528] sm:$0xff]
      %v514 = vld [vmem:[%s1 + $0x530] sm:$0xff]
      %v515 = vld [vmem:[%s1 + $0x538] sm:$0xff]
      %v516 = vld [vmem:[%s1 + $0x540] sm:$0xff]
      %v517 = vld [vmem:[%s1 + $0x548] sm:$0xff]
      %v518 = vld [vmem:[%s1 + $0x550] sm:$0xff]
      %v519 = vld [vmem:[%s1 + $0x558] sm:$0xff]
      %v520 = vld [vmem:[%s1 + $0x560] sm:$0xff]
      %v521 = vld [vmem:[%s1 + $0x568] sm:$0xff]
      %v522 = vld [vmem:[%s1 + $0x570] sm:$0xff]
      %v523 = vld [vmem:[%s1 + $0x578] sm:$0xff]
      %v524 = vld [vmem:[%s1 + $0x580] sm:$0xff]
      %v525 = vld [vmem:[%s1 + $0x588] sm:$0xff]
      %v526 = vld [vmem:[%s1 + $0x590] sm:$0xff]
      %v527 = vld [vmem:[%s1 + $0x598] sm:$0xff]
      %v528 = vld [vmem:[%s1 + $0x5a0] sm:$0xff]
      %v529 = vld [vmem:[%s1 + $0x5a8] sm:$0xff]
      %v530 = vld [vmem:[%s1 + $0x5b0] sm:$0xff]
      %v531 = vld [vmem:[%s1 + $0x5b8] sm:$0xff]
      %v532 = vld [vmem:[%s1 + $0x5c0] sm:$0xff]
      %v533 = vld [vmem:[%s1 + $0x5c8] sm:$0xff]
      %v534 = vld [vmem:[%s1 + $0x5d0] sm:$0xff]
      %v535 = vld [vmem:[%s1 + $0x5d8] sm:$0xff]
      %v536 = vld [vmem:[%s1 + $0x5e0] sm:$0xff]
      %v537 = vld [vmem:[%s1 + $0x5e8] sm:$0xff]
      %v538 = vld [vmem:[%s1 + $0x5f0] sm:$0xff]
      %v539 = vld [vmem:[%s1 + $0x5f8] sm:$0xff]
      %v540 = vld [vmem:[%s1 + $0x600] sm:$0xff]
      %v541 = vld [vmem:[%s1 + $0x608] sm:$0xff]
      %v542 = vld [vmem:[%s1 + $0x610] sm:$0xff]
      %v543 = vld [vmem:[%s1 + $0x618] sm:$0xff]
      %v544 = vld [vmem:[%s1 + $0x620] sm:$0xff]
      %v545 = vld [vmem:[%s1 + $0x628] sm:$0xff]
      %v546 = vld [vmem:[%s1 + $0x630] sm:$0xff]
      %v547 = vld [vmem:[%s1 + $0x638] sm:$0xff]
      %v548 = vld [vmem:[%s1 + $0x640] sm:$0xff]
      %v549 = vld [vmem:[%s1 + $0x648] sm:$0xff]
      %v550 = vld [vmem:[%s1 + $0x650] sm:$0xff]
      %v551 = vld [vmem:[%s1 + $0x658] sm:$0xff]
      %v552 = vld [vmem:[%s1 + $0x660] sm:$0xff]
      %v553 = vld [vmem:[%s1 + $0x668] sm:$0xff]
      %v554 = vld [vmem:[%s1 + $0x670] sm:$0xff]
      %v555 = vld [vmem:[%s1 + $0x678] sm:$0xff]
      %v556 = vld [vmem:[%s1 + $0x680] sm:$0xff]
      %v557 = vld [vmem:[%s1 + $0x688] sm:$0xff]
      %v558 = vld [vmem:[%s1 + $0x690] sm:$0xff]
      %v559 = vld [vmem:[%s1 + $0x698] sm:$0xff]
      %v560 = vld [vmem:[%s1 + $0x6a0] sm:$0xff]
      %v561 = vld [vmem:[%s1 + $0x6a8] sm:$0xff]
      %v562 = vld [vmem:[%s1 + $0x6b0] sm:$0xff]
      %v563 = vld [vmem:[%s1 + $0x6b8] sm:$0xff]
      %v564 = vld [vmem:[%s1 + $0x6c0] sm:$0xff]
      %v565 = vld [vmem:[%s1 + $0x6c8] sm:$0xff]
      %v566 = vld [vmem:[%s1 + $0x6d0] sm:$0xff]
      %v567 = vld [vmem:[%s1 + $0x6d8] sm:$0xff]
      %v568 = vld [vmem:[%s1 + $0x6e0] sm:$0xff]
      %v569 = vld [vmem:[%s1 + $0x6e8] sm:$0xff]
      %v570 = vld [vmem:[%s1 + $0x6f0] sm:$0xff]
      %v571 = vld [vmem:[%s1 + $0x6f8] sm:$0xff]
      %v572 = vld [vmem:[%s1 + $0x700] sm:$0xff]
      %v573 = vld [vmem:[%s1 + $0x708] sm:$0xff]
      %v574 = vld [vmem:[%s1 + $0x710] sm:$0xff]
      %v575 = vld [vmem:[%s1 + $0x718] sm:$0xff]
      %v576 = vld [vmem:[%s1 + $0x720] sm:$0xff]
      %v577 = vld [vmem:[%s1 + $0x728] sm:$0xff]
      %v578 = vld [vmem:[%s1 + $0x730] sm:$0xff]
      %v579 = vld [vmem:[%s1 + $0x738] sm:$0xff]
      %v580 = vld [vmem:[%s1 + $0x740] sm:$0xff]
      %v581 = vld [vmem:[%s1 + $0x748] sm:$0xff]
      %v582 = vld [vmem:[%s1 + $0x750] sm:$0xff]
      %v583 = vld [vmem:[%s1 + $0x758] sm:$0xff]
      %v584 = vld [vmem:[%s1 + $0x760] sm:$0xff]
      %v585 = vld [vmem:[%s1 + $0x768] sm:$0xff]
      %v586 = vld [vmem:[%s1 + $0x770] sm:$0xff]
      %v587 = vld [vmem:[%s1 + $0x778] sm:$0xff]
      %v588 = vld [vmem:[%s1 + $0x780] sm:$0xff]
      %v589 = vld [vmem:[%s1 + $0x788] sm:$0xff]
      %v590 = vld [vmem:[%s1 + $0x790] sm:$0xff]
      %v591 = vld [vmem:[%s1 + $0x798] sm:$0xff]
      %v592 = vld [vmem:[%s1 + $0x7a0] sm:$0xff]
      %v593 = vld [vmem:[%s1 + $0x7a8] sm:$0xff]
      %v594 = vld [vmem:[%s1 + $0x7b0] sm:$0xff]
      %v595 = vld [vmem:[%s1 + $0x7b8] sm:$0xff]
      %v596 = vld [vmem:[%s1 + $0x7c0] sm:$0xff]
      %v597 = vld [vmem:[%s1 + $0x7c8] sm:$0xff]
      %v598 = vld [vmem:[%s1 + $0x7d0] sm:$0xff]
      %v599 = vld [vmem:[%s1 + $0x7d8] sm:$0xff]
      %v600 = vld [vmem:[%s1 + $0x7e0] sm:$0xff]
      %v601 = vld [vmem:[%s1 + $0x7e8] sm:$0xff]
      %v602 = vld [vmem:[%s1 + $0x7f0] sm:$0xff]
      %v603 = vld [vmem:[%s1 + $0x7f8] sm:$0xff]
      %v604 = vld [vmem:[%s1 + $0x800] sm:$0xff]
      %v605 = vld [vmem:[%s1 + $0x808] sm:$0xff]
      %v606 = vld [vmem:[%s1 + $0x810] sm:$0xff]
      %v607 = vld [vmem:[%s1 + $0x818] sm:$0xff]
      %v608 = vld [vmem:[%s1 + $0x820] sm:$0xff]
      %v609 = vld [vmem:[%s1 + $0x828] sm:$0xff]
      %v610 = vld [vmem:[%s1 + $0x830] sm:$0xff]
      %v611 = vld [vmem:[%s1 + $0x838] sm:$0xff]
      %v612 = vld [vmem:[%s1 + $0x840] sm:$0xff]
      %v613 = vld [vmem:[%s1 + $0x848] sm:$0xff]
      %v614 = vld [vmem:[%s1 + $0x850] sm:$0xff]
      %v615 = vld [vmem:[%s1 + $0x858] sm:$0xff]
      %v616 = vld [vmem:[%s1 + $0x860] sm:$0xff]
      %v617 = vld [vmem:[%s1 + $0x868] sm:$0xff]
      %v618 = vld [vmem:[%s1 + $0x870] sm:$0xff]
      %v619 = vld [vmem:[%s1 + $0x878] sm:$0xff]
      %v620 = vld [vmem:[%s1 + $0x880] sm:$0xff]
      %v621 = vld [vmem:[%s1 + $0x888] sm:$0xff]
      %v622 = vld [vmem:[%s1 + $0x890] sm:$0xff]
      %v623 = vld [vmem:[%s1 + $0x898] sm:$0xff]
      %v624 = vld [vmem:[%s1 + $0x8a0] sm:$0xff]
      %v625 = vld [vmem:[%s1 + $0x8a8] sm:$0xff]
      %v626 = vld [vmem:[%s1 + $0x8b0] sm:$0xff]
      %v627 = vld [vmem:[%s1 + $0x8b8] sm:$0xff]
      %v628 = vld [vmem:[%s1 + $0x8c0] sm:$0xff]
      %v629 = vld [vmem:[%s1 + $0x8c8] sm:$0xff]
      %v630 = vld [vmem:[%s1 + $0x8d0] sm:$0xff]
      %v631 = vld [vmem:[%s1 + $0x8d8] sm:$0xff]
      %v632 = vld [vmem:[%s1 + $0x8e0] sm:$0xff]
      %v633 = vld [vmem:[%s1 + $0x8e8] sm:$0xff]
      %v634 = vld [vmem:[%s1 + $0x8f0] sm:$0xff]
      %v635 = vld [vmem:[%s1 + $0x8f8] sm:$0xff]
      %v636 = vld [vmem:[%s1 + $0x900] sm:$0xff]
      %v637 = vld [vmem:[%s1 + $0x908] sm:$0xff]
      %v638 = vld [vmem:[%s1 + $0x910] sm:$0xff]
      %v639 = vld [vmem:[%s1 + $0x918] sm:$0xff]
      %v640 = vld [vmem:[%s1 + $0x920] sm:$0xff]
      %v641 = vld [vmem:[%s1 + $0x928] sm:$0xff]
      %v642 = vld [vmem:[%s1 + $0x930] sm:$0xff]
      %v643 = vld [vmem:[%s1 + $0x938] sm:$0xff]
      %v644 = vld [vmem:[%s1 + $0x940] sm:$0xff]
      %v645 = vld [vmem:[%s1 + $0x948] sm:$0xff]
      %v646 = vld [vmem:[%s1 + $0x950] sm:$0xff]
      %v647 = vld [vmem:[%s1 + $0x958] sm:$0xff]
      %v648 = vld [vmem:[%s1 + $0x960] sm:$0xff]
      %v649 = vld [vmem:[%s1 + $0x968] sm:$0xff]
      %v650 = vld [vmem:[%s1 + $0x970] sm:$0xff]
      %v651 = vld [vmem:[%s1 + $0x978] sm:$0xff]
      %v652 = vld [vmem:[%s1 + $0x980] sm:$0xff]
      %v653 = vld [vmem:[%s1 + $0x988] sm:$0xff]
      %v654 = vld [vmem:[%s1 + $0x990] sm:$0xff]
      %v655 = vld [vmem:[%s1 + $0x998] sm:$0xff]
      %v656 = vld [vmem:[%s1 + $0x9a0] sm:$0xff]
      %v657 = vld [vmem:[%s1 + $0x9a8] sm:$0xff]
      %v658 = vld [vmem:[%s1 + $0x9b0] sm:$0xff]
      %v659 = vld [vmem:[%s1 + $0x9b8] sm:$0xff]
      %v660 = vld [vmem:[%s1 + $0x9c0] sm:$0xff]
      %v661 = vld [vmem:[%s1 + $0x9c8] sm:$0xff]
      %v662 = vld [vmem:[%s1 + $0x9d0] sm:$0xff]
      %v663 = vld [vmem:[%s1 + $0x9d8] sm:$0xff]
      %v664 = vld [vmem:[%s1 + $0x9e0] sm:$0xff]
      %v665 = vld [vmem:[%s1 + $0x9e8] sm:$0xff]
      %v666 = vld [vmem:[%s1 + $0x9f0] sm:$0xff]
      %v667 = vld [vmem:[%s1 + $0x9f8] sm:$0xff]
      %v668 = vld [vmem:[%s1 + $0xa00] sm:$0xff]
      %v669 = vld [vmem:[%s1 + $0xa08] sm:$0xff]
      %v670 = vld [vmem:[%s1 + $0xa10] sm:$0xff]
      %v671 = vld [vmem:[%s1 + $0xa18] sm:$0xff]
      %v672 = vld [vmem:[%s1 + $0xa20] sm:$0xff]
      %v673 = vld [vmem:[%s1 + $0xa28] sm:$0xff]
      %v674 = vld [vmem:[%s1 + $0xa30] sm:$0xff]
      %v675 = vld [vmem:[%s1 + $0xa38] sm:$0xff]
      %v676 = vld [vmem:[%s1 + $0xa40] sm:$0xff]
      %v677 = vld [vmem:[%s1 + $0xa48] sm:$0xff]
      %v678 = vld [vmem:[%s1 + $0xa50] sm:$0xff]
      %v679 = vld [vmem:[%s1 + $0xa58] sm:$0xff]
      %v680 = vld [vmem:[%s1 + $0xa60] sm:$0xff]
      %v681 = vld [vmem:[%s1 + $0xa68] sm:$0xff]
      %v682 = vld [vmem:[%s1 + $0xa70] sm:$0xff]
      %v683 = vld [vmem:[%s1 + $0xa78] sm:$0xff]
      %v684 = vld [vmem:[%s1 + $0xa80] sm:$0xff]
      %v685 = vld [vmem:[%s1 + $0xa88] sm:$0xff]
      %v686 = vld [vmem:[%s1 + $0xa90] sm:$0xff]
      %v687 = vld [vmem:[%s1 + $0xa98] sm:$0xff]
      %v688 = vld [vmem:[%s1 + $0xaa0] sm:$0xff]
      %v689 = vld [vmem:[%s1 + $0xaa8] sm:$0xff]
      %v690 = vld [vmem:[%s1 + $0xab0] sm:$0xff]
      %v691 = vld [vmem:[%s1 + $0xab8] sm:$0xff]
      %v692 = vld [vmem:[%s1 + $0xac0] sm:$0xff]
      %v693 = vld [vmem:[%s1 + $0xac8] sm:$0xff]
      %v694 = vld [vmem:[%s1 + $0xad0] sm:$0xff]
      %v695 = vld [vmem:[%s1 + $0xad8] sm:$0xff]
      %v696 = vld [vmem:[%s1 + $0xae0] sm:$0xff]
      %v697 = vld [vmem:[%s1 + $0xae8] sm:$0xff]
      %v698 = vld [vmem:[%s1 + $0xaf0] sm:$0xff]
      %v699 = vld [vmem:[%s1 + $0xaf8] sm:$0xff]
      %v700 = vld [vmem:[%s1 + $0xb00] sm:$0xff]
      %v701 = vld [vmem:[%s1 + $0xb08] sm:$0xff]
      %v702 = vld [vmem:[%s1 + $0xb10] sm:$0xff]
      %v703 = vld [vmem:[%s1 + $0xb18] sm:$0xff]
      %v704 = vld [vmem:[%s1 + $0xb20] sm:$0xff]
      %v705 = vld [vmem:[%s1 + $0xb28] sm:$0xff]
      %v706 = vld [vmem:[%s1 + $0xb30] sm:$0xff]
      %v707 = vld [vmem:[%s1 + $0xb38] sm:$0xff]
      %v708 = vld [vmem:[%s1 + $0xb40] sm:$0xff]
      %v709 = vld [vmem:[%s1 + $0xb48] sm:$0xff]
      %v710 = vld [vmem:[%s1 + $0xb50] sm:$0xff]
      %v711 = vld [vmem:[%s1 + $0xb58] sm:$0xff]
      %v712 = vld [vmem:[%s1 + $0xb60] sm:$0xff]
      %v713 = vld [vmem:[%s1 + $0xb68] sm:$0xff]
      %v714 = vld [vmem:[%s1 + $0xb70] sm:$0xff]
      %v715 = vld [vmem:[%s1 + $0xb78] sm:$0xff]
      %v716 = vld [vmem:[%s1 + $0xb80] sm:$0xff]
      %v717 = vld [vmem:[%s1 + $0xb88] sm:$0xff]
      %v718 = vld [vmem:[%s1 + $0xb90] sm:$0xff]
      %v719 = vld [vmem:[%s1 + $0xb98] sm:$0xff]
      %v720 = vld [vmem:[%s1 + $0xba0] sm:$0xff]
      %v721 = vld [vmem:[%s1 + $0xba8] sm:$0xff]
      %v722 = vld [vmem:[%s1 + $0xbb0] sm:$0xff]
      %v723 = vld [vmem:[%s1 + $0xbb8] sm:$0xff]
      %v724 = vld [vmem:[%s1 + $0xbc0] sm:$0xff]
      %v725 = vld [vmem:[%s1 + $0xbc8] sm:$0xff]
      %v726 = vld [vmem:[%s1 + $0xbd0] sm:$0xff]
      %v727 = vld [vmem:[%s1 + $0xbd8] sm:$0xff]
      %v728 = vld [vmem:[%s1 + $0xbe0] sm:$0xff]
      %v729 = vld [vmem:[%s1 + $0xbe8] sm:$0xff]
      %v730 = vld [vmem:[%s1 + $0xbf0] sm:$0xff]
      %v731 = vld [vmem:[%s1 + $0xbf8] sm:$0xff]
      %v732 = vld [vmem:[%s1 + $0xc00] sm:$0xff]
      %v733 = vld [vmem:[%s1 + $0xc08] sm:$0xff]
      %v734 = vld [vmem:[%s1 + $0xc10] sm:$0xff]
      %v735 = vld [vmem:[%s1 + $0xc18] sm:$0xff]
      %v736 = vld [vmem:[%s1 + $0xc20] sm:$0xff]
      %v737 = vld [vmem:[%s1 + $0xc28] sm:$0xff]
      %v738 = vld [vmem:[%s1 + $0xc30] sm:$0xff]
      %v739 = vld [vmem:[%s1 + $0xc38] sm:$0xff]
      %v740 = vld [vmem:[%s1 + $0xc40] sm:$0xff]
      %v741 = vld [vmem:[%s1 + $0xc48] sm:$0xff]
      %v742 = vld [vmem:[%s1 + $0xc50] sm:$0xff]
      %v743 = vld [vmem:[%s1 + $0xc58] sm:$0xff]
      %v744 = vld [vmem:[%s1 + $0xc60] sm:$0xff]
      %v745 = vld [vmem:[%s1 + $0xc68] sm:$0xff]
      %v746 = vld [vmem:[%s1 + $0xc70] sm:$0xff]
      %v747 = vld [vmem:[%s1 + $0xc78] sm:$0xff]
      %v748 = vld [vmem:[%s1 + $0xc80] sm:$0xff]
      %v749 = vld [vmem:[%s1 + $0xc88] sm:$0xff]
      %v750 = vld [vmem:[%s1 + $0xc90] sm:$0xff]
      %v751 = vld [vmem:[%s1 + $0xc98] sm:$0xff]
      %v752 = vld [vmem:[%s1 + $0xca0] sm:$0xff]
      %v753 = vld [vmem:[%s1 + $0xca8] sm:$0xff]
      %v754 = vld [vmem:[%s1 + $0xcb0] sm:$0xff]
      %v755 = vld [vmem:[%s1 + $0xcb8] sm:$0xff]
      %v756 = vld [vmem:[%s1 + $0xcc0] sm:$0xff]
      %v757 = vld [vmem:[%s1 + $0xcc8] sm:$0xff]
      %v758 = vld [vmem:[%s1 + $0xcd0] sm:$0xff]
      %v759 = vld [vmem:[%s1 + $0xcd8] sm:$0xff]
      %v760 = vld [vmem:[%s1 + $0xce0] sm:$0xff]
      %v761 = vld [vmem:[%s1 + $0xce8] sm:$0xff]
      %v762 = vld [vmem:[%s1 + $0xcf0] sm:$0xff]
      %v763 = vld [vmem:[%s1 + $0xcf8] sm:$0xff]
      %v764 = vld [vmem:[%s1 + $0xd00] sm:$0xff]
      %v765 = vld [vmem:[%s1 + $0xd08] sm:$0xff]
      %v766 = vld [vmem:[%s1 + $0xd10] sm:$0xff]
      %v767 = vld [vmem:[%s1 + $0xd18] sm:$0xff]
      %v768 = vld [vmem:[%s1 + $0xd20] sm:$0xff]
      %v769 = vld [vmem:[%s1 + $0xd28] sm:$0xff]
      %v770 = vld [vmem:[%s1 + $0xd30] sm:$0xff]
      %v771 = vld [vmem:[%s1 + $0xd38] sm:$0xff]
      %v772 = vld [vmem:[%s1 + $0xd40] sm:$0xff]
      %v773 = vld [vmem:[%s1 + $0xd48] sm:$0xff]
      %v774 = vld [vmem:[%s1 + $0xd50] sm:$0xff]
      %v775 = vld [vmem:[%s1 + $0xd58] sm:$0xff]
      %v776 = vld [vmem:[%s1 + $0xd60] sm:$0xff]
      %v777 = vld [vmem:[%s1 + $0xd68] sm:$0xff]
      %v778 = vld [vmem:[%s1 + $0xd70] sm:$0xff]
      %v779 = vld [vmem:[%s1 + $0xd78] sm:$0xff]
      %v780 = vld [vmem:[%s1 + $0xd80] sm:$0xff]
      %v781 = vld [vmem:[%s1 + $0xd88] sm:$0xff]
      %v782 = vld [vmem:[%s1 + $0xd90] sm:$0xff]
      %v783 = vld [vmem:[%s1 + $0xd98] sm:$0xff]
      %v784 = vld [vmem:[%s1 + $0xda0] sm:$0xff]
      %v785 = vld [vmem:[%s1 + $0xda8] sm:$0xff]
      %v786 = vld [vmem:[%s1 + $0xdb0] sm:$0xff]
      %v787 = vld [vmem:[%s1 + $0xdb8] sm:$0xff]
      %v788 = vld [vmem:[%s1 + $0xdc0] sm:$0xff]
      %v789 = vld [vmem:[%s1 + $0xdc8] sm:$0xff]
      %v790 = vld [vmem:[%s1 + $0xdd0] sm:$0xff]
      %v791 = vld [vmem:[%s1 + $0xdd8] sm:$0xff]
      %v792 = vld [vmem:[%s1 + $0xde0] sm:$0xff]
      %v793 = vld [vmem:[%s1 + $0xde8] sm:$0xff]
      %v794 = vld [vmem:[%s1 + $0xdf0] sm:$0xff]
      %v795 = vld [vmem:[%s1 + $0xdf8] sm:$0xff]
      %v796 = vld [vmem:[%s1 + $0xe00] sm:$0xff]
      %v797 = vld [vmem:[%s1 + $0xe08] sm:$0xff]
      %v798 = vld [vmem:[%s1 + $0xe10] sm:$0xff]
      %v799 = vld [vmem:[%s1 + $0xe18] sm:$0xff]
      %v800 = vld [vmem:[%s1 + $0xe20] sm:$0xff]
      %v801 = vld [vmem:[%s1 + $0xe28] sm:$0xff]
      %v802 = vld [vmem:[%s1 + $0xe30] sm:$0xff]
      %v803 = vld [vmem:[%s1 + $0xe38] sm:$0xff]
      %v804 = vld [vmem:[%s1 + $0xe40] sm:$0xff]
      %v805 = vld [vmem:[%s1 + $0xe48] sm:$0xff]
      %v806 = vld [vmem:[%s1 + $0xe50] sm:$0xff]
      %v807 = vld [vmem:[%s1 + $0xe58] sm:$0xff]
      %v808 = vld [vmem:[%s1 + $0xe60] sm:$0xff]
      %v809 = vld [vmem:[%s1 + $0xe68] sm:$0xff]
      %v810 = vld [vmem:[%s1 + $0xe70] sm:$0xff]
      %v811 = vld [vmem:[%s1 + $0xe78] sm:$0xff]
      %v812 = vld [vmem:[%s1 + $0xe80] sm:$0xff]
      %v813 = vld [vmem:[%s1 + $0xe88] sm:$0xff]
      %v814 = vld [vmem:[%s1 + $0xe90] sm:$0xff]
      %v815 = vld [vmem:[%s1 + $0xe98] sm:$0xff]
      %v816 = vld [vmem:[%s1 + $0xea0] sm:$0xff]
      %v817 = vld [vmem:[%s1 + $0xea8] sm:$0xff]
      %v818 = vld [vmem:[%s1 + $0xeb0] sm:$0xff]
      %v819 = vld [vmem:[%s1 + $0xeb8] sm:$0xff]
      %v820 = vld [vmem:[%s1 + $0xec0] sm:$0xff]
      %v821 = vld [vmem:[%s1 + $0xec8] sm:$0xff]
      %v822 = vld [vmem:[%s1 + $0xed0] sm:$0xff]
      %v823 = vld [vmem:[%s1 + $0xed8] sm:$0xff]
      %v824 = vld [vmem:[%s1 + $0xee0] sm:$0xff]
      %v825 = vld [vmem:[%s1 + $0xee8] sm:$0xff]
      %v826 = vld [vmem:[%s1 + $0xef0] sm:$0xff]
      %v827 = vld [vmem:[%s1 + $0xef8] sm:$0xff]
      %v828 = vld [vmem:[%s1 + $0xf00] sm:$0xff]
      %v829 = vld [vmem:[%s1 + $0xf08] sm:$0xff]
      %v830 = vld [vmem:[%s1 + $0xf10] sm:$0xff]
      %v831 = vld [vmem:[%s1 + $0xf18] sm:$0xff]
      %v832 = vld [vmem:[%s1 + $0xf20] sm:$0xff]
      %v833 = vld [vmem:[%s1 + $0xf28] sm:$0xff]
      %v834 = vld [vmem:[%s1 + $0xf30] sm:$0xff]
      %v835 = vld [vmem:[%s1 + $0xf38] sm:$0xff]
      %v836 = vld [vmem:[%s1 + $0xf40] sm:$0xff]
      %v837 = vld [vmem:[%s1 + $0xf48] sm:$0xff]
      %v838 = vld [vmem:[%s1 + $0xf50] sm:$0xff]
      %v839 = vld [vmem:[%s1 + $0xf58] sm:$0xff]
      %v840 = vld [vmem:[%s1 + $0xf60] sm:$0xff]
      %v841 = vld [vmem:[%s1 + $0xf68] sm:$0xff]
      %v842 = vld [vmem:[%s1 + $0xf70] sm:$0xff]
      %v843 = vld [vmem:[%s1 + $0xf78] sm:$0xff]
      %v844 = vld [vmem:[%s1 + $0xf80] sm:$0xff]
      %v845 = vld [vmem:[%s1 + $0xf88] sm:$0xff]
      %v846 = vld [vmem:[%s1 + $0xf90] sm:$0xff]
      %v847 = vld [vmem:[%s1 + $0xf98] sm:$0xff]
      %v848 = vld [vmem:[%s1 + $0xfa0] sm:$0xff]
      %v849 = vld [vmem:[%s1 + $0xfa8] sm:$0xff]
      %v850 = vld [vmem:[%s1 + $0xfb0] sm:$0xff]
      %v851 = vld [vmem:[%s1 + $0xfb8] sm:$0xff]
      %v852 = vld [vmem:[%s1 + $0xfc0] sm:$0xff]
      %v853 = vld [vmem:[%s1 + $0xfc8] sm:$0xff]
      %v854 = vld [vmem:[%s1 + $0xfd0] sm:$0xff]
      %v855 = vld [vmem:[%s1 + $0xfd8] sm:$0xff]
      %v856 = vld [vmem:[%s1 + $0xfe0] sm:$0xff]
      %v857 = vld [vmem:[%s1 + $0xfe8] sm:$0xff]
      %v858 = vld [vmem:[%s1 + $0xff0] sm:$0xff]
      %v859 = vld [vmem:[%s1 + $0xff8] sm:$0xff]
      %v860 = vld [vmem:[%s2] sm:$0xff]
      %v862 = vlaneseq
      %v863 = vshrl.u32 %v862, 7
      %v864 = vsub.s32 0, %v863
      %v865 = vrot.slane %v860, %v864
      %v866 = vlaneseq
      %v867 = vshrl.u32 %v866, 7
      %v868 = vsub.s32 1, %v867
      %v869 = vrot.slane %v860, %v868
      %v870 = vlaneseq
      %v871 = vshrl.u32 %v870, 7
      %v872 = vsub.s32 2, %v871
      %v873 = vrot.slane %v860, %v872
      %v874 = vlaneseq
      %v875 = vshrl.u32 %v874, 7
      %v876 = vsub.s32 3, %v875
      %v877 = vrot.slane %v860, %v876
      %v878 = vlaneseq
      %v879 = vshrl.u32 %v878, 7
      %v880 = vsub.s32 4, %v879
      %v881 = vrot.slane %v860, %v880
      %v882 = vlaneseq
      %v883 = vshrl.u32 %v882, 7
      %v884 = vsub.s32 5, %v883
      %v885 = vrot.slane %v860, %v884
      %v886 = vlaneseq
      %v887 = vshrl.u32 %v886, 7
      %v888 = vsub.s32 6, %v887
      %v889 = vrot.slane %v860, %v888
      %v890 = vlaneseq
      %v891 = vshrl.u32 %v890, 7
      %v892 = vsub.s32 7, %v891
      %v893 = vrot.slane %v860, %v892
      %902 = vmatprep.subr.mxu0 %v349
      %903 = vmatpush1.msra.mxu0 %v348
      %904 = vmatprep.subr.mxu0 %v357
      %905 = vmatpush1.msra.mxu0 %v356
      %906 = vmatprep.subr.mxu0 %v365
      %907 = vmatpush1.msra.mxu0 %v364
      %908 = vmatprep.subr.mxu0 %v373
      %909 = vmatpush1.msra.mxu0 %v372
      %910 = vmatprep.subr.mxu0 %v381
      %911 = vmatpush1.msra.mxu0 %v380
      %912 = vmatprep.subr.mxu0 %v389
      %913 = vmatpush1.msra.mxu0 %v388
      %914 = vmatprep.subr.mxu0 %v397
      %915 = vmatpush1.msra.mxu0 %v396
      %916 = vmatprep.subr.mxu0 %v405
      %917 = vmatpush1.msra.mxu0 %v404
      %918 = vmatprep.subr.mxu0 %v413
      %919 = vmatpush1.msra.mxu0 %v412
      %920 = vmatprep.subr.mxu0 %v421
      %921 = vmatpush1.msra.mxu0 %v420
      %922 = vmatprep.subr.mxu0 %v429
      %923 = vmatpush1.msra.mxu0 %v428
      %924 = vmatprep.subr.mxu0 %v437
      %925 = vmatpush1.msra.mxu0 %v436
      %926 = vmatprep.subr.mxu0 %v445
      %927 = vmatpush1.msra.mxu0 %v444
      %928 = vmatprep.subr.mxu0 %v453
      %929 = vmatpush1.msra.mxu0 %v452
      %930 = vmatprep.subr.mxu0 %v461
      %931 = vmatpush1.msra.mxu0 %v460
      %932 = vmatprep.subr.mxu0 %v469
      %933 = vmatpush1.msra.mxu0 %v468
      %934 = vmatprep.subr.mxu0 %v477
      %935 = vmatpush1.msra.mxu0 %v476
      %936 = vmatprep.subr.mxu0 %v485
      %937 = vmatpush1.msra.mxu0 %v484
      %938 = vmatprep.subr.mxu0 %v493
      %939 = vmatpush1.msra.mxu0 %v492
      %940 = vmatprep.subr.mxu0 %v501
      %941 = vmatpush1.msra.mxu0 %v500
      %942 = vmatprep.subr.mxu0 %v509
      %943 = vmatpush1.msra.mxu0 %v508
      %944 = vmatprep.subr.mxu0 %v517
      %945 = vmatpush1.msra.mxu0 %v516
      %946 = vmatprep.subr.mxu0 %v525
      %947 = vmatpush1.msra.mxu0 %v524
      %948 = vmatprep.subr.mxu0 %v533
      %949 = vmatpush1.msra.mxu0 %v532
      %950 = vmatprep.subr.mxu0 %v541
      %951 = vmatpush1.msra.mxu0 %v540
      %952 = vmatprep.subr.mxu0 %v549
      %953 = vmatpush1.msra.mxu0 %v548
      %954 = vmatprep.subr.mxu0 %v557
      %955 = vmatpush1.msra.mxu0 %v556
      %956 = vmatprep.subr.mxu0 %v565
      %957 = vmatpush1.msra.mxu0 %v564
      %958 = vmatprep.subr.mxu0 %v573
      %959 = vmatpush1.msra.mxu0 %v572
      %960 = vmatprep.subr.mxu0 %v581
      %961 = vmatpush1.msra.mxu0 %v580
      %962 = vmatprep.subr.mxu0 %v589
      %963 = vmatpush1.msra.mxu0 %v588
      %964 = vmatprep.subr.mxu0 %v597
      %965 = vmatpush1.msra.mxu0 %v596
      %966 = vmatprep.mubr.f32.mxu0 %v221
      %967 = vmatmul.mubr.f32.gmra.mrb[0].mxu0 %v220
      %v968 = vpop.f32.mrb[0].mxu0
      %v969 = vadd.f32 %v865, %v968
      %v970 = vpop.f32.mrb[0].mxu0
      %v971 = vadd.f32 %v869, %v970
      %972 = vmatprep.mubr.f32.mxu0 %v225
      %973 = vmatmul.mubr.f32.gmra.mrb[0].mxu0 %v224
      %v974 = vpop.f32.mrb[0].mxu0
      %v975 = vadd.f32 %v865, %v974
      %v976 = vpop.f32.mrb[0].mxu0
      %v977 = vadd.f32 %v869, %v976
      %978 = vmatprep.mubr.f32.mxu0 %v229
      %979 = vmatmul.mubr.f32.gmra.mrb[0].mxu0 %v228
      %v980 = vpop.f32.mrb[0].mxu0
      %v981 = vadd.f32 %v865, %v980
      %v982 = vpop.f32.mrb[0].mxu0
      %v983 = vadd.f32 %v869, %v982
      %984 = vmatprep.mubr.f32.mxu0 %v233
      %985 = vmatmul.mubr.f32.gmra.mrb[0].mxu0 %v232
      %v986 = vpop.f32.mrb[0].mxu0
      %v987 = vadd.f32 %v865, %v986
      %v988 = vpop.f32.mrb[0].mxu0
      %v989 = vadd.f32 %v869, %v988
      %990 = vmatprep.mubr.f32.mxu0 %v237
      %991 = vmatmul.mubr.f32.gmra.mrb[0].mxu0 %v236
      %v992 = vpop.f32.mrb[0].mxu0
      %v993 = vadd.f32 %v865, %v992
      %v994 = vpop.f32.mrb[0].mxu0
      %v995 = vadd.f32 %v869, %v994
      %996 = vmatprep.mubr.f32.mxu0 %v241
      %997 = vmatmul.mubr.f32.gmra.mrb[0].mxu0 %v240
      %v998 = vpop.f32.mrb[0].mxu0
      %v999 = vadd.f32 %v865, %v998
      %v1000 = vpop.f32.mrb[0].mxu0
      %v1001 = vadd.f32 %v869, %v1000
      %1002 = vmatprep.mubr.f32.mxu0 %v245
      %1003 = vmatmul.mubr.f32.gmra.mrb[0].mxu0 %v244
      %v1004 = vpop.f32.mrb[0].mxu0
      %v1005 = vadd.f32 %v865, %v1004
      %v1006 = vpop.f32.mrb[0].mxu0
      %v1007 = vadd.f32 %v869, %v1006
      %1008 = vmatprep.mubr.f32.mxu0 %v249
      %1009 = vmatmul.mubr.f32.gmra.mrb[0].mxu0 %v248
      %v1010 = vpop.f32.mrb[0].mxu0
      %v1011 = vadd.f32 %v865, %v1010
      %v1012 = vpop.f32.mrb[0].mxu0
      %v1013 = vadd.f32 %v869, %v1012
      %1014 = vmatprep.mubr.f32.mxu0 %v253
      %1015 = vmatmul.mubr.f32.gmra.mrb[0].mxu0 %v252
      %v1016 = vpop.f32.mrb[0].mxu0
      %v1017 = vadd.f32 %v865, %v1016
      %v1018 = vpop.f32.mrb[0].mxu0
      %v1019 = vadd.f32 %v869, %v1018
      %1020 = vmatprep.mubr.f32.mxu0 %v257
      %1021 = vmatmul.mubr.f32.gmra.mrb[0].mxu0 %v256
      %v1022 = vpop.f32.mrb[0].mxu0
      %v1023 = vadd.f32 %v865, %v1022
      %v1024 = vpop.f32.mrb[0].mxu0
      %v1025 = vadd.f32 %v869, %v1024
      %1026 = vmatprep.mubr.f32.mxu0 %v261
      %1027 = vmatmul.mubr.f32.gmra.mrb[0].mxu0 %v260
      %v1028 = vpop.f32.mrb[0].mxu0
      %v1029 = vadd.f32 %v865, %v1028
      %v1030 = vpop.f32.mrb[0].mxu0
      %v1031 = vadd.f32 %v869, %v1030
      %1032 = vmatprep.mubr.f32.mxu0 %v265
      %1033 = vmatmul.mubr.f32.gmra.mrb[0].mxu0 %v264
      %v1034 = vpop.f32.mrb[0].mxu0
      %v1035 = vadd.f32 %v865, %v1034
      %v1036 = vpop.f32.mrb[0].mxu0
      %v1037 = vadd.f32 %v869, %v1036
      %1038 = vmatprep.mubr.f32.mxu0 %v269
      %1039 = vmatmul.mubr.f32.gmra.mrb[0].mxu0 %v268
      %v1040 = vpop.f32.mrb[0].mxu0
      %v1041 = vadd.f32 %v865, %v1040
      %v1042 = vpop.f32.mrb[0].mxu0
      %v1043 = vadd.f32 %v869, %v1042
      %1044 = vmatprep.mubr.f32.mxu0 %v273
      %1045 = vmatmul.mubr.f32.gmra.mrb[0].mxu0 %v272
      %v1046 = vpop.f32.mrb[0].mxu0
      %v1047 = vadd.f32 %v865, %v1046
      %v1048 = vpop.f32.mrb[0].mxu0
      %v1049 = vadd.f32 %v869, %v1048
      %1050 = vmatprep.mubr.f32.mxu0 %v277
      %1051 = vmatmul.mubr.f32.gmra.mrb[0].mxu0 %v276
      %v1052 = vpop.f32.mrb[0].mxu0
      %v1053 = vadd.f32 %v865, %v1052
      %v1054 = vpop.f32.mrb[0].mxu0
      %v1055 = vadd.f32 %v869, %v1054
      %1056 = vmatprep.mubr.f32.mxu0 %v281
      %1057 = vmatmul.mubr.f32.gmra.mrb[0].mxu0 %v280
      %v1058 = vpop.f32.mrb[0].mxu0
      %v1059 = vadd.f32 %v865, %v1058
      %v1060 = vpop.f32.mrb[0].mxu0
      %v1061 = vadd.f32 %v869, %v1060
      %1062 = vmatprep.mubr.f32.mxu0 %v285
      %1063 = vmatmul.mubr.f32.gmra.mrb[0].mxu0 %v284
      %v1064 = vpop.f32.mrb[0].mxu0
      %v1065 = vadd.f32 %v865, %v1064
      %v1066 = vpop.f32.mrb[0].mxu0
      %v1067 = vadd.f32 %v869, %v1066
      %1068 = vmatprep.mubr.f32.mxu0 %v289
      %1069 = vmatmul.mubr.f32.gmra.mrb[0].mxu0 %v288
      %v1070 = vpop.f32.mrb[0].mxu0
      %v1071 = vadd.f32 %v865, %v1070
      %v1072 = vpop.f32.mrb[0].mxu0
      %v1073 = vadd.f32 %v869, %v1072
      %1074 = vmatprep.mubr.f32.mxu0 %v293
      %1075 = vmatmul.mubr.f32.gmra.mrb[0].mxu0 %v292
      %v1076 = vpop.f32.mrb[0].mxu0
      %v1077 = vadd.f32 %v865, %v1076
      %v1078 = vpop.f32.mrb[0].mxu0
      %v1079 = vadd.f32 %v869, %v1078
      %1080 = vmatprep.mubr.f32.mxu0 %v297
      %1081 = vmatmul.mubr.f32.gmra.mrb[0].mxu0 %v296
      %v1082 = vpop.f32.mrb[0].mxu0
      %v1083 = vadd.f32 %v865, %v1082
      %v1084 = vpop.f32.mrb[0].mxu0
      %v1085 = vadd.f32 %v869, %v1084
      %1086 = vmatprep.mubr.f32.mxu0 %v301
      %1087 = vmatmul.mubr.f32.gmra.mrb[0].mxu0 %v300
      %v1088 = vpop.f32.mrb[0].mxu0
      %v1089 = vadd.f32 %v865, %v1088
      %v1090 = vpop.f32.mrb[0].mxu0
      %v1091 = vadd.f32 %v869, %v1090
      %1092 = vmatprep.mubr.f32.mxu0 %v305
      %1093 = vmatmul.mubr.f32.gmra.mrb[0].mxu0 %v304
      %v1094 = vpop.f32.mrb[0].mxu0
      %v1095 = vadd.f32 %v865, %v1094
      %v1096 = vpop.f32.mrb[0].mxu0
      %v1097 = vadd.f32 %v869, %v1096
      %1098 = vmatprep.mubr.f32.mxu0 %v309
      %1099 = vmatmul.mubr.f32.gmra.mrb[0].mxu0 %v308
      %v1100 = vpop.f32.mrb[0].mxu0
      %v1101 = vadd.f32 %v865, %v1100
      %v1102 = vpop.f32.mrb[0].mxu0
      %v1103 = vadd.f32 %v869, %v1102
      %1104 = vmatprep.mubr.f32.mxu0 %v313
      %1105 = vmatmul.mubr.f32.gmra.mrb[0].mxu0 %v312
      %v1106 = vpop.f32.mrb[0].mxu0
      %v1107 = vadd.f32 %v865, %v1106
      %v1108 = vpop.f32.mrb[0].mxu0
      %v1109 = vadd.f32 %v869, %v1108
      %1110 = vmatprep.mubr.f32.mxu0 %v317
      %1111 = vmatmul.mubr.f32.gmra.mrb[0].mxu0 %v316
      %v1112 = vpop.f32.mrb[0].mxu0
      %v1113 = vadd.f32 %v865, %v1112
      %v1114 = vpop.f32.mrb[0].mxu0
      %v1115 = vadd.f32 %v869, %v1114
      %1116 = vmatprep.mubr.f32.mxu0 %v321
      %1117 = vmatmul.mubr.f32.gmra.mrb[0].mxu0 %v320
      %v1118 = vpop.f32.mrb[0].mxu0
      %v1119 = vadd.f32 %v865, %v1118
      %v1120 = vpop.f32.mrb[0].mxu0
      %v1121 = vadd.f32 %v869, %v1120
      %1122 = vmatprep.mubr.f32.mxu0 %v325
      %1123 = vmatmul.mubr.f32.gmra.mrb[0].mxu0 %v324
      %v1124 = vpop.f32.mrb[0].mxu0
      %v1125 = vadd.f32 %v865, %v1124
      %v1126 = vpop.f32.mrb[0].mxu0
      %v1127 = vadd.f32 %v869, %v1126
      %1128 = vmatprep.mubr.f32.mxu0 %v329
      %1129 = vmatmul.mubr.f32.gmra.mrb[0].mxu0 %v328
      %v1130 = vpop.f32.mrb[0].mxu0
      %v1131 = vadd.f32 %v865, %v1130
      %v1132 = vpop.f32.mrb[0].mxu0
      %v1133 = vadd.f32 %v869, %v1132
      %1134 = vmatprep.mubr.f32.mxu0 %v333
      %1135 = vmatmul.mubr.f32.gmra.mrb[0].mxu0 %v332
      %v1136 = vpop.f32.mrb[0].mxu0
      %v1137 = vadd.f32 %v865, %v1136
      %v1138 = vpop.f32.mrb[0].mxu0
      %v1139 = vadd.f32 %v869, %v1138
      %1140 = vmatprep.mubr.f32.mxu0 %v337
      %1141 = vmatmul.mubr.f32.gmra.mrb[0].mxu0 %v336
      %v1142 = vpop.f32.mrb[0].mxu0
      %v1143 = vadd.f32 %v865, %v1142
      %v1144 = vpop.f32.mrb[0].mxu0
      %v1145 = vadd.f32 %v869, %v1144
      %1146 = vmatprep.mubr.f32.mxu0 %v341
      %1147 = vmatmul.mubr.f32.gmra.mrb[0].mxu0 %v340
      %v1148 = vpop.f32.mrb[0].mxu0
      %v1149 = vadd.f32 %v865, %v1148
      %v1150 = vpop.f32.mrb[0].mxu0
      %v1151 = vadd.f32 %v869, %v1150
      %1152 = vmatprep.mubr.f32.mxu0 %v345
      %1153 = vmatmul.mubr.f32.gmra.mrb[0].mxu0 %v344
      %v1154 = vpop.f32.mrb[0].mxu0
      %v1155 = vadd.f32 %v865, %v1154
      %v1156 = vpop.f32.mrb[0].mxu0
      %v1157 = vadd.f32 %v869, %v1156
      %1158 = vdwg.mxu0
      %1159 = vmatprep.subr.mxu0 %v605
      %1160 = vmatpush1.msra.mxu0 %v604
      %1161 = vmatprep.subr.mxu0 %v613
      %1162 = vmatpush1.msra.mxu0 %v612
      %1163 = vmatprep.subr.mxu0 %v621
      %1164 = vmatpush1.msra.mxu0 %v620
      %1165 = vmatprep.subr.mxu0 %v629
      %1166 = vmatpush1.msra.mxu0 %v628
      %1167 = vmatprep.subr.mxu0 %v637
      %1168 = vmatpush1.msra.mxu0 %v636
      %1169 = vmatprep.subr.mxu0 %v645
      %1170 = vmatpush1.msra.mxu0 %v644
      %1171 = vmatprep.subr.mxu0 %v653
      %1172 = vmatpush1.msra.mxu0 %v652
      %1173 = vmatprep.subr.mxu0 %v661
      %1174 = vmatpush1.msra.mxu0 %v660
      %1175 = vmatprep.subr.mxu0 %v669
      %1176 = vmatpush1.msra.mxu0 %v668
      %1177 = vmatprep.subr.mxu0 %v677
      %1178 = vmatpush1.msra.mxu0 %v676
      %1179 = vmatprep.subr.mxu0 %v685
      %1180 = vmatpush1.msra.mxu0 %v684
      %1181 = vmatprep.subr.mxu0 %v693
      %1182 = vmatpush1.msra.mxu0 %v692
      %1183 = vmatprep.subr.mxu0 %v701
      %1184 = vmatpush1.msra.mxu0 %v700
      %1185 = vmatprep.subr.mxu0 %v709
      %1186 = vmatpush1.msra.mxu0 %v708
      %1187 = vmatprep.subr.mxu0 %v717
      %1188 = vmatpush1.msra.mxu0 %v716
      %1189 = vmatprep.subr.mxu0 %v725
      %1190 = vmatpush1.msra.mxu0 %v724
      %1191 = vmatprep.subr.mxu0 %v733
      %1192 = vmatpush1.msra.mxu0 %v732
      %1193 = vmatprep.subr.mxu0 %v741
      %1194 = vmatpush1.msra.mxu0 %v740
      %1195 = vmatprep.subr.mxu0 %v749
      %1196 = vmatpush1.msra.mxu0 %v748
      %1197 = vmatprep.subr.mxu0 %v757
      %1198 = vmatpush1.msra.mxu0 %v756
      %1199 = vmatprep.subr.mxu0 %v765
      %1200 = vmatpush1.msra.mxu0 %v764
      %1201 = vmatprep.subr.mxu0 %v773
      %1202 = vmatpush1.msra.mxu0 %v772
      %1203 = vmatprep.subr.mxu0 %v781
      %1204 = vmatpush1.msra.mxu0 %v780
      %1205 = vmatprep.subr.mxu0 %v789
      %1206 = vmatpush1.msra.mxu0 %v788
      %1207 = vmatprep.subr.mxu0 %v797
      %1208 = vmatpush1.msra.mxu0 %v796
      %1209 = vmatprep.subr.mxu0 %v805
      %1210 = vmatpush1.msra.mxu0 %v804
      %1211 = vmatprep.subr.mxu0 %v813
      %1212 = vmatpush1.msra.mxu0 %v812
      %1213 = vmatprep.subr.mxu0 %v821
      %1214 = vmatpush1.msra.mxu0 %v820
      %1215 = vmatprep.subr.mxu0 %v829
      %1216 = vmatpush1.msra.mxu0 %v828
      %1217 = vmatprep.subr.mxu0 %v837
      %1218 = vmatpush1.msra.mxu0 %v836
      %1219 = vmatprep.subr.mxu0 %v845
      %1220 = vmatpush1.msra.mxu0 %v844
      %1221 = vmatprep.subr.mxu0 %v853
      %1222 = vmatpush1.msra.mxu0 %v852
      %1223 = vmatprep.mubr.f32.mxu0 %v223
      %1224 = vmatmul.mubr.f32.gmra.mrb[0].mxu0 %v222
      %v1225 = vpop.f32.mrb[0].mxu0
      %v1226 = vadd.f32 %v969, %v1225
      %v1227 = vpop.f32.mrb[0].mxu0
      %v1228 = vadd.f32 %v971, %v1227
      %1229 = vmatprep.mubr.f32.mxu0 %v227
      %1230 = vmatmul.mubr.f32.gmra.mrb[0].mxu0 %v226
      %v1231 = vpop.f32.mrb[0].mxu0
      %v1232 = vadd.f32 %v975, %v1231
      %v1233 = vpop.f32.mrb[0].mxu0
      %v1234 = vadd.f32 %v977, %v1233
      %1235 = vmatprep.mubr.f32.mxu0 %v231
      %1236 = vmatmul.mubr.f32.gmra.mrb[0].mxu0 %v230
      %v1237 = vpop.f32.mrb[0].mxu0
      %v1238 = vadd.f32 %v981, %v1237
      %v1239 = vpop.f32.mrb[0].mxu0
      %v1240 = vadd.f32 %v983, %v1239
      %1241 = vmatprep.mubr.f32.mxu0 %v235
      %1242 = vmatmul.mubr.f32.gmra.mrb[0].mxu0 %v234
      %v1243 = vpop.f32.mrb[0].mxu0
      %v1244 = vadd.f32 %v987, %v1243
      %v1245 = vpop.f32.mrb[0].mxu0
      %v1246 = vadd.f32 %v989, %v1245
      %1247 = vmatprep.mubr.f32.mxu0 %v239
      %1248 = vmatmul.mubr.f32.gmra.mrb[0].mxu0 %v238
      %v1249 = vpop.f32.mrb[0].mxu0
      %v1250 = vadd.f32 %v993, %v1249
      %v1251 = vpop.f32.mrb[0].mxu0
      %v1252 = vadd.f32 %v995, %v1251
      %1253 = vmatprep.mubr.f32.mxu0 %v243
      %1254 = vmatmul.mubr.f32.gmra.mrb[0].mxu0 %v242
      %v1255 = vpop.f32.mrb[0].mxu0
      %v1256 = vadd.f32 %v999, %v1255
      %v1257 = vpop.f32.mrb[0].mxu0
      %v1258 = vadd.f32 %v1001, %v1257
      %1259 = vmatprep.mubr.f32.mxu0 %v247
      %1260 = vmatmul.mubr.f32.gmra.mrb[0].mxu0 %v246
      %v1261 = vpop.f32.mrb[0].mxu0
      %v1262 = vadd.f32 %v1005, %v1261
      %v1263 = vpop.f32.mrb[0].mxu0
      %v1264 = vadd.f32 %v1007, %v1263
      %1265 = vmatprep.mubr.f32.mxu0 %v251
      %1266 = vmatmul.mubr.f32.gmra.mrb[0].mxu0 %v250
      %v1267 = vpop.f32.mrb[0].mxu0
      %v1268 = vadd.f32 %v1011, %v1267
      %v1269 = vpop.f32.mrb[0].mxu0
      %v1270 = vadd.f32 %v1013, %v1269
      %1271 = vmatprep.mubr.f32.mxu0 %v255
      %1272 = vmatmul.mubr.f32.gmra.mrb[0].mxu0 %v254
      %v1273 = vpop.f32.mrb[0].mxu0
      %v1274 = vadd.f32 %v1017, %v1273
      %v1275 = vpop.f32.mrb[0].mxu0
      %v1276 = vadd.f32 %v1019, %v1275
      %1277 = vmatprep.mubr.f32.mxu0 %v259
      %1278 = vmatmul.mubr.f32.gmra.mrb[0].mxu0 %v258
      %v1279 = vpop.f32.mrb[0].mxu0
      %v1280 = vadd.f32 %v1023, %v1279
      %v1281 = vpop.f32.mrb[0].mxu0
      %v1282 = vadd.f32 %v1025, %v1281
      %1283 = vmatprep.mubr.f32.mxu0 %v263
      %1284 = vmatmul.mubr.f32.gmra.mrb[0].mxu0 %v262
      %v1285 = vpop.f32.mrb[0].mxu0
      %v1286 = vadd.f32 %v1029, %v1285
      %v1287 = vpop.f32.mrb[0].mxu0
      %v1288 = vadd.f32 %v1031, %v1287
      %1289 = vmatprep.mubr.f32.mxu0 %v267
      %1290 = vmatmul.mubr.f32.gmra.mrb[0].mxu0 %v266
      %v1291 = vpop.f32.mrb[0].mxu0
      %v1292 = vadd.f32 %v1035, %v1291
      %v1293 = vpop.f32.mrb[0].mxu0
      %v1294 = vadd.f32 %v1037, %v1293
      %1295 = vmatprep.mubr.f32.mxu0 %v271
      %1296 = vmatmul.mubr.f32.gmra.mrb[0].mxu0 %v270
      %v1297 = vpop.f32.mrb[0].mxu0
      %v1298 = vadd.f32 %v1041, %v1297
      %v1299 = vpop.f32.mrb[0].mxu0
      %v1300 = vadd.f32 %v1043, %v1299
      %1301 = vmatprep.mubr.f32.mxu0 %v275
      %1302 = vmatmul.mubr.f32.gmra.mrb[0].mxu0 %v274
      %v1303 = vpop.f32.mrb[0].mxu0
      %v1304 = vadd.f32 %v1047, %v1303
      %v1305 = vpop.f32.mrb[0].mxu0
      %v1306 = vadd.f32 %v1049, %v1305
      %1307 = vmatprep.mubr.f32.mxu0 %v279
      %1308 = vmatmul.mubr.f32.gmra.mrb[0].mxu0 %v278
      %v1309 = vpop.f32.mrb[0].mxu0
      %v1310 = vadd.f32 %v1053, %v1309
      %v1311 = vpop.f32.mrb[0].mxu0
      %v1312 = vadd.f32 %v1055, %v1311
      %1313 = vmatprep.mubr.f32.mxu0 %v283
      %1314 = vmatmul.mubr.f32.gmra.mrb[0].mxu0 %v282
      %v1315 = vpop.f32.mrb[0].mxu0
      %v1316 = vadd.f32 %v1059, %v1315
      %v1317 = vpop.f32.mrb[0].mxu0
      %v1318 = vadd.f32 %v1061, %v1317
      %1319 = vmatprep.mubr.f32.mxu0 %v287
      %1320 = vmatmul.mubr.f32.gmra.mrb[0].mxu0 %v286
      %v1321 = vpop.f32.mrb[0].mxu0
      %v1322 = vadd.f32 %v1065, %v1321
      %v1323 = vpop.f32.mrb[0].mxu0
      %v1324 = vadd.f32 %v1067, %v1323
      %1325 = vmatprep.mubr.f32.mxu0 %v291
      %1326 = vmatmul.mubr.f32.gmra.mrb[0].mxu0 %v290
      %v1327 = vpop.f32.mrb[0].mxu0
      %v1328 = vadd.f32 %v1071, %v1327
      %v1329 = vpop.f32.mrb[0].mxu0
      %v1330 = vadd.f32 %v1073, %v1329
      %1331 = vmatprep.mubr.f32.mxu0 %v295
      %1332 = vmatmul.mubr.f32.gmra.mrb[0].mxu0 %v294
      %v1333 = vpop.f32.mrb[0].mxu0
      %v1334 = vadd.f32 %v1077, %v1333
      %v1335 = vpop.f32.mrb[0].mxu0
      %v1336 = vadd.f32 %v1079, %v1335
      %1337 = vmatprep.mubr.f32.mxu0 %v299
      %1338 = vmatmul.mubr.f32.gmra.mrb[0].mxu0 %v298
      %v1339 = vpop.f32.mrb[0].mxu0
      %v1340 = vadd.f32 %v1083, %v1339
      %v1341 = vpop.f32.mrb[0].mxu0
      %v1342 = vadd.f32 %v1085, %v1341
      %1343 = vmatprep.mubr.f32.mxu0 %v303
      %1344 = vmatmul.mubr.f32.gmra.mrb[0].mxu0 %v302
      %v1345 = vpop.f32.mrb[0].mxu0
      %v1346 = vadd.f32 %v1089, %v1345
      %v1347 = vpop.f32.mrb[0].mxu0
      %v1348 = vadd.f32 %v1091, %v1347
      %1349 = vmatprep.mubr.f32.mxu0 %v307
      %1350 = vmatmul.mubr.f32.gmra.mrb[0].mxu0 %v306
      %v1351 = vpop.f32.mrb[0].mxu0
      %v1352 = vadd.f32 %v1095, %v1351
      %v1353 = vpop.f32.mrb[0].mxu0
      %v1354 = vadd.f32 %v1097, %v1353
      %1355 = vmatprep.mubr.f32.mxu0 %v311
      %1356 = vmatmul.mubr.f32.gmra.mrb[0].mxu0 %v310
      %v1357 = vpop.f32.mrb[0].mxu0
      %v1358 = vadd.f32 %v1101, %v1357
      %v1359 = vpop.f32.mrb[0].mxu0
      %v1360 = vadd.f32 %v1103, %v1359
      %1361 = vmatprep.mubr.f32.mxu0 %v315
      %1362 = vmatmul.mubr.f32.gmra.mrb[0].mxu0 %v314
      %v1363 = vpop.f32.mrb[0].mxu0
      %v1364 = vadd.f32 %v1107, %v1363
      %v1365 = vpop.f32.mrb[0].mxu0
      %v1366 = vadd.f32 %v1109, %v1365
      %1367 = vmatprep.mubr.f32.mxu0 %v319
      %1368 = vmatmul.mubr.f32.gmra.mrb[0].mxu0 %v318
      %v1369 = vpop.f32.mrb[0].mxu0
      %v1370 = vadd.f32 %v1113, %v1369
      %v1371 = vpop.f32.mrb[0].mxu0
      %v1372 = vadd.f32 %v1115, %v1371
      %1373 = vmatprep.mubr.f32.mxu0 %v323
      %1374 = vmatmul.mubr.f32.gmra.mrb[0].mxu0 %v322
      %v1375 = vpop.f32.mrb[0].mxu0
      %v1376 = vadd.f32 %v1119, %v1375
      %v1377 = vpop.f32.mrb[0].mxu0
      %v1378 = vadd.f32 %v1121, %v1377
      %1379 = vmatprep.mubr.f32.mxu0 %v327
      %1380 = vmatmul.mubr.f32.gmra.mrb[0].mxu0 %v326
      %v1381 = vpop.f32.mrb[0].mxu0
      %v1382 = vadd.f32 %v1125, %v1381
      %v1383 = vpop.f32.mrb[0].mxu0
      %v1384 = vadd.f32 %v1127, %v1383
      %1385 = vmatprep.mubr.f32.mxu0 %v331
      %1386 = vmatmul.mubr.f32.gmra.mrb[0].mxu0 %v330
      %v1387 = vpop.f32.mrb[0].mxu0
      %v1388 = vadd.f32 %v1131, %v1387
      %v1389 = vpop.f32.mrb[0].mxu0
      %v1390 = vadd.f32 %v1133, %v1389
      %1391 = vmatprep.mubr.f32.mxu0 %v335
      %1392 = vmatmul.mubr.f32.gmra.mrb[0].mxu0 %v334
      %v1393 = vpop.f32.mrb[0].mxu0
      %v1394 = vadd.f32 %v1137, %v1393
      %v1395 = vpop.f32.mrb[0].mxu0
      %v1396 = vadd.f32 %v1139, %v1395
      %1397 = vmatprep.mubr.f32.mxu0 %v339
      %1398 = vmatmul.mubr.f32.gmra.mrb[0].mxu0 %v338
      %v1399 = vpop.f32.mrb[0].mxu0
      %v1400 = vadd.f32 %v1143, %v1399
      %v1401 = vpop.f32.mrb[0].mxu0
      %v1402 = vadd.f32 %v1145, %v1401
      %1403 = vmatprep.mubr.f32.mxu0 %v343
      %1404 = vmatmul.mubr.f32.gmra.mrb[0].mxu0 %v342
      %v1405 = vpop.f32.mrb[0].mxu0
      %v1406 = vadd.f32 %v1149, %v1405
      %v1407 = vpop.f32.mrb[0].mxu0
      %v1408 = vadd.f32 %v1151, %v1407
      %1409 = vmatprep.mubr.f32.mxu0 %v347
      %1410 = vmatmul.mubr.f32.gmra.mrb[0].mxu0 %v346
      %v1411 = vpop.f32.mrb[0].mxu0
      %v1412 = vadd.f32 %v1155, %v1411
      %v1413 = vpop.f32.mrb[0].mxu0
      %v1414 = vadd.f32 %v1157, %v1413
      %1415 = vdwg.mxu0
      %1416 = vmatprep.subr.mxu0 %v351
      %1417 = vmatpush1.msra.mxu0 %v350
      %1418 = vmatprep.subr.mxu0 %v359
      %1419 = vmatpush1.msra.mxu0 %v358
      %1420 = vmatprep.subr.mxu0 %v367
      %1421 = vmatpush1.msra.mxu0 %v366
      %1422 = vmatprep.subr.mxu0 %v375
      %1423 = vmatpush1.msra.mxu0 %v374
      %1424 = vmatprep.subr.mxu0 %v383
      %1425 = vmatpush1.msra.mxu0 %v382
      %1426 = vmatprep.subr.mxu0 %v391
      %1427 = vmatpush1.msra.mxu0 %v390
      %1428 = vmatprep.subr.mxu0 %v399
      %1429 = vmatpush1.msra.mxu0 %v398
      %1430 = vmatprep.subr.mxu0 %v407
      %1431 = vmatpush1.msra.mxu0 %v406
      %1432 = vmatprep.subr.mxu0 %v415
      %1433 = vmatpush1.msra.mxu0 %v414
      %1434 = vmatprep.subr.mxu0 %v423
      %1435 = vmatpush1.msra.mxu0 %v422
      %1436 = vmatprep.subr.mxu0 %v431
      %1437 = vmatpush1.msra.mxu0 %v430
      %1438 = vmatprep.subr.mxu0 %v439
      %1439 = vmatpush1.msra.mxu0 %v438
      %1440 = vmatprep.subr.mxu0 %v447
      %1441 = vmatpush1.msra.mxu0 %v446
      %1442 = vmatprep.subr.mxu0 %v455
      %1443 = vmatpush1.msra.mxu0 %v454
      %1444 = vmatprep.subr.mxu0 %v463
      %1445 = vmatpush1.msra.mxu0 %v462
      %1446 = vmatprep.subr.mxu0 %v471
      %1447 = vmatpush1.msra.mxu0 %v470
      %1448 = vmatprep.subr.mxu0 %v479
      %1449 = vmatpush1.msra.mxu0 %v478
      %1450 = vmatprep.subr.mxu0 %v487
      %1451 = vmatpush1.msra.mxu0 %v486
      %1452 = vmatprep.subr.mxu0 %v495
      %1453 = vmatpush1.msra.mxu0 %v494
      %1454 = vmatprep.subr.mxu0 %v503
      %1455 = vmatpush1.msra.mxu0 %v502
      %1456 = vmatprep.subr.mxu0 %v511
      %1457 = vmatpush1.msra.mxu0 %v510
      %1458 = vmatprep.subr.mxu0 %v519
      %1459 = vmatpush1.msra.mxu0 %v518
      %1460 = vmatprep.subr.mxu0 %v527
      %1461 = vmatpush1.msra.mxu0 %v526
      %1462 = vmatprep.subr.mxu0 %v535
      %1463 = vmatpush1.msra.mxu0 %v534
      %1464 = vmatprep.subr.mxu0 %v543
      %1465 = vmatpush1.msra.mxu0 %v542
      %1466 = vmatprep.subr.mxu0 %v551
      %1467 = vmatpush1.msra.mxu0 %v550
      %1468 = vmatprep.subr.mxu0 %v559
      %1469 = vmatpush1.msra.mxu0 %v558
      %1470 = vmatprep.subr.mxu0 %v567
      %1471 = vmatpush1.msra.mxu0 %v566
      %1472 = vmatprep.subr.mxu0 %v575
      %1473 = vmatpush1.msra.mxu0 %v574
      %1474 = vmatprep.subr.mxu0 %v583
      %1475 = vmatpush1.msra.mxu0 %v582
      %1476 = vmatprep.subr.mxu0 %v591
      %1477 = vmatpush1.msra.mxu0 %v590
      %1478 = vmatprep.subr.mxu0 %v599
      %1479 = vmatpush1.msra.mxu0 %v598
      %1480 = vmatprep.mubr.f32.mxu0 %v221
      %1481 = vmatmul.mubr.f32.gmra.mrb[0].mxu0 %v220
      %v1482 = vpop.f32.mrb[0].mxu0
      %v1483 = vadd.f32 %v873, %v1482
      %v1484 = vpop.f32.mrb[0].mxu0
      %v1485 = vadd.f32 %v877, %v1484
      %1486 = vmatprep.mubr.f32.mxu0 %v225
      %1487 = vmatmul.mubr.f32.gmra.mrb[0].mxu0 %v224
      %v1488 = vpop.f32.mrb[0].mxu0
      %v1489 = vadd.f32 %v873, %v1488
      %v1490 = vpop.f32.mrb[0].mxu0
      %v1491 = vadd.f32 %v877, %v1490
      %1492 = vmatprep.mubr.f32.mxu0 %v229
      %1493 = vmatmul.mubr.f32.gmra.mrb[0].mxu0 %v228
      %v1494 = vpop.f32.mrb[0].mxu0
      %v1495 = vadd.f32 %v873, %v1494
      %v1496 = vpop.f32.mrb[0].mxu0
      %v1497 = vadd.f32 %v877, %v1496
      %1498 = vmatprep.mubr.f32.mxu0 %v233
      %1499 = vmatmul.mubr.f32.gmra.mrb[0].mxu0 %v232
      %v1500 = vpop.f32.mrb[0].mxu0
      %v1501 = vadd.f32 %v873, %v1500
      %v1502 = vpop.f32.mrb[0].mxu0
      %v1503 = vadd.f32 %v877, %v1502
      %1504 = vmatprep.mubr.f32.mxu0 %v237
      %1505 = vmatmul.mubr.f32.gmra.mrb[0].mxu0 %v236
      %v1506 = vpop.f32.mrb[0].mxu0
      %v1507 = vadd.f32 %v873, %v1506
      %v1508 = vpop.f32.mrb[0].mxu0
      %v1509 = vadd.f32 %v877, %v1508
      %1510 = vmatprep.mubr.f32.mxu0 %v241
      %1511 = vmatmul.mubr.f32.gmra.mrb[0].mxu0 %v240
      %v1512 = vpop.f32.mrb[0].mxu0
      %v1513 = vadd.f32 %v873, %v1512
      %v1514 = vpop.f32.mrb[0].mxu0
      %v1515 = vadd.f32 %v877, %v1514
      %1516 = vmatprep.mubr.f32.mxu0 %v245
      %1517 = vmatmul.mubr.f32.gmra.mrb[0].mxu0 %v244
      %v1518 = vpop.f32.mrb[0].mxu0
      %v1519 = vadd.f32 %v873, %v1518
      %v1520 = vpop.f32.mrb[0].mxu0
      %v1521 = vadd.f32 %v877, %v1520
      %1522 = vmatprep.mubr.f32.mxu0 %v249
      %1523 = vmatmul.mubr.f32.gmra.mrb[0].mxu0 %v248
      %v1524 = vpop.f32.mrb[0].mxu0
      %v1525 = vadd.f32 %v873, %v1524
      %v1526 = vpop.f32.mrb[0].mxu0
      %v1527 = vadd.f32 %v877, %v1526
      %1528 = vmatprep.mubr.f32.mxu0 %v253
      %1529 = vmatmul.mubr.f32.gmra.mrb[0].mxu0 %v252
      %v1530 = vpop.f32.mrb[0].mxu0
      %v1531 = vadd.f32 %v873, %v1530
      %v1532 = vpop.f32.mrb[0].mxu0
      %v1533 = vadd.f32 %v877, %v1532
      %1534 = vmatprep.mubr.f32.mxu0 %v257
      %1535 = vmatmul.mubr.f32.gmra.mrb[0].mxu0 %v256
      %v1536 = vpop.f32.mrb[0].mxu0
      %v1537 = vadd.f32 %v873, %v1536
      %v1538 = vpop.f32.mrb[0].mxu0
      %v1539 = vadd.f32 %v877, %v1538
      %1540 = vmatprep.mubr.f32.mxu0 %v261
      %1541 = vmatmul.mubr.f32.gmra.mrb[0].mxu0 %v260
      %v1542 = vpop.f32.mrb[0].mxu0
      %v1543 = vadd.f32 %v873, %v1542
      %v1544 = vpop.f32.mrb[0].mxu0
      %v1545 = vadd.f32 %v877, %v1544
      %1546 = vmatprep.mubr.f32.mxu0 %v265
      %1547 = vmatmul.mubr.f32.gmra.mrb[0].mxu0 %v264
      %v1548 = vpop.f32.mrb[0].mxu0
      %v1549 = vadd.f32 %v873, %v1548
      %v1550 = vpop.f32.mrb[0].mxu0
      %v1551 = vadd.f32 %v877, %v1550
      %1552 = vmatprep.mubr.f32.mxu0 %v269
      %1553 = vmatmul.mubr.f32.gmra.mrb[0].mxu0 %v268
      %v1554 = vpop.f32.mrb[0].mxu0
      %v1555 = vadd.f32 %v873, %v1554
      %v1556 = vpop.f32.mrb[0].mxu0
      %v1557 = vadd.f32 %v877, %v1556
      %1558 = vmatprep.mubr.f32.mxu0 %v273
      %1559 = vmatmul.mubr.f32.gmra.mrb[0].mxu0 %v272
      %v1560 = vpop.f32.mrb[0].mxu0
      %v1561 = vadd.f32 %v873, %v1560
      %v1562 = vpop.f32.mrb[0].mxu0
      %v1563 = vadd.f32 %v877, %v1562
      %1564 = vmatprep.mubr.f32.mxu0 %v277
      %1565 = vmatmul.mubr.f32.gmra.mrb[0].mxu0 %v276
      %v1566 = vpop.f32.mrb[0].mxu0
      %v1567 = vadd.f32 %v873, %v1566
      %v1568 = vpop.f32.mrb[0].mxu0
      %v1569 = vadd.f32 %v877, %v1568
      %1570 = vmatprep.mubr.f32.mxu0 %v281
      %1571 = vmatmul.mubr.f32.gmra.mrb[0].mxu0 %v280
      %v1572 = vpop.f32.mrb[0].mxu0
      %v1573 = vadd.f32 %v873, %v1572
      %v1574 = vpop.f32.mrb[0].mxu0
      %v1575 = vadd.f32 %v877, %v1574
      %1576 = vmatprep.mubr.f32.mxu0 %v285
      %1577 = vmatmul.mubr.f32.gmra.mrb[0].mxu0 %v284
      %v1578 = vpop.f32.mrb[0].mxu0
      %v1579 = vadd.f32 %v873, %v1578
      %v1580 = vpop.f32.mrb[0].mxu0
      %v1581 = vadd.f32 %v877, %v1580
      %1582 = vmatprep.mubr.f32.mxu0 %v289
      %1583 = vmatmul.mubr.f32.gmra.mrb[0].mxu0 %v288
      %v1584 = vpop.f32.mrb[0].mxu0
      %v1585 = vadd.f32 %v873, %v1584
      %v1586 = vpop.f32.mrb[0].mxu0
      %v1587 = vadd.f32 %v877, %v1586
      %1588 = vmatprep.mubr.f32.mxu0 %v293
      %1589 = vmatmul.mubr.f32.gmra.mrb[0].mxu0 %v292
      %v1590 = vpop.f32.mrb[0].mxu0
      %v1591 = vadd.f32 %v873, %v1590
      %v1592 = vpop.f32.mrb[0].mxu0
      %v1593 = vadd.f32 %v877, %v1592
      %1594 = vmatprep.mubr.f32.mxu0 %v297
      %1595 = vmatmul.mubr.f32.gmra.mrb[0].mxu0 %v296
      %v1596 = vpop.f32.mrb[0].mxu0
      %v1597 = vadd.f32 %v873, %v1596
      %v1598 = vpop.f32.mrb[0].mxu0
      %v1599 = vadd.f32 %v877, %v1598
      %1600 = vmatprep.mubr.f32.mxu0 %v301
      %1601 = vmatmul.mubr.f32.gmra.mrb[0].mxu0 %v300
      %v1602 = vpop.f32.mrb[0].mxu0
      %v1603 = vadd.f32 %v873, %v1602
      %v1604 = vpop.f32.mrb[0].mxu0
      %v1605 = vadd.f32 %v877, %v1604
      %1606 = vmatprep.mubr.f32.mxu0 %v305
      %1607 = vmatmul.mubr.f32.gmra.mrb[0].mxu0 %v304
      %v1608 = vpop.f32.mrb[0].mxu0
      %v1609 = vadd.f32 %v873, %v1608
      %v1610 = vpop.f32.mrb[0].mxu0
      %v1611 = vadd.f32 %v877, %v1610
      %1612 = vmatprep.mubr.f32.mxu0 %v309
      %1613 = vmatmul.mubr.f32.gmra.mrb[0].mxu0 %v308
      %v1614 = vpop.f32.mrb[0].mxu0
      %v1615 = vadd.f32 %v873, %v1614
      %v1616 = vpop.f32.mrb[0].mxu0
      %v1617 = vadd.f32 %v877, %v1616
      %1618 = vmatprep.mubr.f32.mxu0 %v313
      %1619 = vmatmul.mubr.f32.gmra.mrb[0].mxu0 %v312
      %v1620 = vpop.f32.mrb[0].mxu0
      %v1621 = vadd.f32 %v873, %v1620
      %v1622 = vpop.f32.mrb[0].mxu0
      %v1623 = vadd.f32 %v877, %v1622
      %1624 = vmatprep.mubr.f32.mxu0 %v317
      %1625 = vmatmul.mubr.f32.gmra.mrb[0].mxu0 %v316
      %v1626 = vpop.f32.mrb[0].mxu0
      %v1627 = vadd.f32 %v873, %v1626
      %v1628 = vpop.f32.mrb[0].mxu0
      %v1629 = vadd.f32 %v877, %v1628
      %1630 = vmatprep.mubr.f32.mxu0 %v321
      %1631 = vmatmul.mubr.f32.gmra.mrb[0].mxu0 %v320
      %v1632 = vpop.f32.mrb[0].mxu0
      %v1633 = vadd.f32 %v873, %v1632
      %v1634 = vpop.f32.mrb[0].mxu0
      %v1635 = vadd.f32 %v877, %v1634
      %1636 = vmatprep.mubr.f32.mxu0 %v325
      %1637 = vmatmul.mubr.f32.gmra.mrb[0].mxu0 %v324
      %v1638 = vpop.f32.mrb[0].mxu0
      %v1639 = vadd.f32 %v873, %v1638
      %v1640 = vpop.f32.mrb[0].mxu0
      %v1641 = vadd.f32 %v877, %v1640
      %1642 = vmatprep.mubr.f32.mxu0 %v329
      %1643 = vmatmul.mubr.f32.gmra.mrb[0].mxu0 %v328
      %v1644 = vpop.f32.mrb[0].mxu0
      %v1645 = vadd.f32 %v873, %v1644
      %v1646 = vpop.f32.mrb[0].mxu0
      %v1647 = vadd.f32 %v877, %v1646
      %1648 = vmatprep.mubr.f32.mxu0 %v333
      %1649 = vmatmul.mubr.f32.gmra.mrb[0].mxu0 %v332
      %v1650 = vpop.f32.mrb[0].mxu0
      %v1651 = vadd.f32 %v873, %v1650
      %v1652 = vpop.f32.mrb[0].mxu0
      %v1653 = vadd.f32 %v877, %v1652
      %1654 = vmatprep.mubr.f32.mxu0 %v337
      %1655 = vmatmul.mubr.f32.gmra.mrb[0].mxu0 %v336
      %v1656 = vpop.f32.mrb[0].mxu0
      %v1657 = vadd.f32 %v873, %v1656
      %v1658 = vpop.f32.mrb[0].mxu0
      %v1659 = vadd.f32 %v877, %v1658
      %1660 = vmatprep.mubr.f32.mxu0 %v341
      %1661 = vmatmul.mubr.f32.gmra.mrb[0].mxu0 %v340
      %v1662 = vpop.f32.mrb[0].mxu0
      %v1663 = vadd.f32 %v873, %v1662
      %v1664 = vpop.f32.mrb[0].mxu0
      %v1665 = vadd.f32 %v877, %v1664
      %1666 = vmatprep.mubr.f32.mxu0 %v345
      %1667 = vmatmul.mubr.f32.gmra.mrb[0].mxu0 %v344
      %v1668 = vpop.f32.mrb[0].mxu0
      %v1669 = vadd.f32 %v873, %v1668
      %v1670 = vpop.f32.mrb[0].mxu0
      %v1671 = vadd.f32 %v877, %v1670
      %1672 = vdwg.mxu0
      %1673 = vmatprep.subr.mxu0 %v607
      %1674 = vmatpush1.msra.mxu0 %v606
      %1675 = vmatprep.subr.mxu0 %v615
      %1676 = vmatpush1.msra.mxu0 %v614
      %1677 = vmatprep.subr.mxu0 %v623
      %1678 = vmatpush1.msra.mxu0 %v622
      %1679 = vmatprep.subr.mxu0 %v631
      %1680 = vmatpush1.msra.mxu0 %v630
      %1681 = vmatprep.subr.mxu0 %v639
      %1682 = vmatpush1.msra.mxu0 %v638
      %1683 = vmatprep.subr.mxu0 %v647
      %1684 = vmatpush1.msra.mxu0 %v646
      %1685 = vmatprep.subr.mxu0 %v655
      %1686 = vmatpush1.msra.mxu0 %v654
      %1687 = vmatprep.subr.mxu0 %v663
      %1688 = vmatpush1.msra.mxu0 %v662
      %1689 = vmatprep.subr.mxu0 %v671
      %1690 = vmatpush1.msra.mxu0 %v670
      %1691 = vmatprep.subr.mxu0 %v679
      %1692 = vmatpush1.msra.mxu0 %v678
      %1693 = vmatprep.subr.mxu0 %v687
      %1694 = vmatpush1.msra.mxu0 %v686
      %1695 = vmatprep.subr.mxu0 %v695
      %1696 = vmatpush1.msra.mxu0 %v694
      %1697 = vmatprep.subr.mxu0 %v703
      %1698 = vmatpush1.msra.mxu0 %v702
      %1699 = vmatprep.subr.mxu0 %v711
      %1700 = vmatpush1.msra.mxu0 %v710
      %1701 = vmatprep.subr.mxu0 %v719
      %1702 = vmatpush1.msra.mxu0 %v718
      %1703 = vmatprep.subr.mxu0 %v727
      %1704 = vmatpush1.msra.mxu0 %v726
      %1705 = vmatprep.subr.mxu0 %v735
      %1706 = vmatpush1.msra.mxu0 %v734
      %1707 = vmatprep.subr.mxu0 %v743
      %1708 = vmatpush1.msra.mxu0 %v742
      %1709 = vmatprep.subr.mxu0 %v751
      %1710 = vmatpush1.msra.mxu0 %v750
      %1711 = vmatprep.subr.mxu0 %v759
      %1712 = vmatpush1.msra.mxu0 %v758
      %1713 = vmatprep.subr.mxu0 %v767
      %1714 = vmatpush1.msra.mxu0 %v766
      %1715 = vmatprep.subr.mxu0 %v775
      %1716 = vmatpush1.msra.mxu0 %v774
      %1717 = vmatprep.subr.mxu0 %v783
      %1718 = vmatpush1.msra.mxu0 %v782
      %1719 = vmatprep.subr.mxu0 %v791
      %1720 = vmatpush1.msra.mxu0 %v790
      %1721 = vmatprep.subr.mxu0 %v799
      %1722 = vmatpush1.msra.mxu0 %v798
      %1723 = vmatprep.subr.mxu0 %v807
      %1724 = vmatpush1.msra.mxu0 %v806
      %1725 = vmatprep.subr.mxu0 %v815
      %1726 = vmatpush1.msra.mxu0 %v814
      %1727 = vmatprep.subr.mxu0 %v823
      %1728 = vmatpush1.msra.mxu0 %v822
      %1729 = vmatprep.subr.mxu0 %v831
      %1730 = vmatpush1.msra.mxu0 %v830
      %1731 = vmatprep.subr.mxu0 %v839
      %1732 = vmatpush1.msra.mxu0 %v838
      %1733 = vmatprep.subr.mxu0 %v847
      %1734 = vmatpush1.msra.mxu0 %v846
      %1735 = vmatprep.subr.mxu0 %v855
      %1736 = vmatpush1.msra.mxu0 %v854
      %1737 = vmatprep.mubr.f32.mxu0 %v223
      %1738 = vmatmul.mubr.f32.gmra.mrb[0].mxu0 %v222
      %v1739 = vpop.f32.mrb[0].mxu0
      %v1740 = vadd.f32 %v1483, %v1739
      %v1741 = vpop.f32.mrb[0].mxu0
      %v1742 = vadd.f32 %v1485, %v1741
      %1743 = vmatprep.mubr.f32.mxu0 %v227
      %1744 = vmatmul.mubr.f32.gmra.mrb[0].mxu0 %v226
      %v1745 = vpop.f32.mrb[0].mxu0
      %v1746 = vadd.f32 %v1489, %v1745
      %v1747 = vpop.f32.mrb[0].mxu0
      %v1748 = vadd.f32 %v1491, %v1747
      %1749 = vmatprep.mubr.f32.mxu0 %v231
      %1750 = vmatmul.mubr.f32.gmra.mrb[0].mxu0 %v230
      %v1751 = vpop.f32.mrb[0].mxu0
      %v1752 = vadd.f32 %v1495, %v1751
      %v1753 = vpop.f32.mrb[0].mxu0
      %v1754 = vadd.f32 %v1497, %v1753
      %1755 = vmatprep.mubr.f32.mxu0 %v235
      %1756 = vmatmul.mubr.f32.gmra.mrb[0].mxu0 %v234
      %v1757 = vpop.f32.mrb[0].mxu0
      %v1758 = vadd.f32 %v1501, %v1757
      %v1759 = vpop.f32.mrb[0].mxu0
      %v1760 = vadd.f32 %v1503, %v1759
      %1761 = vmatprep.mubr.f32.mxu0 %v239
      %1762 = vmatmul.mubr.f32.gmra.mrb[0].mxu0 %v238
      %v1763 = vpop.f32.mrb[0].mxu0
      %v1764 = vadd.f32 %v1507, %v1763
      %v1765 = vpop.f32.mrb[0].mxu0
      %v1766 = vadd.f32 %v1509, %v1765
      %1767 = vmatprep.mubr.f32.mxu0 %v243
      %1768 = vmatmul.mubr.f32.gmra.mrb[0].mxu0 %v242
      %v1769 = vpop.f32.mrb[0].mxu0
      %v1770 = vadd.f32 %v1513, %v1769
      %v1771 = vpop.f32.mrb[0].mxu0
      %v1772 = vadd.f32 %v1515, %v1771
      %1773 = vmatprep.mubr.f32.mxu0 %v247
      %1774 = vmatmul.mubr.f32.gmra.mrb[0].mxu0 %v246
      %v1775 = vpop.f32.mrb[0].mxu0
      %v1776 = vadd.f32 %v1519, %v1775
      %v1777 = vpop.f32.mrb[0].mxu0
      %v1778 = vadd.f32 %v1521, %v1777
      %1779 = vmatprep.mubr.f32.mxu0 %v251
      %1780 = vmatmul.mubr.f32.gmra.mrb[0].mxu0 %v250
      %v1781 = vpop.f32.mrb[0].mxu0
      %v1782 = vadd.f32 %v1525, %v1781
      %v1783 = vpop.f32.mrb[0].mxu0
      %v1784 = vadd.f32 %v1527, %v1783
      %1785 = vmatprep.mubr.f32.mxu0 %v255
      %1786 = vmatmul.mubr.f32.gmra.mrb[0].mxu0 %v254
      %v1787 = vpop.f32.mrb[0].mxu0
      %v1788 = vadd.f32 %v1531, %v1787
      %v1789 = vpop.f32.mrb[0].mxu0
      %v1790 = vadd.f32 %v1533, %v1789
      %1791 = vmatprep.mubr.f32.mxu0 %v259
      %1792 = vmatmul.mubr.f32.gmra.mrb[0].mxu0 %v258
      %v1793 = vpop.f32.mrb[0].mxu0
      %v1794 = vadd.f32 %v1537, %v1793
      %v1795 = vpop.f32.mrb[0].mxu0
      %v1796 = vadd.f32 %v1539, %v1795
      %1797 = vmatprep.mubr.f32.mxu0 %v263
      %1798 = vmatmul.mubr.f32.gmra.mrb[0].mxu0 %v262
      %v1799 = vpop.f32.mrb[0].mxu0
      %v1800 = vadd.f32 %v1543, %v1799
      %v1801 = vpop.f32.mrb[0].mxu0
      %v1802 = vadd.f32 %v1545, %v1801
      %1803 = vmatprep.mubr.f32.mxu0 %v267
      %1804 = vmatmul.mubr.f32.gmra.mrb[0].mxu0 %v266
      %v1805 = vpop.f32.mrb[0].mxu0
      %v1806 = vadd.f32 %v1549, %v1805
      %v1807 = vpop.f32.mrb[0].mxu0
      %v1808 = vadd.f32 %v1551, %v1807
      %1809 = vmatprep.mubr.f32.mxu0 %v271
      %1810 = vmatmul.mubr.f32.gmra.mrb[0].mxu0 %v270
      %v1811 = vpop.f32.mrb[0].mxu0
      %v1812 = vadd.f32 %v1555, %v1811
      %v1813 = vpop.f32.mrb[0].mxu0
      %v1814 = vadd.f32 %v1557, %v1813
      %1815 = vmatprep.mubr.f32.mxu0 %v275
      %1816 = vmatmul.mubr.f32.gmra.mrb[0].mxu0 %v274
      %v1817 = vpop.f32.mrb[0].mxu0
      %v1818 = vadd.f32 %v1561, %v1817
      %v1819 = vpop.f32.mrb[0].mxu0
      %v1820 = vadd.f32 %v1563, %v1819
      %1821 = vmatprep.mubr.f32.mxu0 %v279
      %1822 = vmatmul.mubr.f32.gmra.mrb[0].mxu0 %v278
      %v1823 = vpop.f32.mrb[0].mxu0
      %v1824 = vadd.f32 %v1567, %v1823
      %v1825 = vpop.f32.mrb[0].mxu0
      %v1826 = vadd.f32 %v1569, %v1825
      %1827 = vmatprep.mubr.f32.mxu0 %v283
      %1828 = vmatmul.mubr.f32.gmra.mrb[0].mxu0 %v282
      %v1829 = vpop.f32.mrb[0].mxu0
      %v1830 = vadd.f32 %v1573, %v1829
      %v1831 = vpop.f32.mrb[0].mxu0
      %v1832 = vadd.f32 %v1575, %v1831
      %1833 = vmatprep.mubr.f32.mxu0 %v287
      %1834 = vmatmul.mubr.f32.gmra.mrb[0].mxu0 %v286
      %v1835 = vpop.f32.mrb[0].mxu0
      %v1836 = vadd.f32 %v1579, %v1835
      %v1837 = vpop.f32.mrb[0].mxu0
      %v1838 = vadd.f32 %v1581, %v1837
      %1839 = vmatprep.mubr.f32.mxu0 %v291
      %1840 = vmatmul.mubr.f32.gmra.mrb[0].mxu0 %v290
      %v1841 = vpop.f32.mrb[0].mxu0
      %v1842 = vadd.f32 %v1585, %v1841
      %v1843 = vpop.f32.mrb[0].mxu0
      %v1844 = vadd.f32 %v1587, %v1843
      %1845 = vmatprep.mubr.f32.mxu0 %v295
      %1846 = vmatmul.mubr.f32.gmra.mrb[0].mxu0 %v294
      %v1847 = vpop.f32.mrb[0].mxu0
      %v1848 = vadd.f32 %v1591, %v1847
      %v1849 = vpop.f32.mrb[0].mxu0
      %v1850 = vadd.f32 %v1593, %v1849
      %1851 = vmatprep.mubr.f32.mxu0 %v299
      %1852 = vmatmul.mubr.f32.gmra.mrb[0].mxu0 %v298
      %v1853 = vpop.f32.mrb[0].mxu0
      %v1854 = vadd.f32 %v1597, %v1853
      %v1855 = vpop.f32.mrb[0].mxu0
      %v1856 = vadd.f32 %v1599, %v1855
      %1857 = vmatprep.mubr.f32.mxu0 %v303
      %1858 = vmatmul.mubr.f32.gmra.mrb[0].mxu0 %v302
      %v1859 = vpop.f32.mrb[0].mxu0
      %v1860 = vadd.f32 %v1603, %v1859
      %v1861 = vpop.f32.mrb[0].mxu0
      %v1862 = vadd.f32 %v1605, %v1861
      %1863 = vmatprep.mubr.f32.mxu0 %v307
      %1864 = vmatmul.mubr.f32.gmra.mrb[0].mxu0 %v306
      %v1865 = vpop.f32.mrb[0].mxu0
      %v1866 = vadd.f32 %v1609, %v1865
      %v1867 = vpop.f32.mrb[0].mxu0
      %v1868 = vadd.f32 %v1611, %v1867
      %1869 = vmatprep.mubr.f32.mxu0 %v311
      %1870 = vmatmul.mubr.f32.gmra.mrb[0].mxu0 %v310
      %v1871 = vpop.f32.mrb[0].mxu0
      %v1872 = vadd.f32 %v1615, %v1871
      %v1873 = vpop.f32.mrb[0].mxu0
      %v1874 = vadd.f32 %v1617, %v1873
      %1875 = vmatprep.mubr.f32.mxu0 %v315
      %1876 = vmatmul.mubr.f32.gmra.mrb[0].mxu0 %v314
      %v1877 = vpop.f32.mrb[0].mxu0
      %v1878 = vadd.f32 %v1621, %v1877
      %v1879 = vpop.f32.mrb[0].mxu0
      %v1880 = vadd.f32 %v1623, %v1879
      %1881 = vmatprep.mubr.f32.mxu0 %v319
      %1882 = vmatmul.mubr.f32.gmra.mrb[0].mxu0 %v318
      %v1883 = vpop.f32.mrb[0].mxu0
      %v1884 = vadd.f32 %v1627, %v1883
      %v1885 = vpop.f32.mrb[0].mxu0
      %v1886 = vadd.f32 %v1629, %v1885
      %1887 = vmatprep.mubr.f32.mxu0 %v323
      %1888 = vmatmul.mubr.f32.gmra.mrb[0].mxu0 %v322
      %v1889 = vpop.f32.mrb[0].mxu0
      %v1890 = vadd.f32 %v1633, %v1889
      %v1891 = vpop.f32.mrb[0].mxu0
      %v1892 = vadd.f32 %v1635, %v1891
      %1893 = vmatprep.mubr.f32.mxu0 %v327
      %1894 = vmatmul.mubr.f32.gmra.mrb[0].mxu0 %v326
      %v1895 = vpop.f32.mrb[0].mxu0
      %v1896 = vadd.f32 %v1639, %v1895
      %v1897 = vpop.f32.mrb[0].mxu0
      %v1898 = vadd.f32 %v1641, %v1897
      %1899 = vmatprep.mubr.f32.mxu0 %v331
      %1900 = vmatmul.mubr.f32.gmra.mrb[0].mxu0 %v330
      %v1901 = vpop.f32.mrb[0].mxu0
      %v1902 = vadd.f32 %v1645, %v1901
      %v1903 = vpop.f32.mrb[0].mxu0
      %v1904 = vadd.f32 %v1647, %v1903
      %1905 = vmatprep.mubr.f32.mxu0 %v335
      %1906 = vmatmul.mubr.f32.gmra.mrb[0].mxu0 %v334
      %v1907 = vpop.f32.mrb[0].mxu0
      %v1908 = vadd.f32 %v1651, %v1907
      %v1909 = vpop.f32.mrb[0].mxu0
      %v1910 = vadd.f32 %v1653, %v1909
      %1911 = vmatprep.mubr.f32.mxu0 %v339
      %1912 = vmatmul.mubr.f32.gmra.mrb[0].mxu0 %v338
      %v1913 = vpop.f32.mrb[0].mxu0
      %v1914 = vadd.f32 %v1657, %v1913
      %v1915 = vpop.f32.mrb[0].mxu0
      %v1916 = vadd.f32 %v1659, %v1915
      %1917 = vmatprep.mubr.f32.mxu0 %v343
      %1918 = vmatmul.mubr.f32.gmra.mrb[0].mxu0 %v342
      %v1919 = vpop.f32.mrb[0].mxu0
      %v1920 = vadd.f32 %v1663, %v1919
      %v1921 = vpop.f32.mrb[0].mxu0
      %v1922 = vadd.f32 %v1665, %v1921
      %1923 = vmatprep.mubr.f32.mxu0 %v347
      %1924 = vmatmul.mubr.f32.gmra.mrb[0].mxu0 %v346
      %v1925 = vpop.f32.mrb[0].mxu0
      %v1926 = vadd.f32 %v1669, %v1925
      %v1927 = vpop.f32.mrb[0].mxu0
      %v1928 = vadd.f32 %v1671, %v1927
      %1929 = vdwg.mxu0
      %1930 = vmatprep.subr.mxu0 %v353
      %1931 = vmatpush1.msra.mxu0 %v352
      %1932 = vmatprep.subr.mxu0 %v361
      %1933 = vmatpush1.msra.mxu0 %v360
      %1934 = vmatprep.subr.mxu0 %v369
      %1935 = vmatpush1.msra.mxu0 %v368
      %1936 = vmatprep.subr.mxu0 %v377
      %1937 = vmatpush1.msra.mxu0 %v376
      %1938 = vmatprep.subr.mxu0 %v385
      %1939 = vmatpush1.msra.mxu0 %v384
      %1940 = vmatprep.subr.mxu0 %v393
      %1941 = vmatpush1.msra.mxu0 %v392
      %1942 = vmatprep.subr.mxu0 %v401
      %1943 = vmatpush1.msra.mxu0 %v400
      %1944 = vmatprep.subr.mxu0 %v409
      %1945 = vmatpush1.msra.mxu0 %v408
      %1946 = vmatprep.subr.mxu0 %v417
      %1947 = vmatpush1.msra.mxu0 %v416
      %1948 = vmatprep.subr.mxu0 %v425
      %1949 = vmatpush1.msra.mxu0 %v424
      %1950 = vmatprep.subr.mxu0 %v433
      %1951 = vmatpush1.msra.mxu0 %v432
      %1952 = vmatprep.subr.mxu0 %v441
      %1953 = vmatpush1.msra.mxu0 %v440
      %1954 = vmatprep.subr.mxu0 %v449
      %1955 = vmatpush1.msra.mxu0 %v448
      %1956 = vmatprep.subr.mxu0 %v457
      %1957 = vmatpush1.msra.mxu0 %v456
      %1958 = vmatprep.subr.mxu0 %v465
      %1959 = vmatpush1.msra.mxu0 %v464
      %1960 = vmatprep.subr.mxu0 %v473
      %1961 = vmatpush1.msra.mxu0 %v472
      %1962 = vmatprep.subr.mxu0 %v481
      %1963 = vmatpush1.msra.mxu0 %v480
      %1964 = vmatprep.subr.mxu0 %v489
      %1965 = vmatpush1.msra.mxu0 %v488
      %1966 = vmatprep.subr.mxu0 %v497
      %1967 = vmatpush1.msra.mxu0 %v496
      %1968 = vmatprep.subr.mxu0 %v505
      %1969 = vmatpush1.msra.mxu0 %v504
      %1970 = vmatprep.subr.mxu0 %v513
      %1971 = vmatpush1.msra.mxu0 %v512
      %1972 = vmatprep.subr.mxu0 %v521
      %1973 = vmatpush1.msra.mxu0 %v520
      %1974 = vmatprep.subr.mxu0 %v529
      %1975 = vmatpush1.msra.mxu0 %v528
      %1976 = vmatprep.subr.mxu0 %v537
      %1977 = vmatpush1.msra.mxu0 %v536
      %1978 = vmatprep.subr.mxu0 %v545
      %1979 = vmatpush1.msra.mxu0 %v544
      %1980 = vmatprep.subr.mxu0 %v553
      %1981 = vmatpush1.msra.mxu0 %v552
      %1982 = vmatprep.subr.mxu0 %v561
      %1983 = vmatpush1.msra.mxu0 %v560
      %1984 = vmatprep.subr.mxu0 %v569
      %1985 = vmatpush1.msra.mxu0 %v568
      %1986 = vmatprep.subr.mxu0 %v577
      %1987 = vmatpush1.msra.mxu0 %v576
      %1988 = vmatprep.subr.mxu0 %v585
      %1989 = vmatpush1.msra.mxu0 %v584
      %1990 = vmatprep.subr.mxu0 %v593
      %1991 = vmatpush1.msra.mxu0 %v592
      %1992 = vmatprep.subr.mxu0 %v601
      %1993 = vmatpush1.msra.mxu0 %v600
      %1994 = vmatprep.mubr.f32.mxu0 %v221
      %1995 = vmatmul.mubr.f32.gmra.mrb[0].mxu0 %v220
      %v1996 = vpop.f32.mrb[0].mxu0
      %v1997 = vadd.f32 %v881, %v1996
      %v1998 = vpop.f32.mrb[0].mxu0
      %v1999 = vadd.f32 %v885, %v1998
      %2000 = vmatprep.mubr.f32.mxu0 %v225
      %2001 = vmatmul.mubr.f32.gmra.mrb[0].mxu0 %v224
      %v2002 = vpop.f32.mrb[0].mxu0
      %v2003 = vadd.f32 %v881, %v2002
      %v2004 = vpop.f32.mrb[0].mxu0
      %v2005 = vadd.f32 %v885, %v2004
      %2006 = vmatprep.mubr.f32.mxu0 %v229
      %2007 = vmatmul.mubr.f32.gmra.mrb[0].mxu0 %v228
      %v2008 = vpop.f32.mrb[0].mxu0
      %v2009 = vadd.f32 %v881, %v2008
      %v2010 = vpop.f32.mrb[0].mxu0
      %v2011 = vadd.f32 %v885, %v2010
      %2012 = vmatprep.mubr.f32.mxu0 %v233
      %2013 = vmatmul.mubr.f32.gmra.mrb[0].mxu0 %v232
      %v2014 = vpop.f32.mrb[0].mxu0
      %v2015 = vadd.f32 %v881, %v2014
      %v2016 = vpop.f32.mrb[0].mxu0
      %v2017 = vadd.f32 %v885, %v2016
      %2018 = vmatprep.mubr.f32.mxu0 %v237
      %2019 = vmatmul.mubr.f32.gmra.mrb[0].mxu0 %v236
      %v2020 = vpop.f32.mrb[0].mxu0
      %v2021 = vadd.f32 %v881, %v2020
      %v2022 = vpop.f32.mrb[0].mxu0
      %v2023 = vadd.f32 %v885, %v2022
      %2024 = vmatprep.mubr.f32.mxu0 %v241
      %2025 = vmatmul.mubr.f32.gmra.mrb[0].mxu0 %v240
      %v2026 = vpop.f32.mrb[0].mxu0
      %v2027 = vadd.f32 %v881, %v2026
      %v2028 = vpop.f32.mrb[0].mxu0
      %v2029 = vadd.f32 %v885, %v2028
      %2030 = vmatprep.mubr.f32.mxu0 %v245
      %2031 = vmatmul.mubr.f32.gmra.mrb[0].mxu0 %v244
      %v2032 = vpop.f32.mrb[0].mxu0
      %v2033 = vadd.f32 %v881, %v2032
      %v2034 = vpop.f32.mrb[0].mxu0
      %v2035 = vadd.f32 %v885, %v2034
      %2036 = vmatprep.mubr.f32.mxu0 %v249
      %2037 = vmatmul.mubr.f32.gmra.mrb[0].mxu0 %v248
      %v2038 = vpop.f32.mrb[0].mxu0
      %v2039 = vadd.f32 %v881, %v2038
      %v2040 = vpop.f32.mrb[0].mxu0
      %v2041 = vadd.f32 %v885, %v2040
      %2042 = vmatprep.mubr.f32.mxu0 %v253
      %2043 = vmatmul.mubr.f32.gmra.mrb[0].mxu0 %v252
      %v2044 = vpop.f32.mrb[0].mxu0
      %v2045 = vadd.f32 %v881, %v2044
      %v2046 = vpop.f32.mrb[0].mxu0
      %v2047 = vadd.f32 %v885, %v2046
      %2048 = vmatprep.mubr.f32.mxu0 %v257
      %2049 = vmatmul.mubr.f32.gmra.mrb[0].mxu0 %v256
      %v2050 = vpop.f32.mrb[0].mxu0
      %v2051 = vadd.f32 %v881, %v2050
      %v2052 = vpop.f32.mrb[0].mxu0
      %v2053 = vadd.f32 %v885, %v2052
      %2054 = vmatprep.mubr.f32.mxu0 %v261
      %2055 = vmatmul.mubr.f32.gmra.mrb[0].mxu0 %v260
      %v2056 = vpop.f32.mrb[0].mxu0
      %v2057 = vadd.f32 %v881, %v2056
      %v2058 = vpop.f32.mrb[0].mxu0
      %v2059 = vadd.f32 %v885, %v2058
      %2060 = vmatprep.mubr.f32.mxu0 %v265
      %2061 = vmatmul.mubr.f32.gmra.mrb[0].mxu0 %v264
      %v2062 = vpop.f32.mrb[0].mxu0
      %v2063 = vadd.f32 %v881, %v2062
      %v2064 = vpop.f32.mrb[0].mxu0
      %v2065 = vadd.f32 %v885, %v2064
      %2066 = vmatprep.mubr.f32.mxu0 %v269
      %2067 = vmatmul.mubr.f32.gmra.mrb[0].mxu0 %v268
      %v2068 = vpop.f32.mrb[0].mxu0
      %v2069 = vadd.f32 %v881, %v2068
      %v2070 = vpop.f32.mrb[0].mxu0
      %v2071 = vadd.f32 %v885, %v2070
      %2072 = vmatprep.mubr.f32.mxu0 %v273
      %2073 = vmatmul.mubr.f32.gmra.mrb[0].mxu0 %v272
      %v2074 = vpop.f32.mrb[0].mxu0
      %v2075 = vadd.f32 %v881, %v2074
      %v2076 = vpop.f32.mrb[0].mxu0
      %v2077 = vadd.f32 %v885, %v2076
      %2078 = vmatprep.mubr.f32.mxu0 %v277
      %2079 = vmatmul.mubr.f32.gmra.mrb[0].mxu0 %v276
      %v2080 = vpop.f32.mrb[0].mxu0
      %v2081 = vadd.f32 %v881, %v2080
      %v2082 = vpop.f32.mrb[0].mxu0
      %v2083 = vadd.f32 %v885, %v2082
      %2084 = vmatprep.mubr.f32.mxu0 %v281
      %2085 = vmatmul.mubr.f32.gmra.mrb[0].mxu0 %v280
      %v2086 = vpop.f32.mrb[0].mxu0
      %v2087 = vadd.f32 %v881, %v2086
      %v2088 = vpop.f32.mrb[0].mxu0
      %v2089 = vadd.f32 %v885, %v2088
      %2090 = vmatprep.mubr.f32.mxu0 %v285
      %2091 = vmatmul.mubr.f32.gmra.mrb[0].mxu0 %v284
      %v2092 = vpop.f32.mrb[0].mxu0
      %v2093 = vadd.f32 %v881, %v2092
      %v2094 = vpop.f32.mrb[0].mxu0
      %v2095 = vadd.f32 %v885, %v2094
      %2096 = vmatprep.mubr.f32.mxu0 %v289
      %2097 = vmatmul.mubr.f32.gmra.mrb[0].mxu0 %v288
      %v2098 = vpop.f32.mrb[0].mxu0
      %v2099 = vadd.f32 %v881, %v2098
      %v2100 = vpop.f32.mrb[0].mxu0
      %v2101 = vadd.f32 %v885, %v2100
      %2102 = vmatprep.mubr.f32.mxu0 %v293
      %2103 = vmatmul.mubr.f32.gmra.mrb[0].mxu0 %v292
      %v2104 = vpop.f32.mrb[0].mxu0
      %v2105 = vadd.f32 %v881, %v2104
      %v2106 = vpop.f32.mrb[0].mxu0
      %v2107 = vadd.f32 %v885, %v2106
      %2108 = vmatprep.mubr.f32.mxu0 %v297
      %2109 = vmatmul.mubr.f32.gmra.mrb[0].mxu0 %v296
      %v2110 = vpop.f32.mrb[0].mxu0
      %v2111 = vadd.f32 %v881, %v2110
      %v2112 = vpop.f32.mrb[0].mxu0
      %v2113 = vadd.f32 %v885, %v2112
      %2114 = vmatprep.mubr.f32.mxu0 %v301
      %2115 = vmatmul.mubr.f32.gmra.mrb[0].mxu0 %v300
      %v2116 = vpop.f32.mrb[0].mxu0
      %v2117 = vadd.f32 %v881, %v2116
      %v2118 = vpop.f32.mrb[0].mxu0
      %v2119 = vadd.f32 %v885, %v2118
      %2120 = vmatprep.mubr.f32.mxu0 %v305
      %2121 = vmatmul.mubr.f32.gmra.mrb[0].mxu0 %v304
      %v2122 = vpop.f32.mrb[0].mxu0
      %v2123 = vadd.f32 %v881, %v2122
      %v2124 = vpop.f32.mrb[0].mxu0
      %v2125 = vadd.f32 %v885, %v2124
      %2126 = vmatprep.mubr.f32.mxu0 %v309
      %2127 = vmatmul.mubr.f32.gmra.mrb[0].mxu0 %v308
      %v2128 = vpop.f32.mrb[0].mxu0
      %v2129 = vadd.f32 %v881, %v2128
      %v2130 = vpop.f32.mrb[0].mxu0
      %v2131 = vadd.f32 %v885, %v2130
      %2132 = vmatprep.mubr.f32.mxu0 %v313
      %2133 = vmatmul.mubr.f32.gmra.mrb[0].mxu0 %v312
      %v2134 = vpop.f32.mrb[0].mxu0
      %v2135 = vadd.f32 %v881, %v2134
      %v2136 = vpop.f32.mrb[0].mxu0
      %v2137 = vadd.f32 %v885, %v2136
      %2138 = vmatprep.mubr.f32.mxu0 %v317
      %2139 = vmatmul.mubr.f32.gmra.mrb[0].mxu0 %v316
      %v2140 = vpop.f32.mrb[0].mxu0
      %v2141 = vadd.f32 %v881, %v2140
      %v2142 = vpop.f32.mrb[0].mxu0
      %v2143 = vadd.f32 %v885, %v2142
      %2144 = vmatprep.mubr.f32.mxu0 %v321
      %2145 = vmatmul.mubr.f32.gmra.mrb[0].mxu0 %v320
      %v2146 = vpop.f32.mrb[0].mxu0
      %v2147 = vadd.f32 %v881, %v2146
      %v2148 = vpop.f32.mrb[0].mxu0
      %v2149 = vadd.f32 %v885, %v2148
      %2150 = vmatprep.mubr.f32.mxu0 %v325
      %2151 = vmatmul.mubr.f32.gmra.mrb[0].mxu0 %v324
      %v2152 = vpop.f32.mrb[0].mxu0
      %v2153 = vadd.f32 %v881, %v2152
      %v2154 = vpop.f32.mrb[0].mxu0
      %v2155 = vadd.f32 %v885, %v2154
      %2156 = vmatprep.mubr.f32.mxu0 %v329
      %2157 = vmatmul.mubr.f32.gmra.mrb[0].mxu0 %v328
      %v2158 = vpop.f32.mrb[0].mxu0
      %v2159 = vadd.f32 %v881, %v2158
      %v2160 = vpop.f32.mrb[0].mxu0
      %v2161 = vadd.f32 %v885, %v2160
      %2162 = vmatprep.mubr.f32.mxu0 %v333
      %2163 = vmatmul.mubr.f32.gmra.mrb[0].mxu0 %v332
      %v2164 = vpop.f32.mrb[0].mxu0
      %v2165 = vadd.f32 %v881, %v2164
      %v2166 = vpop.f32.mrb[0].mxu0
      %v2167 = vadd.f32 %v885, %v2166
      %2168 = vmatprep.mubr.f32.mxu0 %v337
      %2169 = vmatmul.mubr.f32.gmra.mrb[0].mxu0 %v336
      %v2170 = vpop.f32.mrb[0].mxu0
      %v2171 = vadd.f32 %v881, %v2170
      %v2172 = vpop.f32.mrb[0].mxu0
      %v2173 = vadd.f32 %v885, %v2172
      %2174 = vmatprep.mubr.f32.mxu0 %v341
      %2175 = vmatmul.mubr.f32.gmra.mrb[0].mxu0 %v340
      %v2176 = vpop.f32.mrb[0].mxu0
      %v2177 = vadd.f32 %v881, %v2176
      %v2178 = vpop.f32.mrb[0].mxu0
      %v2179 = vadd.f32 %v885, %v2178
      %2180 = vmatprep.mubr.f32.mxu0 %v345
      %2181 = vmatmul.mubr.f32.gmra.mrb[0].mxu0 %v344
      %v2182 = vpop.f32.mrb[0].mxu0
      %v2183 = vadd.f32 %v881, %v2182
      %v2184 = vpop.f32.mrb[0].mxu0
      %v2185 = vadd.f32 %v885, %v2184
      %2186 = vdwg.mxu0
      %2187 = vmatprep.subr.mxu0 %v609
      %2188 = vmatpush1.msra.mxu0 %v608
      %2189 = vmatprep.subr.mxu0 %v617
      %2190 = vmatpush1.msra.mxu0 %v616
      %2191 = vmatprep.subr.mxu0 %v625
      %2192 = vmatpush1.msra.mxu0 %v624
      %2193 = vmatprep.subr.mxu0 %v633
      %2194 = vmatpush1.msra.mxu0 %v632
      %2195 = vmatprep.subr.mxu0 %v641
      %2196 = vmatpush1.msra.mxu0 %v640
      %2197 = vmatprep.subr.mxu0 %v649
      %2198 = vmatpush1.msra.mxu0 %v648
      %2199 = vmatprep.subr.mxu0 %v657
      %2200 = vmatpush1.msra.mxu0 %v656
      %2201 = vmatprep.subr.mxu0 %v665
      %2202 = vmatpush1.msra.mxu0 %v664
      %2203 = vmatprep.subr.mxu0 %v673
      %2204 = vmatpush1.msra.mxu0 %v672
      %2205 = vmatprep.subr.mxu0 %v681
      %2206 = vmatpush1.msra.mxu0 %v680
      %2207 = vmatprep.subr.mxu0 %v689
      %2208 = vmatpush1.msra.mxu0 %v688
      %2209 = vmatprep.subr.mxu0 %v697
      %2210 = vmatpush1.msra.mxu0 %v696
      %2211 = vmatprep.subr.mxu0 %v705
      %2212 = vmatpush1.msra.mxu0 %v704
      %2213 = vmatprep.subr.mxu0 %v713
      %2214 = vmatpush1.msra.mxu0 %v712
      %2215 = vmatprep.subr.mxu0 %v721
      %2216 = vmatpush1.msra.mxu0 %v720
      %2217 = vmatprep.subr.mxu0 %v729
      %2218 = vmatpush1.msra.mxu0 %v728
      %2219 = vmatprep.subr.mxu0 %v737
      %2220 = vmatpush1.msra.mxu0 %v736
      %2221 = vmatprep.subr.mxu0 %v745
      %2222 = vmatpush1.msra.mxu0 %v744
      %2223 = vmatprep.subr.mxu0 %v753
      %2224 = vmatpush1.msra.mxu0 %v752
      %2225 = vmatprep.subr.mxu0 %v761
      %2226 = vmatpush1.msra.mxu0 %v760
      %2227 = vmatprep.subr.mxu0 %v769
      %2228 = vmatpush1.msra.mxu0 %v768
      %2229 = vmatprep.subr.mxu0 %v777
      %2230 = vmatpush1.msra.mxu0 %v776
      %2231 = vmatprep.subr.mxu0 %v785
      %2232 = vmatpush1.msra.mxu0 %v784
      %2233 = vmatprep.subr.mxu0 %v793
      %2234 = vmatpush1.msra.mxu0 %v792
      %2235 = vmatprep.subr.mxu0 %v801
      %2236 = vmatpush1.msra.mxu0 %v800
      %2237 = vmatprep.subr.mxu0 %v809
      %2238 = vmatpush1.msra.mxu0 %v808
      %2239 = vmatprep.subr.mxu0 %v817
      %2240 = vmatpush1.msra.mxu0 %v816
      %2241 = vmatprep.subr.mxu0 %v825
      %2242 = vmatpush1.msra.mxu0 %v824
      %2243 = vmatprep.subr.mxu0 %v833
      %2244 = vmatpush1.msra.mxu0 %v832
      %2245 = vmatprep.subr.mxu0 %v841
      %2246 = vmatpush1.msra.mxu0 %v840
      %2247 = vmatprep.subr.mxu0 %v849
      %2248 = vmatpush1.msra.mxu0 %v848
      %2249 = vmatprep.subr.mxu0 %v857
      %2250 = vmatpush1.msra.mxu0 %v856
      %2251 = vmatprep.mubr.f32.mxu0 %v223
      %2252 = vmatmul.mubr.f32.gmra.mrb[0].mxu0 %v222
      %v2253 = vpop.f32.mrb[0].mxu0
      %v2254 = vadd.f32 %v1997, %v2253
      %v2255 = vpop.f32.mrb[0].mxu0
      %v2256 = vadd.f32 %v1999, %v2255
      %2257 = vmatprep.mubr.f32.mxu0 %v227
      %2258 = vmatmul.mubr.f32.gmra.mrb[0].mxu0 %v226
      %v2259 = vpop.f32.mrb[0].mxu0
      %v2260 = vadd.f32 %v2003, %v2259
      %v2261 = vpop.f32.mrb[0].mxu0
      %v2262 = vadd.f32 %v2005, %v2261
      %2263 = vmatprep.mubr.f32.mxu0 %v231
      %2264 = vmatmul.mubr.f32.gmra.mrb[0].mxu0 %v230
      %v2265 = vpop.f32.mrb[0].mxu0
      %v2266 = vadd.f32 %v2009, %v2265
      %v2267 = vpop.f32.mrb[0].mxu0
      %v2268 = vadd.f32 %v2011, %v2267
      %2269 = vmatprep.mubr.f32.mxu0 %v235
      %2270 = vmatmul.mubr.f32.gmra.mrb[0].mxu0 %v234
      %v2271 = vpop.f32.mrb[0].mxu0
      %v2272 = vadd.f32 %v2015, %v2271
      %v2273 = vpop.f32.mrb[0].mxu0
      %v2274 = vadd.f32 %v2017, %v2273
      %2275 = vmatprep.mubr.f32.mxu0 %v239
      %2276 = vmatmul.mubr.f32.gmra.mrb[0].mxu0 %v238
      %v2277 = vpop.f32.mrb[0].mxu0
      %v2278 = vadd.f32 %v2021, %v2277
      %v2279 = vpop.f32.mrb[0].mxu0
      %v2280 = vadd.f32 %v2023, %v2279
      %2281 = vmatprep.mubr.f32.mxu0 %v243
      %2282 = vmatmul.mubr.f32.gmra.mrb[0].mxu0 %v242
      %v2283 = vpop.f32.mrb[0].mxu0
      %v2284 = vadd.f32 %v2027, %v2283
      %v2285 = vpop.f32.mrb[0].mxu0
      %v2286 = vadd.f32 %v2029, %v2285
      %2287 = vmatprep.mubr.f32.mxu0 %v247
      %2288 = vmatmul.mubr.f32.gmra.mrb[0].mxu0 %v246
      %v2289 = vpop.f32.mrb[0].mxu0
      %v2290 = vadd.f32 %v2033, %v2289
      %v2291 = vpop.f32.mrb[0].mxu0
      %v2292 = vadd.f32 %v2035, %v2291
      %2293 = vmatprep.mubr.f32.mxu0 %v251
      %2294 = vmatmul.mubr.f32.gmra.mrb[0].mxu0 %v250
      %v2295 = vpop.f32.mrb[0].mxu0
      %v2296 = vadd.f32 %v2039, %v2295
      %v2297 = vpop.f32.mrb[0].mxu0
      %v2298 = vadd.f32 %v2041, %v2297
      %2299 = vmatprep.mubr.f32.mxu0 %v255
      %2300 = vmatmul.mubr.f32.gmra.mrb[0].mxu0 %v254
      %v2301 = vpop.f32.mrb[0].mxu0
      %v2302 = vadd.f32 %v2045, %v2301
      %v2303 = vpop.f32.mrb[0].mxu0
      %v2304 = vadd.f32 %v2047, %v2303
      %2305 = vmatprep.mubr.f32.mxu0 %v259
      %2306 = vmatmul.mubr.f32.gmra.mrb[0].mxu0 %v258
      %v2307 = vpop.f32.mrb[0].mxu0
      %v2308 = vadd.f32 %v2051, %v2307
      %v2309 = vpop.f32.mrb[0].mxu0
      %v2310 = vadd.f32 %v2053, %v2309
      %2311 = vmatprep.mubr.f32.mxu0 %v263
      %2312 = vmatmul.mubr.f32.gmra.mrb[0].mxu0 %v262
      %v2313 = vpop.f32.mrb[0].mxu0
      %v2314 = vadd.f32 %v2057, %v2313
      %v2315 = vpop.f32.mrb[0].mxu0
      %v2316 = vadd.f32 %v2059, %v2315
      %2317 = vmatprep.mubr.f32.mxu0 %v267
      %2318 = vmatmul.mubr.f32.gmra.mrb[0].mxu0 %v266
      %v2319 = vpop.f32.mrb[0].mxu0
      %v2320 = vadd.f32 %v2063, %v2319
      %v2321 = vpop.f32.mrb[0].mxu0
      %v2322 = vadd.f32 %v2065, %v2321
      %2323 = vmatprep.mubr.f32.mxu0 %v271
      %2324 = vmatmul.mubr.f32.gmra.mrb[0].mxu0 %v270
      %v2325 = vpop.f32.mrb[0].mxu0
      %v2326 = vadd.f32 %v2069, %v2325
      %v2327 = vpop.f32.mrb[0].mxu0
      %v2328 = vadd.f32 %v2071, %v2327
      %2329 = vmatprep.mubr.f32.mxu0 %v275
      %2330 = vmatmul.mubr.f32.gmra.mrb[0].mxu0 %v274
      %v2331 = vpop.f32.mrb[0].mxu0
      %v2332 = vadd.f32 %v2075, %v2331
      %v2333 = vpop.f32.mrb[0].mxu0
      %v2334 = vadd.f32 %v2077, %v2333
      %2335 = vmatprep.mubr.f32.mxu0 %v279
      %2336 = vmatmul.mubr.f32.gmra.mrb[0].mxu0 %v278
      %v2337 = vpop.f32.mrb[0].mxu0
      %v2338 = vadd.f32 %v2081, %v2337
      %v2339 = vpop.f32.mrb[0].mxu0
      %v2340 = vadd.f32 %v2083, %v2339
      %2341 = vmatprep.mubr.f32.mxu0 %v283
      %2342 = vmatmul.mubr.f32.gmra.mrb[0].mxu0 %v282
      %v2343 = vpop.f32.mrb[0].mxu0
      %v2344 = vadd.f32 %v2087, %v2343
      %v2345 = vpop.f32.mrb[0].mxu0
      %v2346 = vadd.f32 %v2089, %v2345
      %2347 = vmatprep.mubr.f32.mxu0 %v287
      %2348 = vmatmul.mubr.f32.gmra.mrb[0].mxu0 %v286
      %v2349 = vpop.f32.mrb[0].mxu0
      %v2350 = vadd.f32 %v2093, %v2349
      %v2351 = vpop.f32.mrb[0].mxu0
      %v2352 = vadd.f32 %v2095, %v2351
      %2353 = vmatprep.mubr.f32.mxu0 %v291
      %2354 = vmatmul.mubr.f32.gmra.mrb[0].mxu0 %v290
      %v2355 = vpop.f32.mrb[0].mxu0
      %v2356 = vadd.f32 %v2099, %v2355
      %v2357 = vpop.f32.mrb[0].mxu0
      %v2358 = vadd.f32 %v2101, %v2357
      %2359 = vmatprep.mubr.f32.mxu0 %v295
      %2360 = vmatmul.mubr.f32.gmra.mrb[0].mxu0 %v294
      %v2361 = vpop.f32.mrb[0].mxu0
      %v2362 = vadd.f32 %v2105, %v2361
      %v2363 = vpop.f32.mrb[0].mxu0
      %v2364 = vadd.f32 %v2107, %v2363
      %2365 = vmatprep.mubr.f32.mxu0 %v299
      %2366 = vmatmul.mubr.f32.gmra.mrb[0].mxu0 %v298
      %v2367 = vpop.f32.mrb[0].mxu0
      %v2368 = vadd.f32 %v2111, %v2367
      %v2369 = vpop.f32.mrb[0].mxu0
      %v2370 = vadd.f32 %v2113, %v2369
      %2371 = vmatprep.mubr.f32.mxu0 %v303
      %2372 = vmatmul.mubr.f32.gmra.mrb[0].mxu0 %v302
      %v2373 = vpop.f32.mrb[0].mxu0
      %v2374 = vadd.f32 %v2117, %v2373
      %v2375 = vpop.f32.mrb[0].mxu0
      %v2376 = vadd.f32 %v2119, %v2375
      %2377 = vmatprep.mubr.f32.mxu0 %v307
      %2378 = vmatmul.mubr.f32.gmra.mrb[0].mxu0 %v306
      %v2379 = vpop.f32.mrb[0].mxu0
      %v2380 = vadd.f32 %v2123, %v2379
      %v2381 = vpop.f32.mrb[0].mxu0
      %v2382 = vadd.f32 %v2125, %v2381
      %2383 = vmatprep.mubr.f32.mxu0 %v311
      %2384 = vmatmul.mubr.f32.gmra.mrb[0].mxu0 %v310
      %v2385 = vpop.f32.mrb[0].mxu0
      %v2386 = vadd.f32 %v2129, %v2385
      %v2387 = vpop.f32.mrb[0].mxu0
      %v2388 = vadd.f32 %v2131, %v2387
      %2389 = vmatprep.mubr.f32.mxu0 %v315
      %2390 = vmatmul.mubr.f32.gmra.mrb[0].mxu0 %v314
      %v2391 = vpop.f32.mrb[0].mxu0
      %v2392 = vadd.f32 %v2135, %v2391
      %v2393 = vpop.f32.mrb[0].mxu0
      %v2394 = vadd.f32 %v2137, %v2393
      %2395 = vmatprep.mubr.f32.mxu0 %v319
      %2396 = vmatmul.mubr.f32.gmra.mrb[0].mxu0 %v318
      %v2397 = vpop.f32.mrb[0].mxu0
      %v2398 = vadd.f32 %v2141, %v2397
      %v2399 = vpop.f32.mrb[0].mxu0
      %v2400 = vadd.f32 %v2143, %v2399
      %2401 = vmatprep.mubr.f32.mxu0 %v323
      %2402 = vmatmul.mubr.f32.gmra.mrb[0].mxu0 %v322
      %v2403 = vpop.f32.mrb[0].mxu0
      %v2404 = vadd.f32 %v2147, %v2403
      %v2405 = vpop.f32.mrb[0].mxu0
      %v2406 = vadd.f32 %v2149, %v2405
      %2407 = vmatprep.mubr.f32.mxu0 %v327
      %2408 = vmatmul.mubr.f32.gmra.mrb[0].mxu0 %v326
      %v2409 = vpop.f32.mrb[0].mxu0
      %v2410 = vadd.f32 %v2153, %v2409
      %v2411 = vpop.f32.mrb[0].mxu0
      %v2412 = vadd.f32 %v2155, %v2411
      %2413 = vmatprep.mubr.f32.mxu0 %v331
      %2414 = vmatmul.mubr.f32.gmra.mrb[0].mxu0 %v330
      %v2415 = vpop.f32.mrb[0].mxu0
      %v2416 = vadd.f32 %v2159, %v2415
      %v2417 = vpop.f32.mrb[0].mxu0
      %v2418 = vadd.f32 %v2161, %v2417
      %2419 = vmatprep.mubr.f32.mxu0 %v335
      %2420 = vmatmul.mubr.f32.gmra.mrb[0].mxu0 %v334
      %v2421 = vpop.f32.mrb[0].mxu0
      %v2422 = vadd.f32 %v2165, %v2421
      %v2423 = vpop.f32.mrb[0].mxu0
      %v2424 = vadd.f32 %v2167, %v2423
      %2425 = vmatprep.mubr.f32.mxu0 %v339
      %2426 = vmatmul.mubr.f32.gmra.mrb[0].mxu0 %v338
      %v2427 = vpop.f32.mrb[0].mxu0
      %v2428 = vadd.f32 %v2171, %v2427
      %v2429 = vpop.f32.mrb[0].mxu0
      %v2430 = vadd.f32 %v2173, %v2429
      %2431 = vmatprep.mubr.f32.mxu0 %v343
      %2432 = vmatmul.mubr.f32.gmra.mrb[0].mxu0 %v342
      %v2433 = vpop.f32.mrb[0].mxu0
      %v2434 = vadd.f32 %v2177, %v2433
      %v2435 = vpop.f32.mrb[0].mxu0
      %v2436 = vadd.f32 %v2179, %v2435
      %2437 = vmatprep.mubr.f32.mxu0 %v347
      %2438 = vmatmul.mubr.f32.gmra.mrb[0].mxu0 %v346
      %v2439 = vpop.f32.mrb[0].mxu0
      %v2440 = vadd.f32 %v2183, %v2439
      %v2441 = vpop.f32.mrb[0].mxu0
      %v2442 = vadd.f32 %v2185, %v2441
      %2443 = vdwg.mxu0
      %2444 = vmatprep.subr.mxu0 %v355
      %2445 = vmatpush1.msra.mxu0 %v354
      %2446 = vmatprep.subr.mxu0 %v363
      %2447 = vmatpush1.msra.mxu0 %v362
      %2448 = vmatprep.subr.mxu0 %v371
      %2449 = vmatpush1.msra.mxu0 %v370
      %2450 = vmatprep.subr.mxu0 %v379
      %2451 = vmatpush1.msra.mxu0 %v378
      %2452 = vmatprep.subr.mxu0 %v387
      %2453 = vmatpush1.msra.mxu0 %v386
      %2454 = vmatprep.subr.mxu0 %v395
      %2455 = vmatpush1.msra.mxu0 %v394
      %2456 = vmatprep.subr.mxu0 %v403
      %2457 = vmatpush1.msra.mxu0 %v402
      %2458 = vmatprep.subr.mxu0 %v411
      %2459 = vmatpush1.msra.mxu0 %v410
      %2460 = vmatprep.subr.mxu0 %v419
      %2461 = vmatpush1.msra.mxu0 %v418
      %2462 = vmatprep.subr.mxu0 %v427
      %2463 = vmatpush1.msra.mxu0 %v426
      %2464 = vmatprep.subr.mxu0 %v435
      %2465 = vmatpush1.msra.mxu0 %v434
      %2466 = vmatprep.subr.mxu0 %v443
      %2467 = vmatpush1.msra.mxu0 %v442
      %2468 = vmatprep.subr.mxu0 %v451
      %2469 = vmatpush1.msra.mxu0 %v450
      %2470 = vmatprep.subr.mxu0 %v459
      %2471 = vmatpush1.msra.mxu0 %v458
      %2472 = vmatprep.subr.mxu0 %v467
      %2473 = vmatpush1.msra.mxu0 %v466
      %2474 = vmatprep.subr.mxu0 %v475
      %2475 = vmatpush1.msra.mxu0 %v474
      %2476 = vmatprep.subr.mxu0 %v483
      %2477 = vmatpush1.msra.mxu0 %v482
      %2478 = vmatprep.subr.mxu0 %v491
      %2479 = vmatpush1.msra.mxu0 %v490
      %2480 = vmatprep.subr.mxu0 %v499
      %2481 = vmatpush1.msra.mxu0 %v498
      %2482 = vmatprep.subr.mxu0 %v507
      %2483 = vmatpush1.msra.mxu0 %v506
      %2484 = vmatprep.subr.mxu0 %v515
      %2485 = vmatpush1.msra.mxu0 %v514
      %2486 = vmatprep.subr.mxu0 %v523
      %2487 = vmatpush1.msra.mxu0 %v522
      %2488 = vmatprep.subr.mxu0 %v531
      %2489 = vmatpush1.msra.mxu0 %v530
      %2490 = vmatprep.subr.mxu0 %v539
      %2491 = vmatpush1.msra.mxu0 %v538
      %2492 = vmatprep.subr.mxu0 %v547
      %2493 = vmatpush1.msra.mxu0 %v546
      %2494 = vmatprep.subr.mxu0 %v555
      %2495 = vmatpush1.msra.mxu0 %v554
      %2496 = vmatprep.subr.mxu0 %v563
      %2497 = vmatpush1.msra.mxu0 %v562
      %2498 = vmatprep.subr.mxu0 %v571
      %2499 = vmatpush1.msra.mxu0 %v570
      %2500 = vmatprep.subr.mxu0 %v579
      %2501 = vmatpush1.msra.mxu0 %v578
      %2502 = vmatprep.subr.mxu0 %v587
      %2503 = vmatpush1.msra.mxu0 %v586
      %2504 = vmatprep.subr.mxu0 %v595
      %2505 = vmatpush1.msra.mxu0 %v594
      %2506 = vmatprep.subr.mxu0 %v603
      %2507 = vmatpush1.msra.mxu0 %v602
      %2508 = vmatprep.mubr.f32.mxu0 %v221
      %2509 = vmatmul.mubr.f32.gmra.mrb[0].mxu0 %v220
      %v2510 = vpop.f32.mrb[0].mxu0
      %v2511 = vadd.f32 %v889, %v2510
      %v2512 = vpop.f32.mrb[0].mxu0
      %v2513 = vadd.f32 %v893, %v2512
      %2514 = vmatprep.mubr.f32.mxu0 %v225
      %2515 = vmatmul.mubr.f32.gmra.mrb[0].mxu0 %v224
      %v2516 = vpop.f32.mrb[0].mxu0
      %v2517 = vadd.f32 %v889, %v2516
      %v2518 = vpop.f32.mrb[0].mxu0
      %v2519 = vadd.f32 %v893, %v2518
      %2520 = vmatprep.mubr.f32.mxu0 %v229
      %2521 = vmatmul.mubr.f32.gmra.mrb[0].mxu0 %v228
      %v2522 = vpop.f32.mrb[0].mxu0
      %v2523 = vadd.f32 %v889, %v2522
      %v2524 = vpop.f32.mrb[0].mxu0
      %v2525 = vadd.f32 %v893, %v2524
      %2526 = vmatprep.mubr.f32.mxu0 %v233
      %2527 = vmatmul.mubr.f32.gmra.mrb[0].mxu0 %v232
      %v2528 = vpop.f32.mrb[0].mxu0
      %v2529 = vadd.f32 %v889, %v2528
      %v2530 = vpop.f32.mrb[0].mxu0
      %v2531 = vadd.f32 %v893, %v2530
      %2532 = vmatprep.mubr.f32.mxu0 %v237
      %2533 = vmatmul.mubr.f32.gmra.mrb[0].mxu0 %v236
      %v2534 = vpop.f32.mrb[0].mxu0
      %v2535 = vadd.f32 %v889, %v2534
      %v2536 = vpop.f32.mrb[0].mxu0
      %v2537 = vadd.f32 %v893, %v2536
      %2538 = vmatprep.mubr.f32.mxu0 %v241
      %2539 = vmatmul.mubr.f32.gmra.mrb[0].mxu0 %v240
      %v2540 = vpop.f32.mrb[0].mxu0
      %v2541 = vadd.f32 %v889, %v2540
      %v2542 = vpop.f32.mrb[0].mxu0
      %v2543 = vadd.f32 %v893, %v2542
      %2544 = vmatprep.mubr.f32.mxu0 %v245
      %2545 = vmatmul.mubr.f32.gmra.mrb[0].mxu0 %v244
      %v2546 = vpop.f32.mrb[0].mxu0
      %v2547 = vadd.f32 %v889, %v2546
      %v2548 = vpop.f32.mrb[0].mxu0
      %v2549 = vadd.f32 %v893, %v2548
      %2550 = vmatprep.mubr.f32.mxu0 %v249
      %2551 = vmatmul.mubr.f32.gmra.mrb[0].mxu0 %v248
      %v2552 = vpop.f32.mrb[0].mxu0
      %v2553 = vadd.f32 %v889, %v2552
      %v2554 = vpop.f32.mrb[0].mxu0
      %v2555 = vadd.f32 %v893, %v2554
      %2556 = vmatprep.mubr.f32.mxu0 %v253
      %2557 = vmatmul.mubr.f32.gmra.mrb[0].mxu0 %v252
      %v2558 = vpop.f32.mrb[0].mxu0
      %v2559 = vadd.f32 %v889, %v2558
      %v2560 = vpop.f32.mrb[0].mxu0
      %v2561 = vadd.f32 %v893, %v2560
      %2562 = vmatprep.mubr.f32.mxu0 %v257
      %2563 = vmatmul.mubr.f32.gmra.mrb[0].mxu0 %v256
      %v2564 = vpop.f32.mrb[0].mxu0
      %v2565 = vadd.f32 %v889, %v2564
      %v2566 = vpop.f32.mrb[0].mxu0
      %v2567 = vadd.f32 %v893, %v2566
      %2568 = vmatprep.mubr.f32.mxu0 %v261
      %2569 = vmatmul.mubr.f32.gmra.mrb[0].mxu0 %v260
      %v2570 = vpop.f32.mrb[0].mxu0
      %v2571 = vadd.f32 %v889, %v2570
      %v2572 = vpop.f32.mrb[0].mxu0
      %v2573 = vadd.f32 %v893, %v2572
      %2574 = vmatprep.mubr.f32.mxu0 %v265
      %2575 = vmatmul.mubr.f32.gmra.mrb[0].mxu0 %v264
      %v2576 = vpop.f32.mrb[0].mxu0
      %v2577 = vadd.f32 %v889, %v2576
      %v2578 = vpop.f32.mrb[0].mxu0
      %v2579 = vadd.f32 %v893, %v2578
      %2580 = vmatprep.mubr.f32.mxu0 %v269
      %2581 = vmatmul.mubr.f32.gmra.mrb[0].mxu0 %v268
      %v2582 = vpop.f32.mrb[0].mxu0
      %v2583 = vadd.f32 %v889, %v2582
      %v2584 = vpop.f32.mrb[0].mxu0
      %v2585 = vadd.f32 %v893, %v2584
      %2586 = vmatprep.mubr.f32.mxu0 %v273
      %2587 = vmatmul.mubr.f32.gmra.mrb[0].mxu0 %v272
      %v2588 = vpop.f32.mrb[0].mxu0
      %v2589 = vadd.f32 %v889, %v2588
      %v2590 = vpop.f32.mrb[0].mxu0
      %v2591 = vadd.f32 %v893, %v2590
      %2592 = vmatprep.mubr.f32.mxu0 %v277
      %2593 = vmatmul.mubr.f32.gmra.mrb[0].mxu0 %v276
      %v2594 = vpop.f32.mrb[0].mxu0
      %v2595 = vadd.f32 %v889, %v2594
      %v2596 = vpop.f32.mrb[0].mxu0
      %v2597 = vadd.f32 %v893, %v2596
      %2598 = vmatprep.mubr.f32.mxu0 %v281
      %2599 = vmatmul.mubr.f32.gmra.mrb[0].mxu0 %v280
      %v2600 = vpop.f32.mrb[0].mxu0
      %v2601 = vadd.f32 %v889, %v2600
      %v2602 = vpop.f32.mrb[0].mxu0
      %v2603 = vadd.f32 %v893, %v2602
      %2604 = vmatprep.mubr.f32.mxu0 %v285
      %2605 = vmatmul.mubr.f32.gmra.mrb[0].mxu0 %v284
      %v2606 = vpop.f32.mrb[0].mxu0
      %v2607 = vadd.f32 %v889, %v2606
      %v2608 = vpop.f32.mrb[0].mxu0
      %v2609 = vadd.f32 %v893, %v2608
      %2610 = vmatprep.mubr.f32.mxu0 %v289
      %2611 = vmatmul.mubr.f32.gmra.mrb[0].mxu0 %v288
      %v2612 = vpop.f32.mrb[0].mxu0
      %v2613 = vadd.f32 %v889, %v2612
      %v2614 = vpop.f32.mrb[0].mxu0
      %v2615 = vadd.f32 %v893, %v2614
      %2616 = vmatprep.mubr.f32.mxu0 %v293
      %2617 = vmatmul.mubr.f32.gmra.mrb[0].mxu0 %v292
      %v2618 = vpop.f32.mrb[0].mxu0
      %v2619 = vadd.f32 %v889, %v2618
      %v2620 = vpop.f32.mrb[0].mxu0
      %v2621 = vadd.f32 %v893, %v2620
      %2622 = vmatprep.mubr.f32.mxu0 %v297
      %2623 = vmatmul.mubr.f32.gmra.mrb[0].mxu0 %v296
      %v2624 = vpop.f32.mrb[0].mxu0
      %v2625 = vadd.f32 %v889, %v2624
      %v2626 = vpop.f32.mrb[0].mxu0
      %v2627 = vadd.f32 %v893, %v2626
      %2628 = vmatprep.mubr.f32.mxu0 %v301
      %2629 = vmatmul.mubr.f32.gmra.mrb[0].mxu0 %v300
      %v2630 = vpop.f32.mrb[0].mxu0
      %v2631 = vadd.f32 %v889, %v2630
      %v2632 = vpop.f32.mrb[0].mxu0
      %v2633 = vadd.f32 %v893, %v2632
      %2634 = vmatprep.mubr.f32.mxu0 %v305
      %2635 = vmatmul.mubr.f32.gmra.mrb[0].mxu0 %v304
      %v2636 = vpop.f32.mrb[0].mxu0
      %v2637 = vadd.f32 %v889, %v2636
      %v2638 = vpop.f32.mrb[0].mxu0
      %v2639 = vadd.f32 %v893, %v2638
      %2640 = vmatprep.mubr.f32.mxu0 %v309
      %2641 = vmatmul.mubr.f32.gmra.mrb[0].mxu0 %v308
      %v2642 = vpop.f32.mrb[0].mxu0
      %v2643 = vadd.f32 %v889, %v2642
      %v2644 = vpop.f32.mrb[0].mxu0
      %v2645 = vadd.f32 %v893, %v2644
      %2646 = vmatprep.mubr.f32.mxu0 %v313
      %2647 = vmatmul.mubr.f32.gmra.mrb[0].mxu0 %v312
      %v2648 = vpop.f32.mrb[0].mxu0
      %v2649 = vadd.f32 %v889, %v2648
      %v2650 = vpop.f32.mrb[0].mxu0
      %v2651 = vadd.f32 %v893, %v2650
      %2652 = vmatprep.mubr.f32.mxu0 %v317
      %2653 = vmatmul.mubr.f32.gmra.mrb[0].mxu0 %v316
      %v2654 = vpop.f32.mrb[0].mxu0
      %v2655 = vadd.f32 %v889, %v2654
      %v2656 = vpop.f32.mrb[0].mxu0
      %v2657 = vadd.f32 %v893, %v2656
      %2658 = vmatprep.mubr.f32.mxu0 %v321
      %2659 = vmatmul.mubr.f32.gmra.mrb[0].mxu0 %v320
      %v2660 = vpop.f32.mrb[0].mxu0
      %v2661 = vadd.f32 %v889, %v2660
      %v2662 = vpop.f32.mrb[0].mxu0
      %v2663 = vadd.f32 %v893, %v2662
      %2664 = vmatprep.mubr.f32.mxu0 %v325
      %2665 = vmatmul.mubr.f32.gmra.mrb[0].mxu0 %v324
      %v2666 = vpop.f32.mrb[0].mxu0
      %v2667 = vadd.f32 %v889, %v2666
      %v2668 = vpop.f32.mrb[0].mxu0
      %v2669 = vadd.f32 %v893, %v2668
      %2670 = vmatprep.mubr.f32.mxu0 %v329
      %2671 = vmatmul.mubr.f32.gmra.mrb[0].mxu0 %v328
      %v2672 = vpop.f32.mrb[0].mxu0
      %v2673 = vadd.f32 %v889, %v2672
      %v2674 = vpop.f32.mrb[0].mxu0
      %v2675 = vadd.f32 %v893, %v2674
      %2676 = vmatprep.mubr.f32.mxu0 %v333
      %2677 = vmatmul.mubr.f32.gmra.mrb[0].mxu0 %v332
      %v2678 = vpop.f32.mrb[0].mxu0
      %v2679 = vadd.f32 %v889, %v2678
      %v2680 = vpop.f32.mrb[0].mxu0
      %v2681 = vadd.f32 %v893, %v2680
      %2682 = vmatprep.mubr.f32.mxu0 %v337
      %2683 = vmatmul.mubr.f32.gmra.mrb[0].mxu0 %v336
      %v2684 = vpop.f32.mrb[0].mxu0
      %v2685 = vadd.f32 %v889, %v2684
      %v2686 = vpop.f32.mrb[0].mxu0
      %v2687 = vadd.f32 %v893, %v2686
      %2688 = vmatprep.mubr.f32.mxu0 %v341
      %2689 = vmatmul.mubr.f32.gmra.mrb[0].mxu0 %v340
      %v2690 = vpop.f32.mrb[0].mxu0
      %v2691 = vadd.f32 %v889, %v2690
      %v2692 = vpop.f32.mrb[0].mxu0
      %v2693 = vadd.f32 %v893, %v2692
      %2694 = vmatprep.mubr.f32.mxu0 %v345
      %2695 = vmatmul.mubr.f32.gmra.mrb[0].mxu0 %v344
      %v2696 = vpop.f32.mrb[0].mxu0
      %v2697 = vadd.f32 %v889, %v2696
      %v2698 = vpop.f32.mrb[0].mxu0
      %v2699 = vadd.f32 %v893, %v2698
      %2700 = vdwg.mxu0
      %2701 = vmatprep.subr.mxu0 %v611
      %2702 = vmatpush1.msra.mxu0 %v610
      %2703 = vmatprep.subr.mxu0 %v619
      %2704 = vmatpush1.msra.mxu0 %v618
      %2705 = vmatprep.subr.mxu0 %v627
      %2706 = vmatpush1.msra.mxu0 %v626
      %2707 = vmatprep.subr.mxu0 %v635
      %2708 = vmatpush1.msra.mxu0 %v634
      %2709 = vmatprep.subr.mxu0 %v643
      %2710 = vmatpush1.msra.mxu0 %v642
      %2711 = vmatprep.subr.mxu0 %v651
      %2712 = vmatpush1.msra.mxu0 %v650
      %2713 = vmatprep.subr.mxu0 %v659
      %2714 = vmatpush1.msra.mxu0 %v658
      %2715 = vmatprep.subr.mxu0 %v667
      %2716 = vmatpush1.msra.mxu0 %v666
      %2717 = vmatprep.subr.mxu0 %v675
      %2718 = vmatpush1.msra.mxu0 %v674
      %2719 = vmatprep.subr.mxu0 %v683
      %2720 = vmatpush1.msra.mxu0 %v682
      %2721 = vmatprep.subr.mxu0 %v691
      %2722 = vmatpush1.msra.mxu0 %v690
      %2723 = vmatprep.subr.mxu0 %v699
      %2724 = vmatpush1.msra.mxu0 %v698
      %2725 = vmatprep.subr.mxu0 %v707
      %2726 = vmatpush1.msra.mxu0 %v706
      %2727 = vmatprep.subr.mxu0 %v715
      %2728 = vmatpush1.msra.mxu0 %v714
      %2729 = vmatprep.subr.mxu0 %v723
      %2730 = vmatpush1.msra.mxu0 %v722
      %2731 = vmatprep.subr.mxu0 %v731
      %2732 = vmatpush1.msra.mxu0 %v730
      %2733 = vmatprep.subr.mxu0 %v739
      %2734 = vmatpush1.msra.mxu0 %v738
      %2735 = vmatprep.subr.mxu0 %v747
      %2736 = vmatpush1.msra.mxu0 %v746
      %2737 = vmatprep.subr.mxu0 %v755
      %2738 = vmatpush1.msra.mxu0 %v754
      %2739 = vmatprep.subr.mxu0 %v763
      %2740 = vmatpush1.msra.mxu0 %v762
      %2741 = vmatprep.subr.mxu0 %v771
      %2742 = vmatpush1.msra.mxu0 %v770
      %2743 = vmatprep.subr.mxu0 %v779
      %2744 = vmatpush1.msra.mxu0 %v778
      %2745 = vmatprep.subr.mxu0 %v787
      %2746 = vmatpush1.msra.mxu0 %v786
      %2747 = vmatprep.subr.mxu0 %v795
      %2748 = vmatpush1.msra.mxu0 %v794
      %2749 = vmatprep.subr.mxu0 %v803
      %2750 = vmatpush1.msra.mxu0 %v802
      %2751 = vmatprep.subr.mxu0 %v811
      %2752 = vmatpush1.msra.mxu0 %v810
      %2753 = vmatprep.subr.mxu0 %v819
      %2754 = vmatpush1.msra.mxu0 %v818
      %2755 = vmatprep.subr.mxu0 %v827
      %2756 = vmatpush1.msra.mxu0 %v826
      %2757 = vmatprep.subr.mxu0 %v835
      %2758 = vmatpush1.msra.mxu0 %v834
      %2759 = vmatprep.subr.mxu0 %v843
      %2760 = vmatpush1.msra.mxu0 %v842
      %2761 = vmatprep.subr.mxu0 %v851
      %2762 = vmatpush1.msra.mxu0 %v850
      %2763 = vmatprep.subr.mxu0 %v859
      %2764 = vmatpush1.msra.mxu0 %v858
      %2765 = vmatprep.mubr.f32.mxu0 %v223
      %2766 = vmatmul.mubr.f32.gmra.mrb[0].mxu0 %v222
      %v2767 = vpop.f32.mrb[0].mxu0
      %v2768 = vadd.f32 %v2511, %v2767
      %v2769 = vpop.f32.mrb[0].mxu0
      %v2770 = vadd.f32 %v2513, %v2769
      %2771 = vmatprep.mubr.f32.mxu0 %v227
      %2772 = vmatmul.mubr.f32.gmra.mrb[0].mxu0 %v226
      %v2773 = vpop.f32.mrb[0].mxu0
      %v2774 = vadd.f32 %v2517, %v2773
      %v2775 = vpop.f32.mrb[0].mxu0
      %v2776 = vadd.f32 %v2519, %v2775
      %2777 = vmatprep.mubr.f32.mxu0 %v231
      %2778 = vmatmul.mubr.f32.gmra.mrb[0].mxu0 %v230
      %v2779 = vpop.f32.mrb[0].mxu0
      %v2780 = vadd.f32 %v2523, %v2779
      %v2781 = vpop.f32.mrb[0].mxu0
      %v2782 = vadd.f32 %v2525, %v2781
      %2783 = vmatprep.mubr.f32.mxu0 %v235
      %2784 = vmatmul.mubr.f32.gmra.mrb[0].mxu0 %v234
      %v2785 = vpop.f32.mrb[0].mxu0
      %v2786 = vadd.f32 %v2529, %v2785
      %v2787 = vpop.f32.mrb[0].mxu0
      %v2788 = vadd.f32 %v2531, %v2787
      %2789 = vmatprep.mubr.f32.mxu0 %v239
      %2790 = vmatmul.mubr.f32.gmra.mrb[0].mxu0 %v238
      %v2791 = vpop.f32.mrb[0].mxu0
      %v2792 = vadd.f32 %v2535, %v2791
      %v2793 = vpop.f32.mrb[0].mxu0
      %v2794 = vadd.f32 %v2537, %v2793
      %2795 = vmatprep.mubr.f32.mxu0 %v243
      %2796 = vmatmul.mubr.f32.gmra.mrb[0].mxu0 %v242
      %v2797 = vpop.f32.mrb[0].mxu0
      %v2798 = vadd.f32 %v2541, %v2797
      %v2799 = vpop.f32.mrb[0].mxu0
      %v2800 = vadd.f32 %v2543, %v2799
      %2801 = vmatprep.mubr.f32.mxu0 %v247
      %2802 = vmatmul.mubr.f32.gmra.mrb[0].mxu0 %v246
      %v2803 = vpop.f32.mrb[0].mxu0
      %v2804 = vadd.f32 %v2547, %v2803
      %v2805 = vpop.f32.mrb[0].mxu0
      %v2806 = vadd.f32 %v2549, %v2805
      %2807 = vmatprep.mubr.f32.mxu0 %v251
      %2808 = vmatmul.mubr.f32.gmra.mrb[0].mxu0 %v250
      %v2809 = vpop.f32.mrb[0].mxu0
      %v2810 = vadd.f32 %v2553, %v2809
      %v2811 = vpop.f32.mrb[0].mxu0
      %v2812 = vadd.f32 %v2555, %v2811
      %2813 = vmatprep.mubr.f32.mxu0 %v255
      %2814 = vmatmul.mubr.f32.gmra.mrb[0].mxu0 %v254
      %v2815 = vpop.f32.mrb[0].mxu0
      %v2816 = vadd.f32 %v2559, %v2815
      %v2817 = vpop.f32.mrb[0].mxu0
      %v2818 = vadd.f32 %v2561, %v2817
      %2819 = vmatprep.mubr.f32.mxu0 %v259
      %2820 = vmatmul.mubr.f32.gmra.mrb[0].mxu0 %v258
      %v2821 = vpop.f32.mrb[0].mxu0
      %v2822 = vadd.f32 %v2565, %v2821
      %v2823 = vpop.f32.mrb[0].mxu0
      %v2824 = vadd.f32 %v2567, %v2823
      %2825 = vmatprep.mubr.f32.mxu0 %v263
      %2826 = vmatmul.mubr.f32.gmra.mrb[0].mxu0 %v262
      %v2827 = vpop.f32.mrb[0].mxu0
      %v2828 = vadd.f32 %v2571, %v2827
      %v2829 = vpop.f32.mrb[0].mxu0
      %v2830 = vadd.f32 %v2573, %v2829
      %2831 = vmatprep.mubr.f32.mxu0 %v267
      %2832 = vmatmul.mubr.f32.gmra.mrb[0].mxu0 %v266
      %v2833 = vpop.f32.mrb[0].mxu0
      %v2834 = vadd.f32 %v2577, %v2833
      %v2835 = vpop.f32.mrb[0].mxu0
      %v2836 = vadd.f32 %v2579, %v2835
      %2837 = vmatprep.mubr.f32.mxu0 %v271
      %2838 = vmatmul.mubr.f32.gmra.mrb[0].mxu0 %v270
      %v2839 = vpop.f32.mrb[0].mxu0
      %v2840 = vadd.f32 %v2583, %v2839
      %v2841 = vpop.f32.mrb[0].mxu0
      %v2842 = vadd.f32 %v2585, %v2841
      %2843 = vmatprep.mubr.f32.mxu0 %v275
      %2844 = vmatmul.mubr.f32.gmra.mrb[0].mxu0 %v274
      %v2845 = vpop.f32.mrb[0].mxu0
      %v2846 = vadd.f32 %v2589, %v2845
      %v2847 = vpop.f32.mrb[0].mxu0
      %v2848 = vadd.f32 %v2591, %v2847
      %2849 = vmatprep.mubr.f32.mxu0 %v279
      %2850 = vmatmul.mubr.f32.gmra.mrb[0].mxu0 %v278
      %v2851 = vpop.f32.mrb[0].mxu0
      %v2852 = vadd.f32 %v2595, %v2851
      %v2853 = vpop.f32.mrb[0].mxu0
      %v2854 = vadd.f32 %v2597, %v2853
      %2855 = vmatprep.mubr.f32.mxu0 %v283
      %2856 = vmatmul.mubr.f32.gmra.mrb[0].mxu0 %v282
      %v2857 = vpop.f32.mrb[0].mxu0
      %v2858 = vadd.f32 %v2601, %v2857
      %v2859 = vpop.f32.mrb[0].mxu0
      %v2860 = vadd.f32 %v2603, %v2859
      %2861 = vmatprep.mubr.f32.mxu0 %v287
      %2862 = vmatmul.mubr.f32.gmra.mrb[0].mxu0 %v286
      %v2863 = vpop.f32.mrb[0].mxu0
      %v2864 = vadd.f32 %v2607, %v2863
      %v2865 = vpop.f32.mrb[0].mxu0
      %v2866 = vadd.f32 %v2609, %v2865
      %2867 = vmatprep.mubr.f32.mxu0 %v291
      %2868 = vmatmul.mubr.f32.gmra.mrb[0].mxu0 %v290
      %v2869 = vpop.f32.mrb[0].mxu0
      %v2870 = vadd.f32 %v2613, %v2869
      %v2871 = vpop.f32.mrb[0].mxu0
      %v2872 = vadd.f32 %v2615, %v2871
      %2873 = vmatprep.mubr.f32.mxu0 %v295
      %2874 = vmatmul.mubr.f32.gmra.mrb[0].mxu0 %v294
      %v2875 = vpop.f32.mrb[0].mxu0
      %v2876 = vadd.f32 %v2619, %v2875
      %v2877 = vpop.f32.mrb[0].mxu0
      %v2878 = vadd.f32 %v2621, %v2877
      %2879 = vmatprep.mubr.f32.mxu0 %v299
      %2880 = vmatmul.mubr.f32.gmra.mrb[0].mxu0 %v298
      %v2881 = vpop.f32.mrb[0].mxu0
      %v2882 = vadd.f32 %v2625, %v2881
      %v2883 = vpop.f32.mrb[0].mxu0
      %v2884 = vadd.f32 %v2627, %v2883
      %2885 = vmatprep.mubr.f32.mxu0 %v303
      %2886 = vmatmul.mubr.f32.gmra.mrb[0].mxu0 %v302
      %v2887 = vpop.f32.mrb[0].mxu0
      %v2888 = vadd.f32 %v2631, %v2887
      %v2889 = vpop.f32.mrb[0].mxu0
      %v2890 = vadd.f32 %v2633, %v2889
      %2891 = vmatprep.mubr.f32.mxu0 %v307
      %2892 = vmatmul.mubr.f32.gmra.mrb[0].mxu0 %v306
      %v2893 = vpop.f32.mrb[0].mxu0
      %v2894 = vadd.f32 %v2637, %v2893
      %v2895 = vpop.f32.mrb[0].mxu0
      %v2896 = vadd.f32 %v2639, %v2895
      %2897 = vmatprep.mubr.f32.mxu0 %v311
      %2898 = vmatmul.mubr.f32.gmra.mrb[0].mxu0 %v310
      %v2899 = vpop.f32.mrb[0].mxu0
      %v2900 = vadd.f32 %v2643, %v2899
      %v2901 = vpop.f32.mrb[0].mxu0
      %v2902 = vadd.f32 %v2645, %v2901
      %2903 = vmatprep.mubr.f32.mxu0 %v315
      %2904 = vmatmul.mubr.f32.gmra.mrb[0].mxu0 %v314
      %v2905 = vpop.f32.mrb[0].mxu0
      %v2906 = vadd.f32 %v2649, %v2905
      %v2907 = vpop.f32.mrb[0].mxu0
      %v2908 = vadd.f32 %v2651, %v2907
      %2909 = vmatprep.mubr.f32.mxu0 %v319
      %2910 = vmatmul.mubr.f32.gmra.mrb[0].mxu0 %v318
      %v2911 = vpop.f32.mrb[0].mxu0
      %v2912 = vadd.f32 %v2655, %v2911
      %v2913 = vpop.f32.mrb[0].mxu0
      %v2914 = vadd.f32 %v2657, %v2913
      %2915 = vmatprep.mubr.f32.mxu0 %v323
      %2916 = vmatmul.mubr.f32.gmra.mrb[0].mxu0 %v322
      %v2917 = vpop.f32.mrb[0].mxu0
      %v2918 = vadd.f32 %v2661, %v2917
      %v2919 = vpop.f32.mrb[0].mxu0
      %v2920 = vadd.f32 %v2663, %v2919
      %2921 = vmatprep.mubr.f32.mxu0 %v327
      %2922 = vmatmul.mubr.f32.gmra.mrb[0].mxu0 %v326
      %v2923 = vpop.f32.mrb[0].mxu0
      %v2924 = vadd.f32 %v2667, %v2923
      %v2925 = vpop.f32.mrb[0].mxu0
      %v2926 = vadd.f32 %v2669, %v2925
      %2927 = vmatprep.mubr.f32.mxu0 %v331
      %2928 = vmatmul.mubr.f32.gmra.mrb[0].mxu0 %v330
      %v2929 = vpop.f32.mrb[0].mxu0
      %v2930 = vadd.f32 %v2673, %v2929
      %v2931 = vpop.f32.mrb[0].mxu0
      %v2932 = vadd.f32 %v2675, %v2931
      %2933 = vmatprep.mubr.f32.mxu0 %v335
      %2934 = vmatmul.mubr.f32.gmra.mrb[0].mxu0 %v334
      %v2935 = vpop.f32.mrb[0].mxu0
      %v2936 = vadd.f32 %v2679, %v2935
      %v2937 = vpop.f32.mrb[0].mxu0
      %v2938 = vadd.f32 %v2681, %v2937
      %2939 = vmatprep.mubr.f32.mxu0 %v339
      %2940 = vmatmul.mubr.f32.gmra.mrb[0].mxu0 %v338
      %v2941 = vpop.f32.mrb[0].mxu0
      %v2942 = vadd.f32 %v2685, %v2941
      %v2943 = vpop.f32.mrb[0].mxu0
      %v2944 = vadd.f32 %v2687, %v2943
      %2945 = vmatprep.mubr.f32.mxu0 %v343
      %2946 = vmatmul.mubr.f32.gmra.mrb[0].mxu0 %v342
      %v2947 = vpop.f32.mrb[0].mxu0
      %v2948 = vadd.f32 %v2691, %v2947
      %v2949 = vpop.f32.mrb[0].mxu0
      %v2950 = vadd.f32 %v2693, %v2949
      %2951 = vmatprep.mubr.f32.mxu0 %v347
      %2952 = vmatmul.mubr.f32.gmra.mrb[0].mxu0 %v346
      %v2953 = vpop.f32.mrb[0].mxu0
      %v2954 = vadd.f32 %v2697, %v2953
      %v2955 = vpop.f32.mrb[0].mxu0
      %v2956 = vadd.f32 %v2699, %v2955
      %2957 = vdwg.mxu0
      %v2958 = vmax.f32 %v1226, 0.0
      %v2959 = vmax.f32 %v1228, 0.0
      %v2960 = vmax.f32 %v1740, 0.0
      %v2961 = vmax.f32 %v1742, 0.0
      %v2962 = vmax.f32 %v2254, 0.0
      %v2963 = vmax.f32 %v2256, 0.0
      %v2964 = vmax.f32 %v2768, 0.0
      %v2965 = vmax.f32 %v2770, 0.0
      %v2966 = vmax.f32 %v1232, 0.0
      %v2967 = vmax.f32 %v1234, 0.0
      %v2968 = vmax.f32 %v1746, 0.0
      %v2969 = vmax.f32 %v1748, 0.0
      %v2970 = vmax.f32 %v2260, 0.0
      %v2971 = vmax.f32 %v2262, 0.0
      %v2972 = vmax.f32 %v2774, 0.0
      %v2973 = vmax.f32 %v2776, 0.0
      %v2974 = vmax.f32 %v1238, 0.0
      %v2975 = vmax.f32 %v1240, 0.0
      %v2976 = vmax.f32 %v1752, 0.0
      %v2977 = vmax.f32 %v1754, 0.0
      %v2978 = vmax.f32 %v2266, 0.0
      %v2979 = vmax.f32 %v2268, 0.0
      %v2980 = vmax.f32 %v2780, 0.0
      %v2981 = vmax.f32 %v2782, 0.0
      %v2982 = vmax.f32 %v1244, 0.0
      %v2983 = vmax.f32 %v1246, 0.0
      %v2984 = vmax.f32 %v1758, 0.0
      %v2985 = vmax.f32 %v1760, 0.0
      %v2986 = vmax.f32 %v2272, 0.0
      %v2987 = vmax.f32 %v2274, 0.0
      %v2988 = vmax.f32 %v2786, 0.0
      %v2989 = vmax.f32 %v2788, 0.0
      %v2990 = vmax.f32 %v1250, 0.0
      %v2991 = vmax.f32 %v1252, 0.0
      %v2992 = vmax.f32 %v1764, 0.0
      %v2993 = vmax.f32 %v1766, 0.0
      %v2994 = vmax.f32 %v2278, 0.0
      %v2995 = vmax.f32 %v2280, 0.0
      %v2996 = vmax.f32 %v2792, 0.0
      %v2997 = vmax.f32 %v2794, 0.0
      %v2998 = vmax.f32 %v1256, 0.0
      %v2999 = vmax.f32 %v1258, 0.0
      %v3000 = vmax.f32 %v1770, 0.0
      %v3001 = vmax.f32 %v1772, 0.0
      %v3002 = vmax.f32 %v2284, 0.0
      %v3003 = vmax.f32 %v2286, 0.0
      %v3004 = vmax.f32 %v2798, 0.0
      %v3005 = vmax.f32 %v2800, 0.0
      %v3006 = vmax.f32 %v1262, 0.0
      %v3007 = vmax.f32 %v1264, 0.0
      %v3008 = vmax.f32 %v1776, 0.0
      %v3009 = vmax.f32 %v1778, 0.0
      %v3010 = vmax.f32 %v2290, 0.0
      %v3011 = vmax.f32 %v2292, 0.0
      %v3012 = vmax.f32 %v2804, 0.0
      %v3013 = vmax.f32 %v2806, 0.0
      %v3014 = vmax.f32 %v1268, 0.0
      %v3015 = vmax.f32 %v1270, 0.0
      %v3016 = vmax.f32 %v1782, 0.0
      %v3017 = vmax.f32 %v1784, 0.0
      %v3018 = vmax.f32 %v2296, 0.0
      %v3019 = vmax.f32 %v2298, 0.0
      %v3020 = vmax.f32 %v2810, 0.0
      %v3021 = vmax.f32 %v2812, 0.0
      %v3022 = vmax.f32 %v1274, 0.0
      %v3023 = vmax.f32 %v1276, 0.0
      %v3024 = vmax.f32 %v1788, 0.0
      %v3025 = vmax.f32 %v1790, 0.0
      %v3026 = vmax.f32 %v2302, 0.0
      %v3027 = vmax.f32 %v2304, 0.0
      %v3028 = vmax.f32 %v2816, 0.0
      %v3029 = vmax.f32 %v2818, 0.0
      %v3030 = vmax.f32 %v1280, 0.0
      %v3031 = vmax.f32 %v1282, 0.0
      %v3032 = vmax.f32 %v1794, 0.0
      %v3033 = vmax.f32 %v1796, 0.0
      %v3034 = vmax.f32 %v2308, 0.0
      %v3035 = vmax.f32 %v2310, 0.0
      %v3036 = vmax.f32 %v2822, 0.0
      %v3037 = vmax.f32 %v2824, 0.0
      %v3038 = vmax.f32 %v1286, 0.0
      %v3039 = vmax.f32 %v1288, 0.0
      %v3040 = vmax.f32 %v1800, 0.0
      %v3041 = vmax.f32 %v1802, 0.0
      %v3042 = vmax.f32 %v2314, 0.0
      %v3043 = vmax.f32 %v2316, 0.0
      %v3044 = vmax.f32 %v2828, 0.0
      %v3045 = vmax.f32 %v2830, 0.0
      %v3046 = vmax.f32 %v1292, 0.0
      %v3047 = vmax.f32 %v1294, 0.0
      %v3048 = vmax.f32 %v1806, 0.0
      %v3049 = vmax.f32 %v1808, 0.0
      %v3050 = vmax.f32 %v2320, 0.0
      %v3051 = vmax.f32 %v2322, 0.0
      %v3052 = vmax.f32 %v2834, 0.0
      %v3053 = vmax.f32 %v2836, 0.0
      %v3054 = vmax.f32 %v1298, 0.0
      %v3055 = vmax.f32 %v1300, 0.0
      %v3056 = vmax.f32 %v1812, 0.0
      %v3057 = vmax.f32 %v1814, 0.0
      %v3058 = vmax.f32 %v2326, 0.0
      %v3059 = vmax.f32 %v2328, 0.0
      %v3060 = vmax.f32 %v2840, 0.0
      %v3061 = vmax.f32 %v2842, 0.0
      %v3062 = vmax.f32 %v1304, 0.0
      %v3063 = vmax.f32 %v1306, 0.0
      %v3064 = vmax.f32 %v1818, 0.0
      %v3065 = vmax.f32 %v1820, 0.0
      %v3066 = vmax.f32 %v2332, 0.0
      %v3067 = vmax.f32 %v2334, 0.0
      %v3068 = vmax.f32 %v2846, 0.0
      %v3069 = vmax.f32 %v2848, 0.0
      %v3070 = vmax.f32 %v1310, 0.0
      %v3071 = vmax.f32 %v1312, 0.0
      %v3072 = vmax.f32 %v1824, 0.0
      %v3073 = vmax.f32 %v1826, 0.0
      %v3074 = vmax.f32 %v2338, 0.0
      %v3075 = vmax.f32 %v2340, 0.0
      %v3076 = vmax.f32 %v2852, 0.0
      %v3077 = vmax.f32 %v2854, 0.0
      %v3078 = vmax.f32 %v1316, 0.0
      %v3079 = vmax.f32 %v1318, 0.0
      %v3080 = vmax.f32 %v1830, 0.0
      %v3081 = vmax.f32 %v1832, 0.0
      %v3082 = vmax.f32 %v2344, 0.0
      %v3083 = vmax.f32 %v2346, 0.0
      %v3084 = vmax.f32 %v2858, 0.0
      %v3085 = vmax.f32 %v2860, 0.0
      %v3086 = vmax.f32 %v1322, 0.0
      %v3087 = vmax.f32 %v1324, 0.0
      %v3088 = vmax.f32 %v1836, 0.0
      %v3089 = vmax.f32 %v1838, 0.0
      %v3090 = vmax.f32 %v2350, 0.0
      %v3091 = vmax.f32 %v2352, 0.0
      %v3092 = vmax.f32 %v2864, 0.0
      %v3093 = vmax.f32 %v2866, 0.0
      %v3094 = vmax.f32 %v1328, 0.0
      %v3095 = vmax.f32 %v1330, 0.0
      %v3096 = vmax.f32 %v1842, 0.0
      %v3097 = vmax.f32 %v1844, 0.0
      %v3098 = vmax.f32 %v2356, 0.0
      %v3099 = vmax.f32 %v2358, 0.0
      %v3100 = vmax.f32 %v2870, 0.0
      %v3101 = vmax.f32 %v2872, 0.0
      %v3102 = vmax.f32 %v1334, 0.0
      %v3103 = vmax.f32 %v1336, 0.0
      %v3104 = vmax.f32 %v1848, 0.0
      %v3105 = vmax.f32 %v1850, 0.0
      %v3106 = vmax.f32 %v2362, 0.0
      %v3107 = vmax.f32 %v2364, 0.0
      %v3108 = vmax.f32 %v2876, 0.0
      %v3109 = vmax.f32 %v2878, 0.0
      %v3110 = vmax.f32 %v1340, 0.0
      %v3111 = vmax.f32 %v1342, 0.0
      %v3112 = vmax.f32 %v1854, 0.0
      %v3113 = vmax.f32 %v1856, 0.0
      %v3114 = vmax.f32 %v2368, 0.0
      %v3115 = vmax.f32 %v2370, 0.0
      %v3116 = vmax.f32 %v2882, 0.0
      %v3117 = vmax.f32 %v2884, 0.0
      %v3118 = vmax.f32 %v1346, 0.0
      %v3119 = vmax.f32 %v1348, 0.0
      %v3120 = vmax.f32 %v1860, 0.0
      %v3121 = vmax.f32 %v1862, 0.0
      %v3122 = vmax.f32 %v2374, 0.0
      %v3123 = vmax.f32 %v2376, 0.0
      %v3124 = vmax.f32 %v2888, 0.0
      %v3125 = vmax.f32 %v2890, 0.0
      %v3126 = vmax.f32 %v1352, 0.0
      %v3127 = vmax.f32 %v1354, 0.0
      %v3128 = vmax.f32 %v1866, 0.0
      %v3129 = vmax.f32 %v1868, 0.0
      %v3130 = vmax.f32 %v2380, 0.0
      %v3131 = vmax.f32 %v2382, 0.0
      %v3132 = vmax.f32 %v2894, 0.0
      %v3133 = vmax.f32 %v2896, 0.0
      %v3134 = vmax.f32 %v1358, 0.0
      %v3135 = vmax.f32 %v1360, 0.0
      %v3136 = vmax.f32 %v1872, 0.0
      %v3137 = vmax.f32 %v1874, 0.0
      %v3138 = vmax.f32 %v2386, 0.0
      %v3139 = vmax.f32 %v2388, 0.0
      %v3140 = vmax.f32 %v2900, 0.0
      %v3141 = vmax.f32 %v2902, 0.0
      %v3142 = vmax.f32 %v1364, 0.0
      %v3143 = vmax.f32 %v1366, 0.0
      %v3144 = vmax.f32 %v1878, 0.0
      %v3145 = vmax.f32 %v1880, 0.0
      %v3146 = vmax.f32 %v2392, 0.0
      %v3147 = vmax.f32 %v2394, 0.0
      %v3148 = vmax.f32 %v2906, 0.0
      %v3149 = vmax.f32 %v2908, 0.0
      %v3150 = vmax.f32 %v1370, 0.0
      %v3151 = vmax.f32 %v1372, 0.0
      %v3152 = vmax.f32 %v1884, 0.0
      %v3153 = vmax.f32 %v1886, 0.0
      %v3154 = vmax.f32 %v2398, 0.0
      %v3155 = vmax.f32 %v2400, 0.0
      %v3156 = vmax.f32 %v2912, 0.0
      %v3157 = vmax.f32 %v2914, 0.0
      %v3158 = vmax.f32 %v1376, 0.0
      %v3159 = vmax.f32 %v1378, 0.0
      %v3160 = vmax.f32 %v1890, 0.0
      %v3161 = vmax.f32 %v1892, 0.0
      %v3162 = vmax.f32 %v2404, 0.0
      %v3163 = vmax.f32 %v2406, 0.0
      %v3164 = vmax.f32 %v2918, 0.0
      %v3165 = vmax.f32 %v2920, 0.0
      %v3166 = vmax.f32 %v1382, 0.0
      %v3167 = vmax.f32 %v1384, 0.0
      %v3168 = vmax.f32 %v1896, 0.0
      %v3169 = vmax.f32 %v1898, 0.0
      %v3170 = vmax.f32 %v2410, 0.0
      %v3171 = vmax.f32 %v2412, 0.0
      %v3172 = vmax.f32 %v2924, 0.0
      %v3173 = vmax.f32 %v2926, 0.0
      %v3174 = vmax.f32 %v1388, 0.0
      %v3175 = vmax.f32 %v1390, 0.0
      %v3176 = vmax.f32 %v1902, 0.0
      %v3177 = vmax.f32 %v1904, 0.0
      %v3178 = vmax.f32 %v2416, 0.0
      %v3179 = vmax.f32 %v2418, 0.0
      %v3180 = vmax.f32 %v2930, 0.0
      %v3181 = vmax.f32 %v2932, 0.0
      %v3182 = vmax.f32 %v1394, 0.0
      %v3183 = vmax.f32 %v1396, 0.0
      %v3184 = vmax.f32 %v1908, 0.0
      %v3185 = vmax.f32 %v1910, 0.0
      %v3186 = vmax.f32 %v2422, 0.0
      %v3187 = vmax.f32 %v2424, 0.0
      %v3188 = vmax.f32 %v2936, 0.0
      %v3189 = vmax.f32 %v2938, 0.0
      %v3190 = vmax.f32 %v1400, 0.0
      %v3191 = vmax.f32 %v1402, 0.0
      %v3192 = vmax.f32 %v1914, 0.0
      %v3193 = vmax.f32 %v1916, 0.0
      %v3194 = vmax.f32 %v2428, 0.0
      %v3195 = vmax.f32 %v2430, 0.0
      %v3196 = vmax.f32 %v2942, 0.0
      %v3197 = vmax.f32 %v2944, 0.0
      %v3198 = vmax.f32 %v1406, 0.0
      %v3199 = vmax.f32 %v1408, 0.0
      %v3200 = vmax.f32 %v1920, 0.0
      %v3201 = vmax.f32 %v1922, 0.0
      %v3202 = vmax.f32 %v2434, 0.0
      %v3203 = vmax.f32 %v2436, 0.0
      %v3204 = vmax.f32 %v2948, 0.0
      %v3205 = vmax.f32 %v2950, 0.0
      %v3206 = vmax.f32 %v1412, 0.0
      %v3207 = vmax.f32 %v1414, 0.0
      %v3208 = vmax.f32 %v1926, 0.0
      %v3209 = vmax.f32 %v1928, 0.0
      %v3210 = vmax.f32 %v2440, 0.0
      %v3211 = vmax.f32 %v2442, 0.0
      %v3212 = vmax.f32 %v2954, 0.0
      %v3213 = vmax.f32 %v2956, 0.0
      %v3214 = vmax.f32 %v2958, %v2962
      %v3215 = vmax.f32 %v2961, %v2965
      %v3216 = vmax.f32 %v2963, %v2959
      %v3217 = vmax.f32 %v2964, %v2960
      %v3218 = vmax.f32 %v2966, %v2970
      %v3219 = vmax.f32 %v2969, %v2973
      %v3220 = vmax.f32 %v2971, %v2967
      %v3221 = vmax.f32 %v2972, %v2968
      %v3222 = vmax.f32 %v2974, %v2978
      %v3223 = vmax.f32 %v2977, %v2981
      %v3224 = vmax.f32 %v2979, %v2975
      %v3225 = vmax.f32 %v2980, %v2976
      %v3226 = vmax.f32 %v2982, %v2986
      %v3227 = vmax.f32 %v2985, %v2989
      %v3228 = vmax.f32 %v2987, %v2983
      %v3229 = vmax.f32 %v2988, %v2984
      %v3230 = vmax.f32 %v2990, %v2994
      %v3231 = vmax.f32 %v2993, %v2997
      %v3232 = vmax.f32 %v2995, %v2991
      %v3233 = vmax.f32 %v2996, %v2992
      %v3234 = vmax.f32 %v2998, %v3002
      %v3235 = vmax.f32 %v3001, %v3005
      %v3236 = vmax.f32 %v3003, %v2999
      %v3237 = vmax.f32 %v3004, %v3000
      %v3238 = vmax.f32 %v3006, %v3010
      %v3239 = vmax.f32 %v3009, %v3013
      %v3240 = vmax.f32 %v3011, %v3007
      %v3241 = vmax.f32 %v3012, %v3008
      %v3242 = vmax.f32 %v3014, %v3018
      %v3243 = vmax.f32 %v3017, %v3021
      %v3244 = vmax.f32 %v3019, %v3015
      %v3245 = vmax.f32 %v3020, %v3016
      %v3246 = vmax.f32 %v3022, %v3026
      %v3247 = vmax.f32 %v3025, %v3029
      %v3248 = vmax.f32 %v3027, %v3023
      %v3249 = vmax.f32 %v3028, %v3024
      %v3250 = vmax.f32 %v3030, %v3034
      %v3251 = vmax.f32 %v3033, %v3037
      %v3252 = vmax.f32 %v3035, %v3031
      %v3253 = vmax.f32 %v3036, %v3032
      %v3254 = vmax.f32 %v3038, %v3042
      %v3255 = vmax.f32 %v3041, %v3045
      %v3256 = vmax.f32 %v3043, %v3039
      %v3257 = vmax.f32 %v3044, %v3040
      %v3258 = vmax.f32 %v3046, %v3050
      %v3259 = vmax.f32 %v3049, %v3053
      %v3260 = vmax.f32 %v3051, %v3047
      %v3261 = vmax.f32 %v3052, %v3048
      %v3262 = vmax.f32 %v3054, %v3058
      %v3263 = vmax.f32 %v3057, %v3061
      %v3264 = vmax.f32 %v3059, %v3055
      %v3265 = vmax.f32 %v3060, %v3056
      %v3266 = vmax.f32 %v3062, %v3066
      %v3267 = vmax.f32 %v3065, %v3069
      %v3268 = vmax.f32 %v3067, %v3063
      %v3269 = vmax.f32 %v3068, %v3064
      %v3270 = vmax.f32 %v3070, %v3074
      %v3271 = vmax.f32 %v3073, %v3077
      %v3272 = vmax.f32 %v3075, %v3071
      %v3273 = vmax.f32 %v3076, %v3072
      %v3274 = vmax.f32 %v3078, %v3082
      %v3275 = vmax.f32 %v3081, %v3085
      %v3276 = vmax.f32 %v3083, %v3079
      %v3277 = vmax.f32 %v3084, %v3080
      %v3278 = vmax.f32 %v3086, %v3090
      %v3279 = vmax.f32 %v3089, %v3093
      %v3280 = vmax.f32 %v3091, %v3087
      %v3281 = vmax.f32 %v3092, %v3088
      %v3282 = vmax.f32 %v3094, %v3098
      %v3283 = vmax.f32 %v3097, %v3101
      %v3284 = vmax.f32 %v3099, %v3095
      %v3285 = vmax.f32 %v3100, %v3096
      %v3286 = vmax.f32 %v3102, %v3106
      %v3287 = vmax.f32 %v3105, %v3109
      %v3288 = vmax.f32 %v3107, %v3103
      %v3289 = vmax.f32 %v3108, %v3104
      %v3290 = vmax.f32 %v3110, %v3114
      %v3291 = vmax.f32 %v3113, %v3117
      %v3292 = vmax.f32 %v3115, %v3111
      %v3293 = vmax.f32 %v3116, %v3112
      %v3294 = vmax.f32 %v3118, %v3122
      %v3295 = vmax.f32 %v3121, %v3125
      %v3296 = vmax.f32 %v3123, %v3119
      %v3297 = vmax.f32 %v3124, %v3120
      %v3298 = vmax.f32 %v3126, %v3130
      %v3299 = vmax.f32 %v3129, %v3133
      %v3300 = vmax.f32 %v3131, %v3127
      %v3301 = vmax.f32 %v3132, %v3128
      %v3302 = vmax.f32 %v3134, %v3138
      %v3303 = vmax.f32 %v3137, %v3141
      %v3304 = vmax.f32 %v3139, %v3135
      %v3305 = vmax.f32 %v3140, %v3136
      %v3306 = vmax.f32 %v3142, %v3146
      %v3307 = vmax.f32 %v3145, %v3149
      %v3308 = vmax.f32 %v3147, %v3143
      %v3309 = vmax.f32 %v3148, %v3144
      %v3310 = vmax.f32 %v3150, %v3154
      %v3311 = vmax.f32 %v3153, %v3157
      %v3312 = vmax.f32 %v3155, %v3151
      %v3313 = vmax.f32 %v3156, %v3152
      %v3314 = vmax.f32 %v3158, %v3162
      %v3315 = vmax.f32 %v3161, %v3165
      %v3316 = vmax.f32 %v3163, %v3159
      %v3317 = vmax.f32 %v3164, %v3160
      %v3318 = vmax.f32 %v3166, %v3170
      %v3319 = vmax.f32 %v3169, %v3173
      %v3320 = vmax.f32 %v3171, %v3167
      %v3321 = vmax.f32 %v3172, %v3168
      %v3322 = vmax.f32 %v3174, %v3178
      %v3323 = vmax.f32 %v3177, %v3181
      %v3324 = vmax.f32 %v3179, %v3175
      %v3325 = vmax.f32 %v3180, %v3176
      %v3326 = vmax.f32 %v3182, %v3186
      %v3327 = vmax.f32 %v3185, %v3189
      %v3328 = vmax.f32 %v3187, %v3183
      %v3329 = vmax.f32 %v3188, %v3184
      %v3330 = vmax.f32 %v3190, %v3194
      %v3331 = vmax.f32 %v3193, %v3197
      %v3332 = vmax.f32 %v3195, %v3191
      %v3333 = vmax.f32 %v3196, %v3192
      %v3334 = vmax.f32 %v3198, %v3202
      %v3335 = vmax.f32 %v3201, %v3205
      %v3336 = vmax.f32 %v3203, %v3199
      %v3337 = vmax.f32 %v3204, %v3200
      %v3338 = vmax.f32 %v3206, %v3210
      %v3339 = vmax.f32 %v3209, %v3213
      %v3340 = vmax.f32 %v3211, %v3207
      %v3341 = vmax.f32 %v3212, %v3208
      %v3342 = vmax.f32 %v3214, %v3217
      %v3343 = vmax.f32 %v3216, %v3215
      %v3344 = vmax.f32 %v3218, %v3221
      %v3345 = vmax.f32 %v3220, %v3219
      %v3346 = vmax.f32 %v3222, %v3225
      %v3347 = vmax.f32 %v3224, %v3223
      %v3348 = vmax.f32 %v3226, %v3229
      %v3349 = vmax.f32 %v3228, %v3227
      %v3350 = vmax.f32 %v3230, %v3233
      %v3351 = vmax.f32 %v3232, %v3231
      %v3352 = vmax.f32 %v3234, %v3237
      %v3353 = vmax.f32 %v3236, %v3235
      %v3354 = vmax.f32 %v3238, %v3241
      %v3355 = vmax.f32 %v3240, %v3239
      %v3356 = vmax.f32 %v3242, %v3245
      %v3357 = vmax.f32 %v3244, %v3243
      %v3358 = vmax.f32 %v3246, %v3249
      %v3359 = vmax.f32 %v3248, %v3247
      %v3360 = vmax.f32 %v3250, %v3253
      %v3361 = vmax.f32 %v3252, %v3251
      %v3362 = vmax.f32 %v3254, %v3257
      %v3363 = vmax.f32 %v3256, %v3255
      %v3364 = vmax.f32 %v3258, %v3261
      %v3365 = vmax.f32 %v3260, %v3259
      %v3366 = vmax.f32 %v3262, %v3265
      %v3367 = vmax.f32 %v3264, %v3263
      %v3368 = vmax.f32 %v3266, %v3269
      %v3369 = vmax.f32 %v3268, %v3267
      %v3370 = vmax.f32 %v3270, %v3273
      %v3371 = vmax.f32 %v3272, %v3271
      %v3372 = vmax.f32 %v3274, %v3277
      %v3373 = vmax.f32 %v3276, %v3275
      %v3374 = vmax.f32 %v3278, %v3281
      %v3375 = vmax.f32 %v3280, %v3279
      %v3376 = vmax.f32 %v3282, %v3285
      %v3377 = vmax.f32 %v3284, %v3283
      %v3378 = vmax.f32 %v3286, %v3289
      %v3379 = vmax.f32 %v3288, %v3287
      %v3380 = vmax.f32 %v3290, %v3293
      %v3381 = vmax.f32 %v3292, %v3291
      %v3382 = vmax.f32 %v3294, %v3297
      %v3383 = vmax.f32 %v3296, %v3295
      %v3384 = vmax.f32 %v3298, %v3301
      %v3385 = vmax.f32 %v3300, %v3299
      %v3386 = vmax.f32 %v3302, %v3305
      %v3387 = vmax.f32 %v3304, %v3303
      %v3388 = vmax.f32 %v3306, %v3309
      %v3389 = vmax.f32 %v3308, %v3307
      %v3390 = vmax.f32 %v3310, %v3313
      %v3391 = vmax.f32 %v3312, %v3311
      %v3392 = vmax.f32 %v3314, %v3317
      %v3393 = vmax.f32 %v3316, %v3315
      %v3394 = vmax.f32 %v3318, %v3321
      %v3395 = vmax.f32 %v3320, %v3319
      %v3396 = vmax.f32 %v3322, %v3325
      %v3397 = vmax.f32 %v3324, %v3323
      %v3398 = vmax.f32 %v3326, %v3329
      %v3399 = vmax.f32 %v3328, %v3327
      %v3400 = vmax.f32 %v3330, %v3333
      %v3401 = vmax.f32 %v3332, %v3331
      %v3402 = vmax.f32 %v3334, %v3337
      %v3403 = vmax.f32 %v3336, %v3335
      %v3404 = vmax.f32 %v3338, %v3341
      %v3405 = vmax.f32 %v3340, %v3339
      %v3406 = vmax.f32 %v3342, %v3343
      %v3407 = vmax.f32 %v3344, %v3345
      %v3408 = vmax.f32 %v3346, %v3347
      %v3409 = vmax.f32 %v3348, %v3349
      %v3410 = vmax.f32 %v3350, %v3351
      %v3411 = vmax.f32 %v3352, %v3353
      %v3412 = vmax.f32 %v3354, %v3355
      %v3413 = vmax.f32 %v3356, %v3357
      %v3414 = vmax.f32 %v3358, %v3359
      %v3415 = vmax.f32 %v3360, %v3361
      %v3416 = vmax.f32 %v3362, %v3363
      %v3417 = vmax.f32 %v3364, %v3365
      %v3418 = vmax.f32 %v3366, %v3367
      %v3419 = vmax.f32 %v3368, %v3369
      %v3420 = vmax.f32 %v3370, %v3371
      %v3421 = vmax.f32 %v3372, %v3373
      %v3422 = vmax.f32 %v3374, %v3375
      %v3423 = vmax.f32 %v3376, %v3377
      %v3424 = vmax.f32 %v3378, %v3379
      %v3425 = vmax.f32 %v3380, %v3381
      %v3426 = vmax.f32 %v3382, %v3383
      %v3427 = vmax.f32 %v3384, %v3385
      %v3428 = vmax.f32 %v3386, %v3387
      %v3429 = vmax.f32 %v3388, %v3389
      %v3430 = vmax.f32 %v3390, %v3391
      %v3431 = vmax.f32 %v3392, %v3393
      %v3432 = vmax.f32 %v3394, %v3395
      %v3433 = vmax.f32 %v3396, %v3397
      %v3434 = vmax.f32 %v3398, %v3399
      %v3435 = vmax.f32 %v3400, %v3401
      %v3436 = vmax.f32 %v3402, %v3403
      %v3437 = vmax.f32 %v3404, %v3405
      %3438 = vrot.lane.b32.xlu0 %v3406, 64
      %v3439 = vpop.permute.xlu0 %3438
      %3440 = vrot.lane.b32.xlu0 %v3407, 64
      %v3441 = vpop.permute.xlu0 %3440
      %3442 = vrot.lane.b32.xlu0 %v3408, 64
      %v3443 = vpop.permute.xlu0 %3442
      %3444 = vrot.lane.b32.xlu0 %v3409, 64
      %v3445 = vpop.permute.xlu0 %3444
      %3446 = vrot.lane.b32.xlu0 %v3410, 64
      %v3447 = vpop.permute.xlu0 %3446
      %3448 = vrot.lane.b32.xlu0 %v3411, 64
      %v3449 = vpop.permute.xlu0 %3448
      %3450 = vrot.lane.b32.xlu0 %v3412, 64
      %v3451 = vpop.permute.xlu0 %3450
      %3452 = vrot.lane.b32.xlu0 %v3413, 64
      %v3453 = vpop.permute.xlu0 %3452
      %3454 = vrot.lane.b32.xlu0 %v3414, 64
      %v3455 = vpop.permute.xlu0 %3454
      %3456 = vrot.lane.b32.xlu0 %v3415, 64
      %v3457 = vpop.permute.xlu0 %3456
      %3458 = vrot.lane.b32.xlu0 %v3416, 64
      %v3459 = vpop.permute.xlu0 %3458
      %3460 = vrot.lane.b32.xlu0 %v3417, 64
      %v3461 = vpop.permute.xlu0 %3460
      %3462 = vrot.lane.b32.xlu0 %v3418, 64
      %v3463 = vpop.permute.xlu0 %3462
      %3464 = vrot.lane.b32.xlu0 %v3419, 64
      %v3465 = vpop.permute.xlu0 %3464
      %3466 = vrot.lane.b32.xlu0 %v3420, 64
      %v3467 = vpop.permute.xlu0 %3466
      %3468 = vrot.lane.b32.xlu0 %v3421, 64
      %v3469 = vpop.permute.xlu0 %3468
      %3470 = vrot.lane.b32.xlu0 %v3422, 64
      %v3471 = vpop.permute.xlu0 %3470
      %3472 = vrot.lane.b32.xlu0 %v3423, 64
      %v3473 = vpop.permute.xlu0 %3472
      %3474 = vrot.lane.b32.xlu0 %v3424, 64
      %v3475 = vpop.permute.xlu0 %3474
      %3476 = vrot.lane.b32.xlu0 %v3425, 64
      %v3477 = vpop.permute.xlu0 %3476
      %3478 = vrot.lane.b32.xlu0 %v3426, 64
      %v3479 = vpop.permute.xlu0 %3478
      %3480 = vrot.lane.b32.xlu0 %v3427, 64
      %v3481 = vpop.permute.xlu0 %3480
      %3482 = vrot.lane.b32.xlu0 %v3428, 64
      %v3483 = vpop.permute.xlu0 %3482
      %3484 = vrot.lane.b32.xlu0 %v3429, 64
      %v3485 = vpop.permute.xlu0 %3484
      %3486 = vrot.lane.b32.xlu0 %v3430, 64
      %v3487 = vpop.permute.xlu0 %3486
      %3488 = vrot.lane.b32.xlu0 %v3431, 64
      %v3489 = vpop.permute.xlu0 %3488
      %3490 = vrot.lane.b32.xlu0 %v3432, 64
      %v3491 = vpop.permute.xlu0 %3490
      %3492 = vrot.lane.b32.xlu0 %v3433, 64
      %v3493 = vpop.permute.xlu0 %3492
      %3494 = vrot.lane.b32.xlu0 %v3434, 64
      %v3495 = vpop.permute.xlu0 %3494
      %3496 = vrot.lane.b32.xlu0 %v3435, 64
      %v3497 = vpop.permute.xlu0 %3496
      %3498 = vrot.lane.b32.xlu0 %v3436, 64
      %v3499 = vpop.permute.xlu0 %3498
      %3500 = vrot.lane.b32.xlu0 %v3437, 64
      %v3501 = vpop.permute.xlu0 %3500
      %v3502 = vlaneseq
      %v3503 = vand.u32 %v3502, 127
      %v3504 = vmax.f32 %v3406, %v3439
      %v3505 = vmax.f32 %v3407, %v3441
      %v3506 = vmax.f32 %v3408, %v3443
      %v3507 = vmax.f32 %v3409, %v3445
      %v3508 = vmax.f32 %v3410, %v3447
      %v3509 = vmax.f32 %v3411, %v3449
      %v3510 = vmax.f32 %v3412, %v3451
      %v3511 = vmax.f32 %v3413, %v3453
      %v3512 = vmax.f32 %v3414, %v3455
      %v3513 = vmax.f32 %v3415, %v3457
      %v3514 = vmax.f32 %v3416, %v3459
      %v3515 = vmax.f32 %v3417, %v3461
      %v3516 = vmax.f32 %v3418, %v3463
      %v3517 = vmax.f32 %v3419, %v3465
      %v3518 = vmax.f32 %v3420, %v3467
      %v3519 = vmax.f32 %v3421, %v3469
      %v3520 = vmax.f32 %v3422, %v3471
      %v3521 = vmax.f32 %v3423, %v3473
      %v3522 = vmax.f32 %v3424, %v3475
      %v3523 = vmax.f32 %v3425, %v3477
      %v3524 = vmax.f32 %v3426, %v3479
      %v3525 = vmax.f32 %v3427, %v3481
      %v3526 = vmax.f32 %v3428, %v3483
      %v3527 = vmax.f32 %v3429, %v3485
      %v3528 = vmax.f32 %v3430, %v3487
      %v3529 = vmax.f32 %v3431, %v3489
      %v3530 = vmax.f32 %v3432, %v3491
      %v3531 = vmax.f32 %v3433, %v3493
      %v3532 = vmax.f32 %v3434, %v3495
      %v3533 = vmax.f32 %v3435, %v3497
      %v3534 = vmax.f32 %v3436, %v3499
      %v3535 = vmax.f32 %v3437, %v3501
      %3536 = vrot.lane.b32.xlu0 %v3504, 32
      %v3537 = vpop.permute.xlu0 %3536
      %3538 = vrot.lane.b32.xlu0 %v3505, 32
      %v3539 = vpop.permute.xlu0 %3538
      %3540 = vrot.lane.b32.xlu0 %v3506, 32
      %v3541 = vpop.permute.xlu0 %3540
      %3542 = vrot.lane.b32.xlu0 %v3507, 32
      %v3543 = vpop.permute.xlu0 %3542
      %3544 = vrot.lane.b32.xlu0 %v3508, 32
      %v3545 = vpop.permute.xlu0 %3544
      %3546 = vrot.lane.b32.xlu0 %v3509, 32
      %v3547 = vpop.permute.xlu0 %3546
      %3548 = vrot.lane.b32.xlu0 %v3510, 32
      %v3549 = vpop.permute.xlu0 %3548
      %3550 = vrot.lane.b32.xlu0 %v3511, 32
      %v3551 = vpop.permute.xlu0 %3550
      %3552 = vrot.lane.b32.xlu0 %v3512, 32
      %v3553 = vpop.permute.xlu0 %3552
      %3554 = vrot.lane.b32.xlu0 %v3513, 32
      %v3555 = vpop.permute.xlu0 %3554
      %3556 = vrot.lane.b32.xlu0 %v3514, 32
      %v3557 = vpop.permute.xlu0 %3556
      %3558 = vrot.lane.b32.xlu0 %v3515, 32
      %v3559 = vpop.permute.xlu0 %3558
      %3560 = vrot.lane.b32.xlu0 %v3516, 32
      %v3561 = vpop.permute.xlu0 %3560
      %3562 = vrot.lane.b32.xlu0 %v3517, 32
      %v3563 = vpop.permute.xlu0 %3562
      %3564 = vrot.lane.b32.xlu0 %v3518, 32
      %v3565 = vpop.permute.xlu0 %3564
      %3566 = vrot.lane.b32.xlu0 %v3519, 32
      %v3567 = vpop.permute.xlu0 %3566
      %3568 = vrot.lane.b32.xlu0 %v3520, 32
      %v3569 = vpop.permute.xlu0 %3568
      %3570 = vrot.lane.b32.xlu0 %v3521, 32
      %v3571 = vpop.permute.xlu0 %3570
      %3572 = vrot.lane.b32.xlu0 %v3522, 32
      %v3573 = vpop.permute.xlu0 %3572
      %3574 = vrot.lane.b32.xlu0 %v3523, 32
      %v3575 = vpop.permute.xlu0 %3574
      %3576 = vrot.lane.b32.xlu0 %v3524, 32
      %v3577 = vpop.permute.xlu0 %3576
      %3578 = vrot.lane.b32.xlu0 %v3525, 32
      %v3579 = vpop.permute.xlu0 %3578
      %3580 = vrot.lane.b32.xlu0 %v3526, 32
      %v3581 = vpop.permute.xlu0 %3580
      %3582 = vrot.lane.b32.xlu0 %v3527, 32
      %v3583 = vpop.permute.xlu0 %3582
      %3584 = vrot.lane.b32.xlu0 %v3528, 32
      %v3585 = vpop.permute.xlu0 %3584
      %3586 = vrot.lane.b32.xlu0 %v3529, 32
      %v3587 = vpop.permute.xlu0 %3586
      %3588 = vrot.lane.b32.xlu0 %v3530, 32
      %v3589 = vpop.permute.xlu0 %3588
      %3590 = vrot.lane.b32.xlu0 %v3531, 32
      %v3591 = vpop.permute.xlu0 %3590
      %3592 = vrot.lane.b32.xlu0 %v3532, 32
      %v3593 = vpop.permute.xlu0 %3592
      %3594 = vrot.lane.b32.xlu0 %v3533, 32
      %v3595 = vpop.permute.xlu0 %3594
      %3596 = vrot.lane.b32.xlu0 %v3534, 32
      %v3597 = vpop.permute.xlu0 %3596
      %3598 = vrot.lane.b32.xlu0 %v3535, 32
      %v3599 = vpop.permute.xlu0 %3598
      %v3600 = vmax.f32 %v3504, %v3537
      %v3601 = vmax.f32 %v3505, %v3539
      %v3602 = vmax.f32 %v3506, %v3541
      %v3603 = vmax.f32 %v3507, %v3543
      %v3604 = vmax.f32 %v3508, %v3545
      %v3605 = vmax.f32 %v3509, %v3547
      %v3606 = vmax.f32 %v3510, %v3549
      %v3607 = vmax.f32 %v3511, %v3551
      %v3608 = vmax.f32 %v3512, %v3553
      %v3609 = vmax.f32 %v3513, %v3555
      %v3610 = vmax.f32 %v3514, %v3557
      %v3611 = vmax.f32 %v3515, %v3559
      %v3612 = vmax.f32 %v3516, %v3561
      %v3613 = vmax.f32 %v3517, %v3563
      %v3614 = vmax.f32 %v3518, %v3565
      %v3615 = vmax.f32 %v3519, %v3567
      %v3616 = vmax.f32 %v3520, %v3569
      %v3617 = vmax.f32 %v3521, %v3571
      %v3618 = vmax.f32 %v3522, %v3573
      %v3619 = vmax.f32 %v3523, %v3575
      %v3620 = vmax.f32 %v3524, %v3577
      %v3621 = vmax.f32 %v3525, %v3579
      %v3622 = vmax.f32 %v3526, %v3581
      %v3623 = vmax.f32 %v3527, %v3583
      %v3624 = vmax.f32 %v3528, %v3585
      %v3625 = vmax.f32 %v3529, %v3587
      %v3626 = vmax.f32 %v3530, %v3589
      %v3627 = vmax.f32 %v3531, %v3591
      %v3628 = vmax.f32 %v3532, %v3593
      %v3629 = vmax.f32 %v3533, %v3595
      %v3630 = vmax.f32 %v3534, %v3597
      %v3631 = vmax.f32 %v3535, %v3599
      %3632 = vst [vmem:[%s212] sm:$0xff] %v2958
      %3633 = vst [vmem:[%s212 + $0x8] sm:$0xff] %v2959
      %3634 = vst [vmem:[%s212 + $0x10] sm:$0xff] %v2960
      %3635 = vst [vmem:[%s212 + $0x18] sm:$0xff] %v2961
      %3636 = vst [vmem:[%s212 + $0x20] sm:$0xff] %v2962
      %3637 = vst [vmem:[%s212 + $0x28] sm:$0xff] %v2963
      %3638 = vst [vmem:[%s212 + $0x30] sm:$0xff] %v2964
      %3639 = vst [vmem:[%s212 + $0x38] sm:$0xff] %v2965
      %3640 = vst [vmem:[%s212 + $0x40] sm:$0xff] %v2966
      %3641 = vst [vmem:[%s212 + $0x48] sm:$0xff] %v2967
      %3642 = vst [vmem:[%s212 + $0x50] sm:$0xff] %v2968
      %3643 = vst [vmem:[%s212 + $0x58] sm:$0xff] %v2969
      %3644 = vst [vmem:[%s212 + $0x60] sm:$0xff] %v2970
      %3645 = vst [vmem:[%s212 + $0x68] sm:$0xff] %v2971
      %3646 = vst [vmem:[%s212 + $0x70] sm:$0xff] %v2972
      %3647 = vst [vmem:[%s212 + $0x78] sm:$0xff] %v2973
      %3648 = vst [vmem:[%s212 + $0x80] sm:$0xff] %v2974
      %3649 = vst [vmem:[%s212 + $0x88] sm:$0xff] %v2975
      %3650 = vst [vmem:[%s212 + $0x90] sm:$0xff] %v2976
      %3651 = vst [vmem:[%s212 + $0x98] sm:$0xff] %v2977
      %3652 = vst [vmem:[%s212 + $0xa0] sm:$0xff] %v2978
      %3653 = vst [vmem:[%s212 + $0xa8] sm:$0xff] %v2979
      %3654 = vst [vmem:[%s212 + $0xb0] sm:$0xff] %v2980
      %3655 = vst [vmem:[%s212 + $0xb8] sm:$0xff] %v2981
      %3656 = vst [vmem:[%s212 + $0xc0] sm:$0xff] %v2982
      %3657 = vst [vmem:[%s212 + $0xc8] sm:$0xff] %v2983
      %3658 = vst [vmem:[%s212 + $0xd0] sm:$0xff] %v2984
      %3659 = vst [vmem:[%s212 + $0xd8] sm:$0xff] %v2985
      %3660 = vst [vmem:[%s212 + $0xe0] sm:$0xff] %v2986
      %3661 = vst [vmem:[%s212 + $0xe8] sm:$0xff] %v2987
      %3662 = vst [vmem:[%s212 + $0xf0] sm:$0xff] %v2988
      %3663 = vst [vmem:[%s212 + $0xf8] sm:$0xff] %v2989
      %3664 = vst [vmem:[%s212 + $0x100] sm:$0xff] %v2990
      %3665 = vst [vmem:[%s212 + $0x108] sm:$0xff] %v2991
      %3666 = vst [vmem:[%s212 + $0x110] sm:$0xff] %v2992
      %3667 = vst [vmem:[%s212 + $0x118] sm:$0xff] %v2993
      %3668 = vst [vmem:[%s212 + $0x120] sm:$0xff] %v2994
      %3669 = vst [vmem:[%s212 + $0x128] sm:$0xff] %v2995
      %3670 = vst [vmem:[%s212 + $0x130] sm:$0xff] %v2996
      %3671 = vst [vmem:[%s212 + $0x138] sm:$0xff] %v2997
      %3672 = vst [vmem:[%s212 + $0x140] sm:$0xff] %v2998
      %3673 = vst [vmem:[%s212 + $0x148] sm:$0xff] %v2999
      %3674 = vst [vmem:[%s212 + $0x150] sm:$0xff] %v3000
      %3675 = vst [vmem:[%s212 + $0x158] sm:$0xff] %v3001
      %3676 = vst [vmem:[%s212 + $0x160] sm:$0xff] %v3002
      %3677 = vst [vmem:[%s212 + $0x168] sm:$0xff] %v3003
      %3678 = vst [vmem:[%s212 + $0x170] sm:$0xff] %v3004
      %3679 = vst [vmem:[%s212 + $0x178] sm:$0xff] %v3005
      %3680 = vst [vmem:[%s212 + $0x180] sm:$0xff] %v3006
      %3681 = vst [vmem:[%s212 + $0x188] sm:$0xff] %v3007
      %3682 = vst [vmem:[%s212 + $0x190] sm:$0xff] %v3008
      %3683 = vst [vmem:[%s212 + $0x198] sm:$0xff] %v3009
      %3684 = vst [vmem:[%s212 + $0x1a0] sm:$0xff] %v3010
      %3685 = vst [vmem:[%s212 + $0x1a8] sm:$0xff] %v3011
      %3686 = vst [vmem:[%s212 + $0x1b0] sm:$0xff] %v3012
      %3687 = vst [vmem:[%s212 + $0x1b8] sm:$0xff] %v3013
      %3688 = vst [vmem:[%s212 + $0x1c0] sm:$0xff] %v3014
      %3689 = vst [vmem:[%s212 + $0x1c8] sm:$0xff] %v3015
      %3690 = vst [vmem:[%s212 + $0x1d0] sm:$0xff] %v3016
      %3691 = vst [vmem:[%s212 + $0x1d8] sm:$0xff] %v3017
      %3692 = vst [vmem:[%s212 + $0x1e0] sm:$0xff] %v3018
      %3693 = vst [vmem:[%s212 + $0x1e8] sm:$0xff] %v3019
      %3694 = vst [vmem:[%s212 + $0x1f0] sm:$0xff] %v3020
      %3695 = vst [vmem:[%s212 + $0x1f8] sm:$0xff] %v3021
      %3696 = vst [vmem:[%s212 + $0x200] sm:$0xff] %v3022
      %3697 = vst [vmem:[%s212 + $0x208] sm:$0xff] %v3023
      %3698 = vst [vmem:[%s212 + $0x210] sm:$0xff] %v3024
      %3699 = vst [vmem:[%s212 + $0x218] sm:$0xff] %v3025
      %3700 = vst [vmem:[%s212 + $0x220] sm:$0xff] %v3026
      %3701 = vst [vmem:[%s212 + $0x228] sm:$0xff] %v3027
      %3702 = vst [vmem:[%s212 + $0x230] sm:$0xff] %v3028
      %3703 = vst [vmem:[%s212 + $0x238] sm:$0xff] %v3029
      %3704 = vst [vmem:[%s212 + $0x240] sm:$0xff] %v3030
      %3705 = vst [vmem:[%s212 + $0x248] sm:$0xff] %v3031
      %3706 = vst [vmem:[%s212 + $0x250] sm:$0xff] %v3032
      %3707 = vst [vmem:[%s212 + $0x258] sm:$0xff] %v3033
      %3708 = vst [vmem:[%s212 + $0x260] sm:$0xff] %v3034
      %3709 = vst [vmem:[%s212 + $0x268] sm:$0xff] %v3035
      %3710 = vst [vmem:[%s212 + $0x270] sm:$0xff] %v3036
      %3711 = vst [vmem:[%s212 + $0x278] sm:$0xff] %v3037
      %3712 = vst [vmem:[%s212 + $0x280] sm:$0xff] %v3038
      %3713 = vst [vmem:[%s212 + $0x288] sm:$0xff] %v3039
      %3714 = vst [vmem:[%s212 + $0x290] sm:$0xff] %v3040
      %3715 = vst [vmem:[%s212 + $0x298] sm:$0xff] %v3041
      %3716 = vst [vmem:[%s212 + $0x2a0] sm:$0xff] %v3042
      %3717 = vst [vmem:[%s212 + $0x2a8] sm:$0xff] %v3043
      %3718 = vst [vmem:[%s212 + $0x2b0] sm:$0xff] %v3044
      %3719 = vst [vmem:[%s212 + $0x2b8] sm:$0xff] %v3045
      %3720 = vst [vmem:[%s212 + $0x2c0] sm:$0xff] %v3046
      %3721 = vst [vmem:[%s212 + $0x2c8] sm:$0xff] %v3047
      %3722 = vst [vmem:[%s212 + $0x2d0] sm:$0xff] %v3048
      %3723 = vst [vmem:[%s212 + $0x2d8] sm:$0xff] %v3049
      %3724 = vst [vmem:[%s212 + $0x2e0] sm:$0xff] %v3050
      %3725 = vst [vmem:[%s212 + $0x2e8] sm:$0xff] %v3051
      %3726 = vst [vmem:[%s212 + $0x2f0] sm:$0xff] %v3052
      %3727 = vst [vmem:[%s212 + $0x2f8] sm:$0xff] %v3053
      %3728 = vst [vmem:[%s212 + $0x300] sm:$0xff] %v3054
      %3729 = vst [vmem:[%s212 + $0x308] sm:$0xff] %v3055
      %3730 = vst [vmem:[%s212 + $0x310] sm:$0xff] %v3056
      %3731 = vst [vmem:[%s212 + $0x318] sm:$0xff] %v3057
      %3732 = vst [vmem:[%s212 + $0x320] sm:$0xff] %v3058
      %3733 = vst [vmem:[%s212 + $0x328] sm:$0xff] %v3059
      %3734 = vst [vmem:[%s212 + $0x330] sm:$0xff] %v3060
      %3735 = vst [vmem:[%s212 + $0x338] sm:$0xff] %v3061
      %3736 = vst [vmem:[%s212 + $0x340] sm:$0xff] %v3062
      %3737 = vst [vmem:[%s212 + $0x348] sm:$0xff] %v3063
      %3738 = vst [vmem:[%s212 + $0x350] sm:$0xff] %v3064
      %3739 = vst [vmem:[%s212 + $0x358] sm:$0xff] %v3065
      %3740 = vst [vmem:[%s212 + $0x360] sm:$0xff] %v3066
      %3741 = vst [vmem:[%s212 + $0x368] sm:$0xff] %v3067
      %3742 = vst [vmem:[%s212 + $0x370] sm:$0xff] %v3068
      %3743 = vst [vmem:[%s212 + $0x378] sm:$0xff] %v3069
      %3744 = vst [vmem:[%s212 + $0x380] sm:$0xff] %v3070
      %3745 = vst [vmem:[%s212 + $0x388] sm:$0xff] %v3071
      %3746 = vst [vmem:[%s212 + $0x390] sm:$0xff] %v3072
      %3747 = vst [vmem:[%s212 + $0x398] sm:$0xff] %v3073
      %3748 = vst [vmem:[%s212 + $0x3a0] sm:$0xff] %v3074
      %3749 = vst [vmem:[%s212 + $0x3a8] sm:$0xff] %v3075
      %3750 = vst [vmem:[%s212 + $0x3b0] sm:$0xff] %v3076
      %3751 = vst [vmem:[%s212 + $0x3b8] sm:$0xff] %v3077
      %3752 = vst [vmem:[%s212 + $0x3c0] sm:$0xff] %v3078
      %3753 = vst [vmem:[%s212 + $0x3c8] sm:$0xff] %v3079
      %3754 = vst [vmem:[%s212 + $0x3d0] sm:$0xff] %v3080
      %3755 = vst [vmem:[%s212 + $0x3d8] sm:$0xff] %v3081
      %3756 = vst [vmem:[%s212 + $0x3e0] sm:$0xff] %v3082
      %3757 = vst [vmem:[%s212 + $0x3e8] sm:$0xff] %v3083
      %3758 = vst [vmem:[%s212 + $0x3f0] sm:$0xff] %v3084
      %3759 = vst [vmem:[%s212 + $0x3f8] sm:$0xff] %v3085
      %3760 = vst [vmem:[%s212 + $0x400] sm:$0xff] %v3086
      %3761 = vst [vmem:[%s212 + $0x408] sm:$0xff] %v3087
      %3762 = vst [vmem:[%s212 + $0x410] sm:$0xff] %v3088
      %3763 = vst [vmem:[%s212 + $0x418] sm:$0xff] %v3089
      %3764 = vst [vmem:[%s212 + $0x420] sm:$0xff] %v3090
      %3765 = vst [vmem:[%s212 + $0x428] sm:$0xff] %v3091
      %3766 = vst [vmem:[%s212 + $0x430] sm:$0xff] %v3092
      %3767 = vst [vmem:[%s212 + $0x438] sm:$0xff] %v3093
      %3768 = vst [vmem:[%s212 + $0x440] sm:$0xff] %v3094
      %3769 = vst [vmem:[%s212 + $0x448] sm:$0xff] %v3095
      %3770 = vst [vmem:[%s212 + $0x450] sm:$0xff] %v3096
      %3771 = vst [vmem:[%s212 + $0x458] sm:$0xff] %v3097
      %3772 = vst [vmem:[%s212 + $0x460] sm:$0xff] %v3098
      %3773 = vst [vmem:[%s212 + $0x468] sm:$0xff] %v3099
      %3774 = vst [vmem:[%s212 + $0x470] sm:$0xff] %v3100
      %3775 = vst [vmem:[%s212 + $0x478] sm:$0xff] %v3101
      %3776 = vst [vmem:[%s212 + $0x480] sm:$0xff] %v3102
      %3777 = vst [vmem:[%s212 + $0x488] sm:$0xff] %v3103
      %3778 = vst [vmem:[%s212 + $0x490] sm:$0xff] %v3104
      %3779 = vst [vmem:[%s212 + $0x498] sm:$0xff] %v3105
      %3780 = vst [vmem:[%s212 + $0x4a0] sm:$0xff] %v3106
      %3781 = vst [vmem:[%s212 + $0x4a8] sm:$0xff] %v3107
      %3782 = vst [vmem:[%s212 + $0x4b0] sm:$0xff] %v3108
      %3783 = vst [vmem:[%s212 + $0x4b8] sm:$0xff] %v3109
      %3784 = vst [vmem:[%s212 + $0x4c0] sm:$0xff] %v3110
      %3785 = vst [vmem:[%s212 + $0x4c8] sm:$0xff] %v3111
      %3786 = vst [vmem:[%s212 + $0x4d0] sm:$0xff] %v3112
      %3787 = vst [vmem:[%s212 + $0x4d8] sm:$0xff] %v3113
      %3788 = vst [vmem:[%s212 + $0x4e0] sm:$0xff] %v3114
      %3789 = vst [vmem:[%s212 + $0x4e8] sm:$0xff] %v3115
      %3790 = vst [vmem:[%s212 + $0x4f0] sm:$0xff] %v3116
      %3791 = vst [vmem:[%s212 + $0x4f8] sm:$0xff] %v3117
      %3792 = vst [vmem:[%s212 + $0x500] sm:$0xff] %v3118
      %3793 = vst [vmem:[%s212 + $0x508] sm:$0xff] %v3119
      %3794 = vst [vmem:[%s212 + $0x510] sm:$0xff] %v3120
      %3795 = vst [vmem:[%s212 + $0x518] sm:$0xff] %v3121
      %3796 = vst [vmem:[%s212 + $0x520] sm:$0xff] %v3122
      %3797 = vst [vmem:[%s212 + $0x528] sm:$0xff] %v3123
      %3798 = vst [vmem:[%s212 + $0x530] sm:$0xff] %v3124
      %3799 = vst [vmem:[%s212 + $0x538] sm:$0xff] %v3125
      %3800 = vst [vmem:[%s212 + $0x540] sm:$0xff] %v3126
      %3801 = vst [vmem:[%s212 + $0x548] sm:$0xff] %v3127
      %3802 = vst [vmem:[%s212 + $0x550] sm:$0xff] %v3128
      %3803 = vst [vmem:[%s212 + $0x558] sm:$0xff] %v3129
      %3804 = vst [vmem:[%s212 + $0x560] sm:$0xff] %v3130
      %3805 = vst [vmem:[%s212 + $0x568] sm:$0xff] %v3131
      %3806 = vst [vmem:[%s212 + $0x570] sm:$0xff] %v3132
      %3807 = vst [vmem:[%s212 + $0x578] sm:$0xff] %v3133
      %3808 = vst [vmem:[%s212 + $0x580] sm:$0xff] %v3134
      %3809 = vst [vmem:[%s212 + $0x588] sm:$0xff] %v3135
      %3810 = vst [vmem:[%s212 + $0x590] sm:$0xff] %v3136
      %3811 = vst [vmem:[%s212 + $0x598] sm:$0xff] %v3137
      %3812 = vst [vmem:[%s212 + $0x5a0] sm:$0xff] %v3138
      %3813 = vst [vmem:[%s212 + $0x5a8] sm:$0xff] %v3139
      %3814 = vst [vmem:[%s212 + $0x5b0] sm:$0xff] %v3140
      %3815 = vst [vmem:[%s212 + $0x5b8] sm:$0xff] %v3141
      %3816 = vst [vmem:[%s212 + $0x5c0] sm:$0xff] %v3142
      %3817 = vst [vmem:[%s212 + $0x5c8] sm:$0xff] %v3143
      %3818 = vst [vmem:[%s212 + $0x5d0] sm:$0xff] %v3144
      %3819 = vst [vmem:[%s212 + $0x5d8] sm:$0xff] %v3145
      %3820 = vst [vmem:[%s212 + $0x5e0] sm:$0xff] %v3146
      %3821 = vst [vmem:[%s212 + $0x5e8] sm:$0xff] %v3147
      %3822 = vst [vmem:[%s212 + $0x5f0] sm:$0xff] %v3148
      %3823 = vst [vmem:[%s212 + $0x5f8] sm:$0xff] %v3149
      %3824 = vst [vmem:[%s212 + $0x600] sm:$0xff] %v3150
      %3825 = vst [vmem:[%s212 + $0x608] sm:$0xff] %v3151
      %3826 = vst [vmem:[%s212 + $0x610] sm:$0xff] %v3152
      %3827 = vst [vmem:[%s212 + $0x618] sm:$0xff] %v3153
      %3828 = vst [vmem:[%s212 + $0x620] sm:$0xff] %v3154
      %3829 = vst [vmem:[%s212 + $0x628] sm:$0xff] %v3155
      %3830 = vst [vmem:[%s212 + $0x630] sm:$0xff] %v3156
      %3831 = vst [vmem:[%s212 + $0x638] sm:$0xff] %v3157
      %3832 = vst [vmem:[%s212 + $0x640] sm:$0xff] %v3158
      %3833 = vst [vmem:[%s212 + $0x648] sm:$0xff] %v3159
      %3834 = vst [vmem:[%s212 + $0x650] sm:$0xff] %v3160
      %3835 = vst [vmem:[%s212 + $0x658] sm:$0xff] %v3161
      %3836 = vst [vmem:[%s212 + $0x660] sm:$0xff] %v3162
      %3837 = vst [vmem:[%s212 + $0x668] sm:$0xff] %v3163
      %3838 = vst [vmem:[%s212 + $0x670] sm:$0xff] %v3164
      %3839 = vst [vmem:[%s212 + $0x678] sm:$0xff] %v3165
      %3840 = vst [vmem:[%s212 + $0x680] sm:$0xff] %v3166
      %3841 = vst [vmem:[%s212 + $0x688] sm:$0xff] %v3167
      %3842 = vst [vmem:[%s212 + $0x690] sm:$0xff] %v3168
      %3843 = vst [vmem:[%s212 + $0x698] sm:$0xff] %v3169
      %3844 = vst [vmem:[%s212 + $0x6a0] sm:$0xff] %v3170
      %3845 = vst [vmem:[%s212 + $0x6a8] sm:$0xff] %v3171
      %3846 = vst [vmem:[%s212 + $0x6b0] sm:$0xff] %v3172
      %3847 = vst [vmem:[%s212 + $0x6b8] sm:$0xff] %v3173
      %3848 = vst [vmem:[%s212 + $0x6c0] sm:$0xff] %v3174
      %3849 = vst [vmem:[%s212 + $0x6c8] sm:$0xff] %v3175
      %3850 = vst [vmem:[%s212 + $0x6d0] sm:$0xff] %v3176
      %3851 = vst [vmem:[%s212 + $0x6d8] sm:$0xff] %v3177
      %3852 = vst [vmem:[%s212 + $0x6e0] sm:$0xff] %v3178
      %3853 = vst [vmem:[%s212 + $0x6e8] sm:$0xff] %v3179
      %3854 = vst [vmem:[%s212 + $0x6f0] sm:$0xff] %v3180
      %3855 = vst [vmem:[%s212 + $0x6f8] sm:$0xff] %v3181
      %3856 = vst [vmem:[%s212 + $0x700] sm:$0xff] %v3182
      %3857 = vst [vmem:[%s212 + $0x708] sm:$0xff] %v3183
      %3858 = vst [vmem:[%s212 + $0x710] sm:$0xff] %v3184
      %3859 = vst [vmem:[%s212 + $0x718] sm:$0xff] %v3185
      %3860 = vst [vmem:[%s212 + $0x720] sm:$0xff] %v3186
      %3861 = vst [vmem:[%s212 + $0x728] sm:$0xff] %v3187
      %3862 = vst [vmem:[%s212 + $0x730] sm:$0xff] %v3188
      %3863 = vst [vmem:[%s212 + $0x738] sm:$0xff] %v3189
      %3864 = vst [vmem:[%s212 + $0x740] sm:$0xff] %v3190
      %3865 = vst [vmem:[%s212 + $0x748] sm:$0xff] %v3191
      %3866 = vst [vmem:[%s212 + $0x750] sm:$0xff] %v3192
      %3867 = vst [vmem:[%s212 + $0x758] sm:$0xff] %v3193
      %3868 = vst [vmem:[%s212 + $0x760] sm:$0xff] %v3194
      %3869 = vst [vmem:[%s212 + $0x768] sm:$0xff] %v3195
      %3870 = vst [vmem:[%s212 + $0x770] sm:$0xff] %v3196
      %3871 = vst [vmem:[%s212 + $0x778] sm:$0xff] %v3197
      %3872 = vst [vmem:[%s212 + $0x780] sm:$0xff] %v3198
      %3873 = vst [vmem:[%s212 + $0x788] sm:$0xff] %v3199
      %3874 = vst [vmem:[%s212 + $0x790] sm:$0xff] %v3200
      %3875 = vst [vmem:[%s212 + $0x798] sm:$0xff] %v3201
      %3876 = vst [vmem:[%s212 + $0x7a0] sm:$0xff] %v3202
      %3877 = vst [vmem:[%s212 + $0x7a8] sm:$0xff] %v3203
      %3878 = vst [vmem:[%s212 + $0x7b0] sm:$0xff] %v3204
      %3879 = vst [vmem:[%s212 + $0x7b8] sm:$0xff] %v3205
      %3880 = vst [vmem:[%s212 + $0x7c0] sm:$0xff] %v3206
      %3881 = vst [vmem:[%s212 + $0x7c8] sm:$0xff] %v3207
      %3882 = vst [vmem:[%s212 + $0x7d0] sm:$0xff] %v3208
      %3883 = vst [vmem:[%s212 + $0x7d8] sm:$0xff] %v3209
      %3884 = vst [vmem:[%s212 + $0x7e0] sm:$0xff] %v3210
      %3885 = vst [vmem:[%s212 + $0x7e8] sm:$0xff] %v3211
      %3886 = vst [vmem:[%s212 + $0x7f0] sm:$0xff] %v3212
      %3887 = vst [vmem:[%s212 + $0x7f8] sm:$0xff] %v3213
      %vm3888 = vcmask 261120
      %3889 = vst.msk [vmem:[%s218] sm:$0xff] %vm3888, %v3600
      %3890 = vst.msk [vmem:[%s218 + $0x8] sm:$0xff] %vm3888, %v3601
      %3891 = vst.msk [vmem:[%s218 + $0x10] sm:$0xff] %vm3888, %v3602
      %3892 = vst.msk [vmem:[%s218 + $0x18] sm:$0xff] %vm3888, %v3603
      %3893 = vst.msk [vmem:[%s218 + $0x20] sm:$0xff] %vm3888, %v3604
      %3894 = vst.msk [vmem:[%s218 + $0x28] sm:$0xff] %vm3888, %v3605
      %3895 = vst.msk [vmem:[%s218 + $0x30] sm:$0xff] %vm3888, %v3606
      %3896 = vst.msk [vmem:[%s218 + $0x38] sm:$0xff] %vm3888, %v3607
      %3897 = vst.msk [vmem:[%s218 + $0x40] sm:$0xff] %vm3888, %v3608
      %3898 = vst.msk [vmem:[%s218 + $0x48] sm:$0xff] %vm3888, %v3609
      %3899 = vst.msk [vmem:[%s218 + $0x50] sm:$0xff] %vm3888, %v3610
      %3900 = vst.msk [vmem:[%s218 + $0x58] sm:$0xff] %vm3888, %v3611
      %3901 = vst.msk [vmem:[%s218 + $0x60] sm:$0xff] %vm3888, %v3612
      %3902 = vst.msk [vmem:[%s218 + $0x68] sm:$0xff] %vm3888, %v3613
      %3903 = vst.msk [vmem:[%s218 + $0x70] sm:$0xff] %vm3888, %v3614
      %3904 = vst.msk [vmem:[%s218 + $0x78] sm:$0xff] %vm3888, %v3615
      %3905 = vst.msk [vmem:[%s218 + $0x80] sm:$0xff] %vm3888, %v3616
      %3906 = vst.msk [vmem:[%s218 + $0x88] sm:$0xff] %vm3888, %v3617
      %3907 = vst.msk [vmem:[%s218 + $0x90] sm:$0xff] %vm3888, %v3618
      %3908 = vst.msk [vmem:[%s218 + $0x98] sm:$0xff] %vm3888, %v3619
      %3909 = vst.msk [vmem:[%s218 + $0xa0] sm:$0xff] %vm3888, %v3620
      %3910 = vst.msk [vmem:[%s218 + $0xa8] sm:$0xff] %vm3888, %v3621
      %3911 = vst.msk [vmem:[%s218 + $0xb0] sm:$0xff] %vm3888, %v3622
      %3912 = vst.msk [vmem:[%s218 + $0xb8] sm:$0xff] %vm3888, %v3623
      %3913 = vst.msk [vmem:[%s218 + $0xc0] sm:$0xff] %vm3888, %v3624
      %3914 = vst.msk [vmem:[%s218 + $0xc8] sm:$0xff] %vm3888, %v3625
      %3915 = vst.msk [vmem:[%s218 + $0xd0] sm:$0xff] %vm3888, %v3626
      %3916 = vst.msk [vmem:[%s218 + $0xd8] sm:$0xff] %vm3888, %v3627
      %3917 = vst.msk [vmem:[%s218 + $0xe0] sm:$0xff] %vm3888, %v3628
      %3918 = vst.msk [vmem:[%s218 + $0xe8] sm:$0xff] %vm3888, %v3629
      %3919 = vst.msk [vmem:[%s218 + $0xf0] sm:$0xff] %vm3888, %v3630
      %3920 = vst.msk [vmem:[%s218 + $0xf8] sm:$0xff] %vm3888, %v3631
      %s3921 = smul.u32 32, %s16
      %p3922 = scmp.lt.s32.totalorder %s3921, 127
      %s3923 = scalar_select %p3922, %s3921, 127
      %s3924 = smul.addr %s3923, 8
      %s3925 = smul.addr %s3924, 8
      %s3926 = scalar_lea.vmem %s3, %s3925
      %s3927 = smul.u32 32, %s16
      %p3928 = scmp.lt.s32.totalorder %s3927, 127
      %s3929 = scalar_select %p3928, %s3927, 127
      %s3930 = smul.addr %s3929, 8
      %s3931 = scalar_lea.vmem %s4, %s3930
      // Predicated region
      $region33: #{pfn_layer.1} parent=31 // pred_check
        %p3932 = pneg %p102
      $region34: #{pfn_layer.1} parent=31 // pred_check_branch
        %3934 = sbr.rel (%p3932) target = $region36
      $region35: #{pfn_layer.1} parent=31 // pred_region
        %s3935 = smul.u32 32, %s16
      $region36: #{pfn_layer.1} parent=31 // pred_fallthru
        _
      // Predicated region
      $region37: #{pfn_layer.1} parent=31 // pred_check
        %p3936 = pneg %p128
      $region38: #{pfn_layer.1} parent=31 // pred_check_branch
        %3938 = sbr.rel (%p3936) target = $region40
      $region39: #{pfn_layer.1} parent=31 // pred_region
        %s3939 = smul.u32 32, %s16
      $region40: #{pfn_layer.1} parent=31 // pred_fallthru
        _
    $region32: #{pfn_layer.1} parent=5 // pred_fallthru
      _
    %p3940 = scmp.le.s32.totalorder 2, %s11
    // Predicated region
    $region41: #{pfn_layer.1} parent=5 // pred_check
      %p3941 = pneg %p3940
    $region42: #{pfn_layer.1} parent=5 // pred_check_branch
      %3943 = sbr.rel (%p3941) target = $region44
    $region43: #{pfn_layer.1} parent=5 // pred_region
      %s3944 = ssub.s32 %s11, 2
      // Predicated region
      $region45: #{pfn_layer.1} parent=43 // pred_check
        %p3945 = pneg %p108
      $region46: #{pfn_layer.1} parent=43 // pred_check_branch
        %3947 = sbr.rel (%p3945) target = $region48
      $region47: #{pfn_layer.1} parent=43 // pred_region
        %s3948 = smul.u32 32, %s17
        %p3949 = scmp.lt.s32.totalorder %s3948, 127
        %s3950 = scalar_select %p3949, %s3948, 127
        %s3951 = smul.addr %s3950, 8
        %s3952 = smul.addr %s3951, 8
        %s3953 = scalar_lea.vmem %s3, %s3952
      $region48: #{pfn_layer.1} parent=43 // pred_fallthru
        _
      // Predicated region
      $region49: #{pfn_layer.1} parent=43 // pred_check
        %p3954 = pneg %p134
      $region50: #{pfn_layer.1} parent=43 // pred_check_branch
        %3956 = sbr.rel (%p3954) target = $region52
      $region51: #{pfn_layer.1} parent=43 // pred_region
        %s3957 = smul.u32 32, %s17
        %p3958 = scmp.lt.s32.totalorder %s3957, 127
        %s3959 = scalar_select %p3958, %s3957, 127
        %s3960 = smul.addr %s3959, 8
        %s3961 = scalar_lea.vmem %s4, %s3960
      $region52: #{pfn_layer.1} parent=43 // pred_fallthru
        _
    $region44: #{pfn_layer.1} parent=5 // pred_fallthru
      _
  $region6: #{pfn_layer.1} parent=0 // loop_footer
    %s15 = sadd.s32 1, %s11
  $region7: #{pfn_layer.1} parent=0 // loop_footer_branch
    %10 = sbr.rel target = $region3
  $region8: #{pfn_layer.1} parent=0 // loop_exit
    _

</llo_original>
